<compile_context>
chip_gen: v6e
topology: v6e:2x2x1
jax: 0.10.0
libtpu: 0.0.40
codegen_flags: <defaults>
</compile_context>

<pallas_src>
import jax
import jax.numpy as jnp
from jax.experimental import pallas as pl
from jax.experimental.pallas import tpu as pltpu


def _make_kernel(C, H, W):
    HW = H * W
    THW = 2 * HW                        # align + feature stacked along lanes
    G = ((W + 1 + 127) // 128) * 128    # lane halo >= W+1, keeps the h1 store 128-aligned

    def kernel(x_ref, mask_ref, w1_ref, b1_ref, w2_ref, b2_ref, w3_ref,
               b3_ref, out_ref, pad_ref, col_ref):
        # x_ref:    (1, C, 2*HW)  [align | feature], spatially flattened (lane-dense)
        # mask_ref: (9, 2*HW)     0/1 validity of each 3x3 tap position
        # w1: (64, C)  b1: (64, 1)  w2: (32, 576)  b2: (32, 1)  w3: (32, 1)  b3: (1, 1)
        # pad_ref:  (64, 2*HW + 2*G) scratch; h1 lives at lane offset G
        # col_ref:  (576, 2*HW)      im2col scratch for the fused conv2 matmul
        x = x_ref[0].astype(jnp.float32)                                   # (C, 2HW)

        # conv1: 1x1 conv == channel matmul, both heads at once
        h1 = jnp.dot(w1_ref[...], x,
                     preferred_element_type=jnp.float32) + b1_ref[...]     # (64, 2HW)

        # stage h1 into the padded plane (single aligned lane-dense store)
        pad_ref[:, G:G + THW] = h1

        # build im2col: 9 statically shifted copies; invalid (out-of-image) taps
        # are discarded with a select so the halo never needs zero-initialisation.
        k = 0
        for oy in (-1, 0, 1):
            for ox in (-1, 0, 1):
                delta = oy * W + ox
                tap = pad_ref[:, G + delta:G + delta + THW]                # (64, 2HW)
                m = mask_ref[k:k + 1, :]                                   # (1, 2HW)
                col_ref[k * 64:(k + 1) * 64, :] = jnp.where(m > 0.5, tap, 0.0)
                k += 1

        # conv2: 3x3 conv fused into one K=576 MXU matmul
        h2 = jnp.dot(w2_ref[...], col_ref[...],
                     preferred_element_type=jnp.float32) + b2_ref[...]     # (32, 2HW)

        # conv3: 32 -> 1 channel weighted reduction
        h3 = jnp.sum(h2 * w3_ref[...], axis=0, keepdims=True) + b3_ref[...]  # (1, 2HW)

        # softmax over the two logits (align vs feature) + blend
        a_logit = h3[:, 0:HW]
        f_logit = h3[:, HW:THW]
        mx = jnp.maximum(a_logit, f_logit)
        ea = jnp.exp(a_logit - mx)
        ef = jnp.exp(f_logit - mx)
        s = ea + ef
        inv = pl.reciprocal(s, approx=True)
        inv = inv * (2.0 - s * inv)        # one Newton step -> full f32 accuracy
        wa = ea * inv
        wf = ef * inv

        out = wa * x[:, 0:HW] + wf * x[:, HW:THW]                          # (C, HW)
        out_ref[0] = out.astype(out_ref.dtype)

    return kernel, G


def aggregation_pallas(align_nchw, feat_nchw, w1, b1, w2, b2, w3, b3):
    N, C, H, W = align_nchw.shape
    HW = H * W
    THW = 2 * HW
    kernel, G = _make_kernel(C, H, W)

    # lane-dense channels-first layout: just a reshape (no NCHW->NHWC transpose);
    # stack the two heads along the flattened-spatial (lane) axis.
    x_cat = jnp.concatenate(
        [align_nchw.reshape(N, C, HW), feat_nchw.reshape(N, C, HW)], axis=-1)

    # per-tap validity masks for the 3x3 conv (computed once, tiled for both heads)
    j = jnp.arange(HW)
    ys, xs = j // W, j % W
    masks = []
    for oy in (-1, 0, 1):
        for ox in (-1, 0, 1):
            masks.append((ys + oy >= 0) & (ys + oy < H) &
                         (xs + ox >= 0) & (xs + ox < W))
    mask9 = jnp.tile(jnp.stack(masks, axis=0).astype(jnp.float32), (1, 2))  # (9, 2HW)

    # weight layouts for the channels-first matmuls
    w1t = w1.T                       # (64, C)
    b1c = b1.reshape(64, 1)
    w2m = w2.reshape(9 * 64, 32).T   # (32, 576), columns ordered (tap, cin)
    b2c = b2.reshape(32, 1)
    w3c = w3.reshape(32, 1)
    b3c = b3.reshape(1, 1)

    out_flat = pl.pallas_call(
        kernel,
        out_shape=jax.ShapeDtypeStruct((N, C, HW), align_nchw.dtype),
        grid_spec=pltpu.PrefetchScalarGridSpec(
            num_scalar_prefetch=0,
            grid=(N,),
            in_specs=[
                pl.BlockSpec((1, C, THW), lambda n: (n, 0, 0)),   # stacked inputs
                pl.BlockSpec((9, THW), lambda n: (0, 0)),         # tap masks
                pl.BlockSpec((64, C), lambda n: (0, 0)),          # w1^T
                pl.BlockSpec((64, 1), lambda n: (0, 0)),          # b1
                pl.BlockSpec((32, 9 * 64), lambda n: (0, 0)),     # w2 (im2col layout)
                pl.BlockSpec((32, 1), lambda n: (0, 0)),          # b2
                pl.BlockSpec((32, 1), lambda n: (0, 0)),          # w3
                pl.BlockSpec((1, 1), lambda n: (0, 0)),           # b3
            ],
            out_specs=pl.BlockSpec((1, C, HW), lambda n: (n, 0, 0)),
            scratch_shapes=[
                pltpu.VMEM((64, THW + 2 * G), jnp.float32),       # padded h1 plane
                pltpu.VMEM((9 * 64, THW), jnp.float32),           # im2col buffer
            ],
        ),
        compiler_params=pltpu.CompilerParams(
            dimension_semantics=("parallel",),
            vmem_limit_bytes=64 * 1024 * 1024,
        ),
    )(x_cat, mask9, w1t, b1c, w2m, b2c, w3c, b3c)

    return out_flat.reshape(N, C, H, W)


def reference_nchw(align_nchw, feat_nchw, w1, b1, w2, b2, w3, b3):
    """Pure-JAX NCHW reference mirroring PyTorch semantics exactly."""
    C = align_nchw.shape[1]
    w1_oihw = w1.T.reshape(64, C, 1, 1)
    w2_oihw = w2.reshape(3, 3, 64, 32).transpose(3, 2, 0, 1)
    w3_oihw = w3.reshape(1, 32, 1, 1)

    def conv(x, w, b, pad):
        y = jax.lax.conv_general_dilated(
            x, w, window_strides=(1, 1), padding=[(pad, pad), (pad, pad)],
            dimension_numbers=('NCHW', 'OIHW', 'NCHW'))
        return y + b.reshape(1, -1, 1, 1)

    def head(x):
        return conv(conv(conv(x, w1_oihw, b1, 0), w2_oihw, b2, 1), w3_oihw, b3, 0)

    a3 = head(align_nchw)
    f3 = head(feat_nchw)
    wts = jax.nn.softmax(jnp.concatenate([a3, f3], axis=1), axis=1)
    return wts[:, 0:1] * align_nchw + wts[:, 1:2] * feat_nchw


if __name__ == "__main__":
    key = jax.random.PRNGKey(0)
    N, C, H, W = 2, 4, 16, 16
    ks = jax.random.split(key, 8)

    # inputs in PyTorch NCHW convention
    align_nchw = jax.random.normal(ks[0], (N, C, H, W), jnp.float32)
    feat_nchw = jax.random.normal(ks[1], (N, C, H, W), jnp.float32)

    # deterministic synthetic parameters (matmul layouts)
    w1 = jax.random.normal(ks[2], (C, 64), jnp.float32) * 0.10      # conv1 weight
    b1 = jax.random.normal(ks[3], (1, 64), jnp.float32) * 0.10      # conv1 bias
    w2 = jax.random.normal(ks[4], (9, 64, 32), jnp.float32) * 0.05  # conv2 weight (kh*kw, cin, cout)
    b2 = jax.random.normal(ks[5], (1, 32), jnp.float32) * 0.10      # conv2 bias
    w3 = jax.random.normal(ks[6], (1, 32), jnp.float32) * 0.10      # conv3 weight
    b3 = jax.random.normal(ks[7], (1, 1), jnp.float32) * 0.10       # conv3 bias

    out = aggregation_pallas(align_nchw, feat_nchw, w1, b1, w2, b2, w3, b3)
    out = jax.block_until_ready(out)

    ref = reference_nchw(align_nchw, feat_nchw, w1, b1, w2, b2, w3, b3)
    max_err = float(jnp.max(jnp.abs(out - ref)))
    assert jnp.allclose(out, ref, atol=2e-4, rtol=2e-4), f"max_err={max_err}"

    print("KERNEL_OK")
</pallas_src>

<mosaic_0001>
module attributes {stable_mosaic.version = 11 : i64} {
  func.func @kernel(%arg0: i32, %arg1: memref<1x4x512xf32, #tpu.memory_space<vmem>>, %arg2: memref<9x512xf32, #tpu.memory_space<vmem>>, %arg3: memref<64x4xf32, #tpu.memory_space<vmem>>, %arg4: memref<64x1xf32, #tpu.memory_space<vmem>>, %arg5: memref<32x576xf32, #tpu.memory_space<vmem>>, %arg6: memref<32x1xf32, #tpu.memory_space<vmem>>, %arg7: memref<32x1xf32, #tpu.memory_space<vmem>>, %arg8: memref<1x1xf32, #tpu.memory_space<vmem>>, %arg9: memref<1x4x256xf32, #tpu.memory_space<vmem>>, %arg10: memref<64x768xf32, #tpu.memory_space<vmem>>, %arg11: memref<576x512xf32, #tpu.memory_space<vmem>>) attributes {dimension_semantics = [#tpu.dimension_semantics<parallel>], iteration_bounds = array<i64: 2>, scalar_prefetch = 0 : i64, scratch_operands = 2 : i64, tpu.core_type = #tpu.core_type<tc>, window_params = [{transform_indices = @transform_0, window_bounds = array<i64: 1, 4, 512>}, {pipeline_mode = #tpu.pipeline_mode<synchronous>, transform_indices = @transform_1, window_bounds = array<i64: 9, 512>}, {pipeline_mode = #tpu.pipeline_mode<synchronous>, transform_indices = @transform_2, window_bounds = array<i64: 64, 4>}, {pipeline_mode = #tpu.pipeline_mode<synchronous>, transform_indices = @transform_3, window_bounds = array<i64: 64, 1>}, {pipeline_mode = #tpu.pipeline_mode<synchronous>, transform_indices = @transform_4, window_bounds = array<i64: 32, 576>}, {pipeline_mode = #tpu.pipeline_mode<synchronous>, transform_indices = @transform_5, window_bounds = array<i64: 32, 1>}, {pipeline_mode = #tpu.pipeline_mode<synchronous>, transform_indices = @transform_6, window_bounds = array<i64: 32, 1>}, {pipeline_mode = #tpu.pipeline_mode<synchronous>, transform_indices = @transform_7, window_bounds = array<i64: 1, 1>}, {transform_indices = @transform_8, window_bounds = array<i64: 1, 4, 256>}]} {
    %c0 = arith.constant 0 : index
    %c0_0 = arith.constant 0 : index
    %c0_1 = arith.constant 0 : index
    %0 = vector.load %arg1[%c0, %c0_0, %c0_1] : memref<1x4x512xf32, #tpu.memory_space<vmem>>, vector<1x4x512xf32>
    %1 = vector.shape_cast %0 : vector<1x4x512xf32> to vector<4x512xf32>
    %c0_2 = arith.constant 0 : index
    %c0_3 = arith.constant 0 : index
    %2 = vector.load %arg3[%c0_2, %c0_3] : memref<64x4xf32, #tpu.memory_space<vmem>>, vector<64x4xf32>
    %cst = arith.constant dense<0.000000e+00> : vector<64x512xf32>
    %3 = tpu.matmul %2, %1, %cst {dimension_numbers = #tpu.dot_dimension_numbers<[1], [0], [0], [1], [0, 0, 1, 1], [], []>} : vector<64x4xf32>, vector<4x512xf32>, vector<64x512xf32> -> vector<64x512xf32>
    %c0_4 = arith.constant 0 : index
    %c0_5 = arith.constant 0 : index
    %4 = vector.load %arg4[%c0_4, %c0_5] : memref<64x1xf32, #tpu.memory_space<vmem>>, vector<64x1xf32>
    %5 = vector.broadcast %4 : vector<64x1xf32> to vector<64x512xf32>
    %6 = arith.addf %3, %5 : vector<64x512xf32>
    %c0_6 = arith.constant 0 : index
    %c128 = arith.constant 128 : index
    %7 = vector.load %arg10[%c0_6, %c128] : memref<64x768xf32, #tpu.memory_space<vmem>>, vector<64x512xf32>
    tpu.vector_store %arg10[%c0_6, %c128], %6 {strides = array<i32>} : memref<64x768xf32, #tpu.memory_space<vmem>>, vector<64x512xf32>,
    %c0_7 = arith.constant 0 : index
    %c111 = arith.constant 111 : index
    %8 = vector.load %arg10[%c0_7, %c111] : memref<64x768xf32, #tpu.memory_space<vmem>>, vector<64x512xf32>
    %c0_8 = arith.constant 0 : index
    %c0_9 = arith.constant 0 : index
    %9 = vector.load %arg2[%c0_8, %c0_9] : memref<9x512xf32, #tpu.memory_space<vmem>>, vector<1x512xf32>
    %cst_10 = arith.constant 5.000000e-01 : f32
    %10 = vector.broadcast %cst_10 : f32 to vector<1x512xf32>
    %11 = arith.cmpf ogt, %9, %10 : vector<1x512xf32>
    %cst_11 = arith.constant 0.000000e+00 : f32
    %12 = vector.shape_cast %11 : vector<1x512xi1> to vector<1x512xi1>
    %13 = vector.broadcast %12 : vector<1x512xi1> to vector<64x512xi1>
    %14 = vector.broadcast %cst_11 : f32 to vector<64x512xf32>
    %15 = arith.select %13, %8, %14 : vector<64x512xi1>, vector<64x512xf32>
    %c0_12 = arith.constant 0 : index
    %c0_13 = arith.constant 0 : index
    %16 = vector.load %arg11[%c0_12, %c0_13] : memref<576x512xf32, #tpu.memory_space<vmem>>, vector<64x512xf32>
    tpu.vector_store %arg11[%c0_12, %c0_13], %15 {strides = array<i32>} : memref<576x512xf32, #tpu.memory_space<vmem>>, vector<64x512xf32>,
    %c0_14 = arith.constant 0 : index
    %c112 = arith.constant 112 : index
    %17 = vector.load %arg10[%c0_14, %c112] : memref<64x768xf32, #tpu.memory_space<vmem>>, vector<64x512xf32>
    %c1 = arith.constant 1 : index
    %c0_15 = arith.constant 0 : index
    %18 = vector.load %arg2[%c1, %c0_15] : memref<9x512xf32, #tpu.memory_space<vmem>>, vector<1x512xf32>
    %cst_16 = arith.constant 5.000000e-01 : f32
    %19 = vector.broadcast %cst_16 : f32 to vector<1x512xf32>
    %20 = arith.cmpf ogt, %18, %19 : vector<1x512xf32>
    %cst_17 = arith.constant 0.000000e+00 : f32
    %21 = vector.shape_cast %20 : vector<1x512xi1> to vector<1x512xi1>
    %22 = vector.broadcast %21 : vector<1x512xi1> to vector<64x512xi1>
    %23 = vector.broadcast %cst_17 : f32 to vector<64x512xf32>
    %24 = arith.select %22, %17, %23 : vector<64x512xi1>, vector<64x512xf32>
    %c64 = arith.constant 64 : index
    %c0_18 = arith.constant 0 : index
    %25 = vector.load %arg11[%c64, %c0_18] : memref<576x512xf32, #tpu.memory_space<vmem>>, vector<64x512xf32>
    tpu.vector_store %arg11[%c64, %c0_18], %24 {strides = array<i32>} : memref<576x512xf32, #tpu.memory_space<vmem>>, vector<64x512xf32>,
    %c0_19 = arith.constant 0 : index
    %c113 = arith.constant 113 : index
    %26 = vector.load %arg10[%c0_19, %c113] : memref<64x768xf32, #tpu.memory_space<vmem>>, vector<64x512xf32>
    %c2 = arith.constant 2 : index
    %c0_20 = arith.constant 0 : index
    %27 = vector.load %arg2[%c2, %c0_20] : memref<9x512xf32, #tpu.memory_space<vmem>>, vector<1x512xf32>
    %cst_21 = arith.constant 5.000000e-01 : f32
    %28 = vector.broadcast %cst_21 : f32 to vector<1x512xf32>
    %29 = arith.cmpf ogt, %27, %28 : vector<1x512xf32>
    %cst_22 = arith.constant 0.000000e+00 : f32
    %30 = vector.shape_cast %29 : vector<1x512xi1> to vector<1x512xi1>
    %31 = vector.broadcast %30 : vector<1x512xi1> to vector<64x512xi1>
    %32 = vector.broadcast %cst_22 : f32 to vector<64x512xf32>
    %33 = arith.select %31, %26, %32 : vector<64x512xi1>, vector<64x512xf32>
    %c128_23 = arith.constant 128 : index
    %c0_24 = arith.constant 0 : index
    %34 = vector.load %arg11[%c128_23, %c0_24] : memref<576x512xf32, #tpu.memory_space<vmem>>, vector<64x512xf32>
    tpu.vector_store %arg11[%c128_23, %c0_24], %33 {strides = array<i32>} : memref<576x512xf32, #tpu.memory_space<vmem>>, vector<64x512xf32>,
    %c0_25 = arith.constant 0 : index
    %c127 = arith.constant 127 : index
    %35 = vector.load %arg10[%c0_25, %c127] : memref<64x768xf32, #tpu.memory_space<vmem>>, vector<64x512xf32>
    %c3 = arith.constant 3 : index
    %c0_26 = arith.constant 0 : index
    %36 = vector.load %arg2[%c3, %c0_26] : memref<9x512xf32, #tpu.memory_space<vmem>>, vector<1x512xf32>
    %cst_27 = arith.constant 5.000000e-01 : f32
    %37 = vector.broadcast %cst_27 : f32 to vector<1x512xf32>
    %38 = arith.cmpf ogt, %36, %37 : vector<1x512xf32>
    %cst_28 = arith.constant 0.000000e+00 : f32
    %39 = vector.shape_cast %38 : vector<1x512xi1> to vector<1x512xi1>
    %40 = vector.broadcast %39 : vector<1x512xi1> to vector<64x512xi1>
    %41 = vector.broadcast %cst_28 : f32 to vector<64x512xf32>
    %42 = arith.select %40, %35, %41 : vector<64x512xi1>, vector<64x512xf32>
    %c192 = arith.constant 192 : index
    %c0_29 = arith.constant 0 : index
    %43 = vector.load %arg11[%c192, %c0_29] : memref<576x512xf32, #tpu.memory_space<vmem>>, vector<64x512xf32>
    tpu.vector_store %arg11[%c192, %c0_29], %42 {strides = array<i32>} : memref<576x512xf32, #tpu.memory_space<vmem>>, vector<64x512xf32>,
    %c0_30 = arith.constant 0 : index
    %c128_31 = arith.constant 128 : index
    %44 = vector.load %arg10[%c0_30, %c128_31] : memref<64x768xf32, #tpu.memory_space<vmem>>, vector<64x512xf32>
    %c4 = arith.constant 4 : index
    %c0_32 = arith.constant 0 : index
    %45 = vector.load %arg2[%c4, %c0_32] : memref<9x512xf32, #tpu.memory_space<vmem>>, vector<1x512xf32>
    %cst_33 = arith.constant 5.000000e-01 : f32
    %46 = vector.broadcast %cst_33 : f32 to vector<1x512xf32>
    %47 = arith.cmpf ogt, %45, %46 : vector<1x512xf32>
    %cst_34 = arith.constant 0.000000e+00 : f32
    %48 = vector.shape_cast %47 : vector<1x512xi1> to vector<1x512xi1>
    %49 = vector.broadcast %48 : vector<1x512xi1> to vector<64x512xi1>
    %50 = vector.broadcast %cst_34 : f32 to vector<64x512xf32>
    %51 = arith.select %49, %44, %50 : vector<64x512xi1>, vector<64x512xf32>
    %c256 = arith.constant 256 : index
    %c0_35 = arith.constant 0 : index
    %52 = vector.load %arg11[%c256, %c0_35] : memref<576x512xf32, #tpu.memory_space<vmem>>, vector<64x512xf32>
    tpu.vector_store %arg11[%c256, %c0_35], %51 {strides = array<i32>} : memref<576x512xf32, #tpu.memory_space<vmem>>, vector<64x512xf32>,
    %c0_36 = arith.constant 0 : index
    %c129 = arith.constant 129 : index
    %53 = vector.load %arg10[%c0_36, %c129] : memref<64x768xf32, #tpu.memory_space<vmem>>, vector<64x512xf32>
    %c5 = arith.constant 5 : index
    %c0_37 = arith.constant 0 : index
    %54 = vector.load %arg2[%c5, %c0_37] : memref<9x512xf32, #tpu.memory_space<vmem>>, vector<1x512xf32>
    %cst_38 = arith.constant 5.000000e-01 : f32
    %55 = vector.broadcast %cst_38 : f32 to vector<1x512xf32>
    %56 = arith.cmpf ogt, %54, %55 : vector<1x512xf32>
    %cst_39 = arith.constant 0.000000e+00 : f32
    %57 = vector.shape_cast %56 : vector<1x512xi1> to vector<1x512xi1>
    %58 = vector.broadcast %57 : vector<1x512xi1> to vector<64x512xi1>
    %59 = vector.broadcast %cst_39 : f32 to vector<64x512xf32>
    %60 = arith.select %58, %53, %59 : vector<64x512xi1>, vector<64x512xf32>
    %c320 = arith.constant 320 : index
    %c0_40 = arith.constant 0 : index
    %61 = vector.load %arg11[%c320, %c0_40] : memref<576x512xf32, #tpu.memory_space<vmem>>, vector<64x512xf32>
    tpu.vector_store %arg11[%c320, %c0_40], %60 {strides = array<i32>} : memref<576x512xf32, #tpu.memory_space<vmem>>, vector<64x512xf32>,
    %c0_41 = arith.constant 0 : index
    %c143 = arith.constant 143 : index
    %62 = vector.load %arg10[%c0_41, %c143] : memref<64x768xf32, #tpu.memory_space<vmem>>, vector<64x512xf32>
    %c6 = arith.constant 6 : index
    %c0_42 = arith.constant 0 : index
    %63 = vector.load %arg2[%c6, %c0_42] : memref<9x512xf32, #tpu.memory_space<vmem>>, vector<1x512xf32>
    %cst_43 = arith.constant 5.000000e-01 : f32
    %64 = vector.broadcast %cst_43 : f32 to vector<1x512xf32>
    %65 = arith.cmpf ogt, %63, %64 : vector<1x512xf32>
    %cst_44 = arith.constant 0.000000e+00 : f32
    %66 = vector.shape_cast %65 : vector<1x512xi1> to vector<1x512xi1>
    %67 = vector.broadcast %66 : vector<1x512xi1> to vector<64x512xi1>
    %68 = vector.broadcast %cst_44 : f32 to vector<64x512xf32>
    %69 = arith.select %67, %62, %68 : vector<64x512xi1>, vector<64x512xf32>
    %c384 = arith.constant 384 : index
    %c0_45 = arith.constant 0 : index
    %70 = vector.load %arg11[%c384, %c0_45] : memref<576x512xf32, #tpu.memory_space<vmem>>, vector<64x512xf32>
    tpu.vector_store %arg11[%c384, %c0_45], %69 {strides = array<i32>} : memref<576x512xf32, #tpu.memory_space<vmem>>, vector<64x512xf32>,
    %c0_46 = arith.constant 0 : index
    %c144 = arith.constant 144 : index
    %71 = vector.load %arg10[%c0_46, %c144] : memref<64x768xf32, #tpu.memory_space<vmem>>, vector<64x512xf32>
    %c7 = arith.constant 7 : index
    %c0_47 = arith.constant 0 : index
    %72 = vector.load %arg2[%c7, %c0_47] : memref<9x512xf32, #tpu.memory_space<vmem>>, vector<1x512xf32>
    %cst_48 = arith.constant 5.000000e-01 : f32
    %73 = vector.broadcast %cst_48 : f32 to vector<1x512xf32>
    %74 = arith.cmpf ogt, %72, %73 : vector<1x512xf32>
    %cst_49 = arith.constant 0.000000e+00 : f32
    %75 = vector.shape_cast %74 : vector<1x512xi1> to vector<1x512xi1>
    %76 = vector.broadcast %75 : vector<1x512xi1> to vector<64x512xi1>
    %77 = vector.broadcast %cst_49 : f32 to vector<64x512xf32>
    %78 = arith.select %76, %71, %77 : vector<64x512xi1>, vector<64x512xf32>
    %c448 = arith.constant 448 : index
    %c0_50 = arith.constant 0 : index
    %79 = vector.load %arg11[%c448, %c0_50] : memref<576x512xf32, #tpu.memory_space<vmem>>, vector<64x512xf32>
    tpu.vector_store %arg11[%c448, %c0_50], %78 {strides = array<i32>} : memref<576x512xf32, #tpu.memory_space<vmem>>, vector<64x512xf32>,
    %c0_51 = arith.constant 0 : index
    %c145 = arith.constant 145 : index
    %80 = vector.load %arg10[%c0_51, %c145] : memref<64x768xf32, #tpu.memory_space<vmem>>, vector<64x512xf32>
    %c8 = arith.constant 8 : index
    %c0_52 = arith.constant 0 : index
    %81 = vector.load %arg2[%c8, %c0_52] : memref<9x512xf32, #tpu.memory_space<vmem>>, vector<1x512xf32>
    %cst_53 = arith.constant 5.000000e-01 : f32
    %82 = vector.broadcast %cst_53 : f32 to vector<1x512xf32>
    %83 = arith.cmpf ogt, %81, %82 : vector<1x512xf32>
    %cst_54 = arith.constant 0.000000e+00 : f32
    %84 = vector.shape_cast %83 : vector<1x512xi1> to vector<1x512xi1>
    %85 = vector.broadcast %84 : vector<1x512xi1> to vector<64x512xi1>
    %86 = vector.broadcast %cst_54 : f32 to vector<64x512xf32>
    %87 = arith.select %85, %80, %86 : vector<64x512xi1>, vector<64x512xf32>
    %c512 = arith.constant 512 : index
    %c0_55 = arith.constant 0 : index
    %88 = vector.load %arg11[%c512, %c0_55] : memref<576x512xf32, #tpu.memory_space<vmem>>, vector<64x512xf32>
    tpu.vector_store %arg11[%c512, %c0_55], %87 {strides = array<i32>} : memref<576x512xf32, #tpu.memory_space<vmem>>, vector<64x512xf32>,
    %c0_56 = arith.constant 0 : index
    %c0_57 = arith.constant 0 : index
    %89 = vector.load %arg5[%c0_56, %c0_57] : memref<32x576xf32, #tpu.memory_space<vmem>>, vector<32x576xf32>
    %c0_58 = arith.constant 0 : index
    %c0_59 = arith.constant 0 : index
    %90 = vector.load %arg11[%c0_58, %c0_59] : memref<576x512xf32, #tpu.memory_space<vmem>>, vector<576x512xf32>
    %cst_60 = arith.constant dense<0.000000e+00> : vector<32x512xf32>
    %91 = tpu.matmul %89, %90, %cst_60 {dimension_numbers = #tpu.dot_dimension_numbers<[1], [0], [0], [1], [0, 0, 1, 1], [], []>} : vector<32x576xf32>, vector<576x512xf32>, vector<32x512xf32> -> vector<32x512xf32>
    %c0_61 = arith.constant 0 : index
    %c0_62 = arith.constant 0 : index
    %92 = vector.load %arg6[%c0_61, %c0_62] : memref<32x1xf32, #tpu.memory_space<vmem>>, vector<32x1xf32>
    %93 = vector.broadcast %92 : vector<32x1xf32> to vector<32x512xf32>
    %94 = arith.addf %91, %93 : vector<32x512xf32>
    %c0_63 = arith.constant 0 : index
    %c0_64 = arith.constant 0 : index
    %95 = vector.load %arg7[%c0_63, %c0_64] : memref<32x1xf32, #tpu.memory_space<vmem>>, vector<32x1xf32>
    %96 = vector.broadcast %95 : vector<32x1xf32> to vector<32x512xf32>
    %97 = arith.mulf %94, %96 : vector<32x512xf32>
    %cst_65 = arith.constant dense<0.000000e+00> : vector<512xf32>
    %98 = vector.multi_reduction <add>, %97, %cst_65 [0] : vector<32x512xf32> to vector<512xf32>
    %99 = vector.shape_cast %98 : vector<512xf32> to vector<1x512xf32>
    %c0_66 = arith.constant 0 : index
    %c0_67 = arith.constant 0 : index
    %100 = vector.load %arg8[%c0_66, %c0_67] : memref<1x1xf32, #tpu.memory_space<vmem>>, vector<1x1xf32>
    %101 = vector.broadcast %100 : vector<1x1xf32> to vector<1x512xf32>
    %102 = arith.addf %99, %101 : vector<1x512xf32>
    %103 = vector.extract_strided_slice %102 {offsets = [0, 0], sizes = [1, 256], strides = [1, 1]} : vector<1x512xf32> to vector<1x256xf32>
    %104 = vector.extract_strided_slice %102 {offsets = [0, 256], sizes = [1, 256], strides = [1, 1]} : vector<1x512xf32> to vector<1x256xf32>
    %105 = arith.maximumf %103, %104 : vector<1x256xf32>
    %106 = arith.subf %103, %105 : vector<1x256xf32>
    %107 = math.exp %106 : vector<1x256xf32>
    %108 = arith.subf %104, %105 : vector<1x256xf32>
    %109 = math.exp %108 : vector<1x256xf32>
    %110 = arith.addf %107, %109 : vector<1x256xf32>
    %111 = tpu.reciprocal %110 {approx = true} : vector<1x256xf32> -> vector<1x256xf32>
    %112 = arith.mulf %110, %111 : vector<1x256xf32>
    %cst_68 = arith.constant 2.000000e+00 : f32
    %113 = vector.broadcast %cst_68 : f32 to vector<1x256xf32>
    %114 = arith.subf %113, %112 : vector<1x256xf32>
    %115 = arith.mulf %111, %114 : vector<1x256xf32>
    %116 = arith.mulf %107, %115 : vector<1x256xf32>
    %117 = arith.mulf %109, %115 : vector<1x256xf32>
    %118 = vector.extract_strided_slice %1 {offsets = [0, 0], sizes = [4, 256], strides = [1, 1]} : vector<4x512xf32> to vector<4x256xf32>
    %119 = vector.broadcast %116 : vector<1x256xf32> to vector<4x256xf32>
    %120 = arith.mulf %119, %118 : vector<4x256xf32>
    %121 = vector.extract_strided_slice %1 {offsets = [0, 256], sizes = [4, 256], strides = [1, 1]} : vector<4x512xf32> to vector<4x256xf32>
    %122 = vector.broadcast %117 : vector<1x256xf32> to vector<4x256xf32>
    %123 = arith.mulf %122, %121 : vector<4x256xf32>
    %124 = arith.addf %120, %123 : vector<4x256xf32>
    %c0_69 = arith.constant 0 : index
    %c0_70 = arith.constant 0 : index
    %c0_71 = arith.constant 0 : index
    %125 = vector.load %arg9[%c0_69, %c0_70, %c0_71] : memref<1x4x256xf32, #tpu.memory_space<vmem>>, vector<1x4x256xf32>
    %126 = vector.shape_cast %125 : vector<1x4x256xf32> to vector<4x256xf32>
    %127 = vector.shape_cast %124 : vector<4x256xf32> to vector<1x4x256xf32>
    tpu.vector_store %arg9[%c0_69, %c0_70, %c0_71], %127 {strides = array<i32>} : memref<1x4x256xf32, #tpu.memory_space<vmem>>, vector<1x4x256xf32>,
    return
  }
  func.func @transform_0(%arg0: i32) -> (i32, i32, i32) {
    %c0_i32 = arith.constant 0 : i32
    %c0_i32_0 = arith.constant 0 : i32
    %c0_i32_1 = arith.constant 0 : i32
    return %arg0, %c0_i32, %c0_i32_0 : i32, i32, i32
  }
  func.func @transform_1(%arg0: i32) -> (i32, i32) {
    %c0_i32 = arith.constant 0 : i32
    %c0_i32_0 = arith.constant 0 : i32
    %c0_i32_1 = arith.constant 0 : i32
    return %c0_i32, %c0_i32_0 : i32, i32
  }
  func.func @transform_2(%arg0: i32) -> (i32, i32) {
    %c0_i32 = arith.constant 0 : i32
    %c0_i32_0 = arith.constant 0 : i32
    %c0_i32_1 = arith.constant 0 : i32
    return %c0_i32, %c0_i32_0 : i32, i32
  }
  func.func @transform_3(%arg0: i32) -> (i32, i32) {
    %c0_i32 = arith.constant 0 : i32
    %c0_i32_0 = arith.constant 0 : i32
    %c0_i32_1 = arith.constant 0 : i32
    return %c0_i32, %c0_i32_0 : i32, i32
  }
  func.func @transform_4(%arg0: i32) -> (i32, i32) {
    %c0_i32 = arith.constant 0 : i32
    %c0_i32_0 = arith.constant 0 : i32
    %c0_i32_1 = arith.constant 0 : i32
    return %c0_i32, %c0_i32_0 : i32, i32
  }
  func.func @transform_5(%arg0: i32) -> (i32, i32) {
    %c0_i32 = arith.constant 0 : i32
    %c0_i32_0 = arith.constant 0 : i32
    %c0_i32_1 = arith.constant 0 : i32
    return %c0_i32, %c0_i32_0 : i32, i32
  }
  func.func @transform_6(%arg0: i32) -> (i32, i32) {
    %c0_i32 = arith.constant 0 : i32
    %c0_i32_0 = arith.constant 0 : i32
    %c0_i32_1 = arith.constant 0 : i32
    return %c0_i32, %c0_i32_0 : i32, i32
  }
  func.func @transform_7(%arg0: i32) -> (i32, i32) {
    %c0_i32 = arith.constant 0 : i32
    %c0_i32_0 = arith.constant 0 : i32
    %c0_i32_1 = arith.constant 0 : i32
    return %c0_i32, %c0_i32_0 : i32, i32
  }
  func.func @transform_8(%arg0: i32) -> (i32, i32, i32) {
    %c0_i32 = arith.constant 0 : i32
    %c0_i32_0 = arith.constant 0 : i32
    %c0_i32_1 = arith.constant 0 : i32
    return %arg0, %c0_i32, %c0_i32_0 : i32, i32, i32
  }
}

</mosaic_0001>

<llo_original>
// kernel: tpu_custom_call.1
$region0: #{tpu_custom_call.1}
  #allocation0 [shape = 'u32[]', space=smem, size = 0x4, offset = 0x4, fixed_abs, tag = 'smem constant byte address 0x4 - core index']
  #allocation1 [shape = 'u32[144,128]{1,0:T(1,128)}', space=vmem, size = 0x12000, scoped, tag = 'internal scratch']
  #allocation2 [shape = 'f32[64,768]{1,0:T(8,128)}', space=vmem, size = 0x30000, scoped, tag = 'scratch operand']
  #allocation3 [shape = 'f32[576,512]{1,0:T(8,128)}', space=vmem, size = 0x120000, scoped, tag = 'scratch operand']
  #allocation4 [shape = 'f32[1,1]{1,0:T(1,128)S(1)}', space=vmem, size = 0x200, scoped, tag = 'scoped memory for tpu_custom_call.1']
  %s0 = inlined_call_operand.vmem [shape: f32[2,4,512], index: 0, kind: input, shape index: {}]
  %s1 = inlined_call_operand.hbm [shape: f32[9,512], index: 1, kind: input, shape index: {}]
  %s2 = inlined_call_operand.vmem [shape: f32[64,4], index: 2, kind: input, shape index: {}]
  %s3 = inlined_call_operand.vmem [shape: f32[64,1], index: 3, kind: input, shape index: {}]
  %s4 = inlined_call_operand.vmem [shape: f32[32,576], index: 4, kind: input, shape index: {}]
  %s5 = inlined_call_operand.vmem [shape: f32[32,1], index: 5, kind: input, shape index: {}]
  %s6 = inlined_call_operand.vmem [shape: f32[32,1], index: 6, kind: input, shape index: {}]
  %s7 = inlined_call_operand.<no memory space> [shape: f32[1,1], index: 7, kind: input, shape index: {}]
  %s8 = inlined_call_operand.hbm [shape: f32[2,4,256], index: 8, kind: output, shape index: {}]
  %s9 = sld [smem:[#allocation0]]
  $region69: #{tpu_custom_call.1} parent=0
    _
  %s11 = ssub.s32 1, %s9
  %s12 = scalar_select 0, %s11, %s9
  %v13 = vstv %s7
  %14 = vst [vmem:[#allocation4] sm:$0x1] %v13
  $region1: #{tpu_custom_call.1} parent=0
    #allocation5 [shape = 'u8[32768]{0}', space=vmem, size = 0x8000, scoped, tag = 'input window, operand 1, single buffered']
    #allocation6 [shape = 's32[2]{0}', space=sflag, size = 0x8, scoped, tag = 'scoped memory for tpu_custom_call.1']
    #allocation7 [shape = 's32[2]{0}', space=sflag, size = 0x8, scoped, tag = 'scoped memory for tpu_custom_call.1']
    #allocation8 [shape = 'u8[8192]{0}', space=vmem, size = 0x2000, scoped, tag = 'output window, operand 0']
    %15 = vsyncpa [#allocation6], 0
    %16 = vsyncpa [#allocation7], 0
    %s17 = scalar_lea.sflag [#allocation7], 1
    %18 = vsyncpa %s17, 0
    loop: start=0, step=1, limit=4
    $region2: #{tpu_custom_call.1} parent=1 // loop_pre_header
      _
    $region3: #{tpu_custom_call.1} parent=1 // loop_header
      %s20 = sphi 0, %s24
      %p21 = scmp.ge.s32.totalorder %s20, 4
      %s30 = sphi 0, %s32
      %s33 = sphi 0, %s30
      %s34 = sphi 0, %s33
      %s50 = sphi 0, %s34
      %s54 = sphi 0, %s54
      %s56 = sphi 0, %s54
      %s57 = sphi 0, %s56
      %s71 = sphi 0, %s57
      %s75 = sphi 0, %s75
      %s77 = sphi 0, %s75
      %s78 = sphi 0, %s77
      %s92 = sphi 0, %s78
      %s96 = sphi 0, %s96
      %s98 = sphi 0, %s96
      %s99 = sphi 0, %s98
      %s113 = sphi 0, %s99
      %s117 = sphi 0, %s117
      %s119 = sphi 0, %s117
      %s120 = sphi 0, %s119
      %s134 = sphi 0, %s120
      %s138 = sphi 0, %s138
      %s140 = sphi 0, %s138
      %s141 = sphi 0, %s140
      %s155 = sphi 0, %s141
      %s159 = sphi 0, %s159
      %s161 = sphi 0, %s159
      %s162 = sphi 0, %s161
      %s176 = sphi 0, %s162
      %s180 = sphi 0, %s180
      %s182 = sphi 0, %s180
      %s183 = sphi 0, %s182
      %s197 = sphi 0, %s183
      %s203 = sphi 0, %s205
      %s206 = sphi 0, %s203
      %s207 = sphi 0, %s206
      %s223 = sphi 0, %s207
    $region4: #{tpu_custom_call.1} parent=1 // loop_header_branch
      %23 = sbr.rel (%p21) target = $region8
    $region5: #{tpu_custom_call.1} parent=1 // loop_body
      %s25 = ssub.s32 %s20, 1
      %s26 = ssub.s32 %s20, 2
      %s27 = sadd.s32 %s20, 1
      %s28 = ssub.s32 %s20, %s27
      %p29 = scmp.eq.s32.totalorder %s28, 0
      %s31 = sadd.s32 %s30, 1
      %s32 = scalar_select %p29, %s30, %s31
      %p35 = pneg %p29
      %p36 = scmp.eq.s32.totalorder %s20, 1
      %p37 = por %p35, %p36
      %p38 = scmp.ne.s32.totalorder %s30, %s33
      %p39 = scmp.eq.s32.totalorder %s20, 0
      %p40 = por %p38, %p39
      %p41 = scmp.ne.s32.totalorder %s30, %s33
      %p42 = scmp.eq.s32.totalorder %s25, 1
      %p43 = por %p41, %p42
      %p44 = scmp.ne.s32.totalorder %s33, %s34
      %p45 = scmp.eq.s32.totalorder %s25, 0
      %p46 = por %p44, %p45
      %p47 = scmp.ne.s32.totalorder %s33, %s34
      %p48 = scmp.eq.s32.totalorder %s26, 1
      %p49 = por %p47, %p48
      %p51 = scmp.ne.s32.totalorder %s34, %s50
      %p52 = scmp.eq.s32.totalorder %s26, 0
      %p53 = por %p51, %p52
      %s55 = sadd.s32 %s54, 1
      %p58 = scmp.eq.s32.totalorder %s20, 1
      %p59 = scmp.ne.s32.totalorder %s54, %s56
      %p60 = scmp.eq.s32.totalorder %s20, 0
      %p61 = por %p59, %p60
      %p62 = scmp.ne.s32.totalorder %s54, %s56
      %p63 = scmp.eq.s32.totalorder %s25, 1
      %p64 = por %p62, %p63
      %p65 = scmp.ne.s32.totalorder %s56, %s57
      %p66 = scmp.eq.s32.totalorder %s25, 0
      %p67 = por %p65, %p66
      %p68 = scmp.ne.s32.totalorder %s56, %s57
      %p69 = scmp.eq.s32.totalorder %s26, 1
      %p70 = por %p68, %p69
      %p72 = scmp.ne.s32.totalorder %s57, %s71
      %p73 = scmp.eq.s32.totalorder %s26, 0
      %p74 = por %p72, %p73
      %s76 = sadd.s32 %s75, 1
      %p79 = scmp.eq.s32.totalorder %s20, 1
      %p80 = scmp.ne.s32.totalorder %s75, %s77
      %p81 = scmp.eq.s32.totalorder %s20, 0
      %p82 = por %p80, %p81
      %p83 = scmp.ne.s32.totalorder %s75, %s77
      %p84 = scmp.eq.s32.totalorder %s25, 1
      %p85 = por %p83, %p84
      %p86 = scmp.ne.s32.totalorder %s77, %s78
      %p87 = scmp.eq.s32.totalorder %s25, 0
      %p88 = por %p86, %p87
      %p89 = scmp.ne.s32.totalorder %s77, %s78
      %p90 = scmp.eq.s32.totalorder %s26, 1
      %p91 = por %p89, %p90
      %p93 = scmp.ne.s32.totalorder %s78, %s92
      %p94 = scmp.eq.s32.totalorder %s26, 0
      %p95 = por %p93, %p94
      %s97 = sadd.s32 %s96, 1
      %p100 = scmp.eq.s32.totalorder %s20, 1
      %p101 = scmp.ne.s32.totalorder %s96, %s98
      %p102 = scmp.eq.s32.totalorder %s20, 0
      %p103 = por %p101, %p102
      %p104 = scmp.ne.s32.totalorder %s96, %s98
      %p105 = scmp.eq.s32.totalorder %s25, 1
      %p106 = por %p104, %p105
      %p107 = scmp.ne.s32.totalorder %s98, %s99
      %p108 = scmp.eq.s32.totalorder %s25, 0
      %p109 = por %p107, %p108
      %p110 = scmp.ne.s32.totalorder %s98, %s99
      %p111 = scmp.eq.s32.totalorder %s26, 1
      %p112 = por %p110, %p111
      %p114 = scmp.ne.s32.totalorder %s99, %s113
      %p115 = scmp.eq.s32.totalorder %s26, 0
      %p116 = por %p114, %p115
      %s118 = sadd.s32 %s117, 1
      %p121 = scmp.eq.s32.totalorder %s20, 1
      %p122 = scmp.ne.s32.totalorder %s117, %s119
      %p123 = scmp.eq.s32.totalorder %s20, 0
      %p124 = por %p122, %p123
      %p125 = scmp.ne.s32.totalorder %s117, %s119
      %p126 = scmp.eq.s32.totalorder %s25, 1
      %p127 = por %p125, %p126
      %p128 = scmp.ne.s32.totalorder %s119, %s120
      %p129 = scmp.eq.s32.totalorder %s25, 0
      %p130 = por %p128, %p129
      %p131 = scmp.ne.s32.totalorder %s119, %s120
      %p132 = scmp.eq.s32.totalorder %s26, 1
      %p133 = por %p131, %p132
      %p135 = scmp.ne.s32.totalorder %s120, %s134
      %p136 = scmp.eq.s32.totalorder %s26, 0
      %p137 = por %p135, %p136
      %s139 = sadd.s32 %s138, 1
      %p142 = scmp.eq.s32.totalorder %s20, 1
      %p143 = scmp.ne.s32.totalorder %s138, %s140
      %p144 = scmp.eq.s32.totalorder %s20, 0
      %p145 = por %p143, %p144
      %p146 = scmp.ne.s32.totalorder %s138, %s140
      %p147 = scmp.eq.s32.totalorder %s25, 1
      %p148 = por %p146, %p147
      %p149 = scmp.ne.s32.totalorder %s140, %s141
      %p150 = scmp.eq.s32.totalorder %s25, 0
      %p151 = por %p149, %p150
      %p152 = scmp.ne.s32.totalorder %s140, %s141
      %p153 = scmp.eq.s32.totalorder %s26, 1
      %p154 = por %p152, %p153
      %p156 = scmp.ne.s32.totalorder %s141, %s155
      %p157 = scmp.eq.s32.totalorder %s26, 0
      %p158 = por %p156, %p157
      %s160 = sadd.s32 %s159, 1
      %p163 = scmp.eq.s32.totalorder %s20, 1
      %p164 = scmp.ne.s32.totalorder %s159, %s161
      %p165 = scmp.eq.s32.totalorder %s20, 0
      %p166 = por %p164, %p165
      %p167 = scmp.ne.s32.totalorder %s159, %s161
      %p168 = scmp.eq.s32.totalorder %s25, 1
      %p169 = por %p167, %p168
      %p170 = scmp.ne.s32.totalorder %s161, %s162
      %p171 = scmp.eq.s32.totalorder %s25, 0
      %p172 = por %p170, %p171
      %p173 = scmp.ne.s32.totalorder %s161, %s162
      %p174 = scmp.eq.s32.totalorder %s26, 1
      %p175 = por %p173, %p174
      %p177 = scmp.ne.s32.totalorder %s162, %s176
      %p178 = scmp.eq.s32.totalorder %s26, 0
      %p179 = por %p177, %p178
      %s181 = sadd.s32 %s180, 1
      %p184 = scmp.eq.s32.totalorder %s20, 1
      %p185 = scmp.ne.s32.totalorder %s180, %s182
      %p186 = scmp.eq.s32.totalorder %s20, 0
      %p187 = por %p185, %p186
      %p188 = scmp.ne.s32.totalorder %s180, %s182
      %p189 = scmp.eq.s32.totalorder %s25, 1
      %p190 = por %p188, %p189
      %p191 = scmp.ne.s32.totalorder %s182, %s183
      %p192 = scmp.eq.s32.totalorder %s25, 0
      %p193 = por %p191, %p192
      %p194 = scmp.ne.s32.totalorder %s182, %s183
      %p195 = scmp.eq.s32.totalorder %s26, 1
      %p196 = por %p194, %p195
      %p198 = scmp.ne.s32.totalorder %s183, %s197
      %p199 = scmp.eq.s32.totalorder %s26, 0
      %p200 = por %p198, %p199
      %s201 = ssub.s32 %s20, %s27
      %p202 = scmp.eq.s32.totalorder %s201, 0
      %s204 = sadd.s32 %s203, 1
      %s205 = scalar_select %p202, %s203, %s204
      %p208 = pneg %p202
      %p209 = scmp.eq.s32.totalorder %s20, 1
      %p210 = por %p208, %p209
      %p211 = scmp.ne.s32.totalorder %s203, %s206
      %p212 = scmp.eq.s32.totalorder %s20, 0
      %p213 = por %p211, %p212
      %p214 = scmp.ne.s32.totalorder %s203, %s206
      %p215 = scmp.eq.s32.totalorder %s25, 1
      %p216 = por %p214, %p215
      %p217 = scmp.ne.s32.totalorder %s206, %s207
      %p218 = scmp.eq.s32.totalorder %s25, 0
      %p219 = por %p217, %p218
      %p220 = scmp.ne.s32.totalorder %s206, %s207
      %p221 = scmp.eq.s32.totalorder %s26, 1
      %p222 = por %p220, %p221
      %p224 = scmp.ne.s32.totalorder %s207, %s223
      %p225 = scmp.eq.s32.totalorder %s26, 0
      %p226 = por %p224, %p225
      %p227 = scmp.le.s32.totalorder 1, %s20
      %p228 = scmp.lt.s32.totalorder %s20, 3
      %p229 = pnand %p227, %p228
      %p230 = pneg %p229
      // Predicated region
      $region9: #{tpu_custom_call.1} parent=5 // pred_check
        _
      $region10: #{tpu_custom_call.1} parent=5 // pred_check_branch
        %232 = sbr.rel (%p229) target = $region12
      $region11: #{tpu_custom_call.1} parent=5 // pred_region
        %s233 = ssub.s32 %s20, 1
        // Predicated region
        $region13: #{tpu_custom_call.1} parent=11 // pred_check
          %p234 = pneg %p67
        $region14: #{tpu_custom_call.1} parent=11 // pred_check_branch
          %236 = sbr.rel (%p234) target = $region16
        $region15: #{tpu_custom_call.1} parent=11 // pred_region
          %s238 = ssub.s32 1024, 1024
          %239 = vsyncadd [#allocation6], %s238
          %s240 = sshll.u32 [#allocation5], 4
          %s241 = int_to_ptr.vmem [resolvable:$true] %s240
          %246 = dma.hbm_to_vmem [thread:$0]  %s1, 1024, %s241, [#allocation6], 512, 512, 32
        $region16: #{tpu_custom_call.1} parent=11 // pred_fallthru
          _
        // Predicated region
        $region17: #{tpu_custom_call.1} parent=11 // pred_check
          %p247 = pneg %p88
        $region18: #{tpu_custom_call.1} parent=11 // pred_check_branch
          %249 = sbr.rel (%p247) target = $region20
        $region19: #{tpu_custom_call.1} parent=11 // pred_region
          _
        $region20: #{tpu_custom_call.1} parent=11 // pred_fallthru
          _
        // Predicated region
        $region21: #{tpu_custom_call.1} parent=11 // pred_check
          %p250 = pneg %p109
        $region22: #{tpu_custom_call.1} parent=11 // pred_check_branch
          %252 = sbr.rel (%p250) target = $region24
        $region23: #{tpu_custom_call.1} parent=11 // pred_region
          _
        $region24: #{tpu_custom_call.1} parent=11 // pred_fallthru
          _
        // Predicated region
        $region25: #{tpu_custom_call.1} parent=11 // pred_check
          %p253 = pneg %p130
        $region26: #{tpu_custom_call.1} parent=11 // pred_check_branch
          %255 = sbr.rel (%p253) target = $region28
        $region27: #{tpu_custom_call.1} parent=11 // pred_region
          _
        $region28: #{tpu_custom_call.1} parent=11 // pred_fallthru
          _
        // Predicated region
        $region29: #{tpu_custom_call.1} parent=11 // pred_check
          %p256 = pneg %p151
        $region30: #{tpu_custom_call.1} parent=11 // pred_check_branch
          %258 = sbr.rel (%p256) target = $region32
        $region31: #{tpu_custom_call.1} parent=11 // pred_region
          _
        $region32: #{tpu_custom_call.1} parent=11 // pred_fallthru
          _
        // Predicated region
        $region33: #{tpu_custom_call.1} parent=11 // pred_check
          %p259 = pneg %p172
        $region34: #{tpu_custom_call.1} parent=11 // pred_check_branch
          %261 = sbr.rel (%p259) target = $region36
        $region35: #{tpu_custom_call.1} parent=11 // pred_region
          _
        $region36: #{tpu_custom_call.1} parent=11 // pred_fallthru
          _
        // Predicated region
        $region37: #{tpu_custom_call.1} parent=11 // pred_check
          %p262 = pneg %p193
        $region38: #{tpu_custom_call.1} parent=11 // pred_check_branch
          %264 = sbr.rel (%p262) target = $region40
        $region39: #{tpu_custom_call.1} parent=11 // pred_region
          _
        $region40: #{tpu_custom_call.1} parent=11 // pred_fallthru
          _
      $region12: #{tpu_custom_call.1} parent=5 // pred_fallthru
        _
      %p265 = scmp.lt.s32.totalorder %s20, 2
      // Predicated region
      $region41: #{tpu_custom_call.1} parent=5 // pred_check
        %p266 = pneg %p265
      $region42: #{tpu_custom_call.1} parent=5 // pred_check_branch
        %268 = sbr.rel (%p266) target = $region44
      $region43: #{tpu_custom_call.1} parent=5 // pred_region
        // Predicated region
        $region45: #{tpu_custom_call.1} parent=43 // pred_check
          %p269 = pneg %p40
        $region46: #{tpu_custom_call.1} parent=43 // pred_check_branch
          %271 = sbr.rel (%p269) target = $region48
        $region47: #{tpu_custom_call.1} parent=43 // pred_region
          %p272 = scmp.lt.s32.totalorder %s20, 1
          %s273 = scalar_select %p272, %s20, 1
          %s274 = smul.addr %s273, 4
          %s275 = smul.addr %s274, 4
          %s276 = scalar_lea.vmem %s0, %s275
        $region48: #{tpu_custom_call.1} parent=43 // pred_fallthru
          _
      $region44: #{tpu_custom_call.1} parent=5 // pred_fallthru
        _
      %p277 = scmp.le.s32.totalorder 1, %s20
      %p278 = scmp.lt.s32.totalorder %s20, 3
      %p279 = pnand %p277, %p278
      %p280 = pneg %p279
      // Predicated region
      $region49: #{tpu_custom_call.1} parent=5 // pred_check
        _
      $region50: #{tpu_custom_call.1} parent=5 // pred_check_branch
        %282 = sbr.rel (%p279) target = $region52
      $region51: #{tpu_custom_call.1} parent=5 // pred_region
        %s283 = ssub.s32 %s20, 1
        // Predicated region
        $region53: #{tpu_custom_call.1} parent=51 // pred_check
          %p284 = pneg %p67
        $region54: #{tpu_custom_call.1} parent=51 // pred_check_branch
          %286 = sbr.rel (%p284) target = $region56
        $region55: #{tpu_custom_call.1} parent=51 // pred_region
          %287 = dma.done [#allocation6], 1024
        $region56: #{tpu_custom_call.1} parent=51 // pred_fallthru
          _
        %p288 = scmp.lt.s32.totalorder %s25, 1
        %s289 = scalar_select %p288, %s25, 1
        %s290 = smul.addr %s289, 4
        %s291 = smul.addr %s290, 4
        %s292 = scalar_lea.vmem %s0, %s291
        %p293 = pneg %p46
        %p294 = pneg %p43
        %p295 = pneg %p67
        %p296 = pneg %p64
        %p297 = pneg %p88
        %p298 = pneg %p85
        %p299 = pneg %p109
        %p300 = pneg %p106
        %p301 = pneg %p130
        %p302 = pneg %p127
        %p303 = pneg %p151
        %p304 = pneg %p148
        %p305 = pneg %p172
        %p306 = pneg %p169
        %p307 = pneg %p193
        %p308 = pneg %p190
        %p309 = pneg %p219
        %p310 = pneg %p216
        %s311 = sand.u32 %s206, 1
        %s312 = scalar_lea.sflag [#allocation7], %s311
        %s313 = sand.u32 %s206, 1
        %s314 = smul.addr %s313, 8
        %s315 = scalar_lea.vmem [#allocation8], %s314
        %p316 = scmp.lt.s32.totalorder %s25, 1
        %s317 = scalar_select %p316, %s25, 1
        %s318 = smul.addr %s317, 4
        %s319 = smul.addr %s318, 4
        %s320 = scalar_lea.vmem %s0, %s319
        %v321 = vld [vmem:[%s320] sm:$0xff]
        %v322 = vld [vmem:[%s320 + $0x8] sm:$0xff]
        %v323 = vld [vmem:[%s2] sm:$0xff]
        %v324 = vld [vmem:[%s2 + $0x8] sm:$0xff]
        %v325 = vld [vmem:[%s2 + $0x10] sm:$0xff]
        %v326 = vld [vmem:[%s2 + $0x18] sm:$0xff]
        %v327 = vld [vmem:[%s2 + $0x20] sm:$0xff]
        %v328 = vld [vmem:[%s2 + $0x28] sm:$0xff]
        %v329 = vld [vmem:[%s2 + $0x30] sm:$0xff]
        %v330 = vld [vmem:[%s2 + $0x38] sm:$0xff]
        %v331 = vld [vmem:[%s3] sm:$0xff]
        %v332 = vld [vmem:[%s3 + $0x8] sm:$0xff]
        %v333 = vld [vmem:[%s3 + $0x10] sm:$0xff]
        %v334 = vld [vmem:[%s3 + $0x18] sm:$0xff]
        %v335 = vld [vmem:[%s3 + $0x20] sm:$0xff]
        %v336 = vld [vmem:[%s3 + $0x28] sm:$0xff]
        %v337 = vld [vmem:[%s3 + $0x30] sm:$0xff]
        %v338 = vld [vmem:[%s3 + $0x38] sm:$0xff]
        %340 = vset.pattern.permute.xlu0 0
        %341 = vperm.xlu0 %340, %v331
        %v342 = vpop.permute.xlu0 %341
        %345 = vset.pattern.permute.xlu0 0
        %346 = vperm.xlu0 %345, %v332
        %v347 = vpop.permute.xlu0 %346
        %350 = vset.pattern.permute.xlu0 0
        %351 = vperm.xlu0 %350, %v333
        %v352 = vpop.permute.xlu0 %351
        %355 = vset.pattern.permute.xlu0 0
        %356 = vperm.xlu0 %355, %v334
        %v357 = vpop.permute.xlu0 %356
        %360 = vset.pattern.permute.xlu0 0
        %361 = vperm.xlu0 %360, %v335
        %v362 = vpop.permute.xlu0 %361
        %365 = vset.pattern.permute.xlu0 0
        %366 = vperm.xlu0 %365, %v336
        %v367 = vpop.permute.xlu0 %366
        %370 = vset.pattern.permute.xlu0 0
        %371 = vperm.xlu0 %370, %v337
        %v372 = vpop.permute.xlu0 %371
        %375 = vset.pattern.permute.xlu0 0
        %376 = vperm.xlu0 %375, %v338
        %v377 = vpop.permute.xlu0 %376
        %v381 = vcombine.high %v321, %v321
        %v382 = vcombine.high %v322, %v322
        %vm383 = vcmask 31744
        %v385 = vsel %vm383, %v323, 0
        %v388 = vsel %vm383, %v324, 0
        %v391 = vsel %vm383, %v325, 0
        %v394 = vsel %vm383, %v326, 0
        %v397 = vsel %vm383, %v327, 0
        %v400 = vsel %vm383, %v328, 0
        %v403 = vsel %vm383, %v329, 0
        %v406 = vsel %vm383, %v330, 0
        %vm408 = vcmask 1043456
        %v409 = vsel %vm408, %v321, 0
        %v411 = vsel %vm408, %v381, 0
        %v413 = vsel %vm408, %v322, 0
        %v415 = vsel %vm408, %v382, 0
        %417 = vmatprep.subr.mxu0 0.0
        %418 = vmatpush1.msra.mxu0 0.0
        %419 = vmatprep.subr.mxu0 0.0
        %420 = vmatpush1.msra.mxu0 0.0
        %421 = vmatprep.subr.mxu0 0.0
        %422 = vmatpush1.msra.mxu0 0.0
        %423 = vmatprep.subr.mxu0 0.0
        %424 = vmatpush1.msra.mxu0 0.0
        %425 = vmatprep.subr.mxu0 0.0
        %426 = vmatpush1.msra.mxu0 0.0
        %427 = vmatprep.subr.mxu0 0.0
        %428 = vmatpush1.msra.mxu0 0.0
        %429 = vmatprep.subr.mxu0 0.0
        %430 = vmatpush1.msra.mxu0 0.0
        %431 = vmatprep.subr.mxu0 0.0
        %432 = vmatpush1.msra.mxu0 0.0
        %433 = vmatprep.subr.mxu0 0.0
        %434 = vmatpush1.msra.mxu0 0.0
        %435 = vmatprep.subr.mxu0 0.0
        %436 = vmatpush1.msra.mxu0 0.0
        %437 = vmatprep.subr.mxu0 0.0
        %438 = vmatpush1.msra.mxu0 0.0
        %439 = vmatprep.subr.mxu0 0.0
        %440 = vmatpush1.msra.mxu0 0.0
        %441 = vmatprep.subr.mxu0 0.0
        %442 = vmatpush1.msra.mxu0 0.0
        %443 = vmatprep.subr.mxu0 0.0
        %444 = vmatpush1.msra.mxu0 0.0
        %445 = vmatprep.subr.mxu0 0.0
        %446 = vmatpush1.msra.mxu0 0.0
        %447 = vmatprep.subr.mxu0 %v411
        %448 = vmatpush1.msra.mxu0 %v409
        %449 = vmatprep.subr.mxu0 0.0
        %450 = vmatpush2.msra.mxu0 0.0
        %451 = vmatprep.subr.mxu0 0.0
        %452 = vmatpush2.msra.mxu0 0.0
        %453 = vmatprep.subr.mxu0 0.0
        %454 = vmatpush2.msra.mxu0 0.0
        %455 = vmatprep.subr.mxu0 0.0
        %456 = vmatpush2.msra.mxu0 0.0
        %457 = vmatprep.subr.mxu0 0.0
        %458 = vmatpush2.msra.mxu0 0.0
        %459 = vmatprep.subr.mxu0 0.0
        %460 = vmatpush2.msra.mxu0 0.0
        %461 = vmatprep.subr.mxu0 0.0
        %462 = vmatpush2.msra.mxu0 0.0
        %463 = vmatprep.subr.mxu0 0.0
        %464 = vmatpush2.msra.mxu0 0.0
        %465 = vmatprep.subr.mxu0 0.0
        %466 = vmatpush2.msra.mxu0 0.0
        %467 = vmatprep.subr.mxu0 0.0
        %468 = vmatpush2.msra.mxu0 0.0
        %469 = vmatprep.subr.mxu0 0.0
        %470 = vmatpush2.msra.mxu0 0.0
        %471 = vmatprep.subr.mxu0 0.0
        %472 = vmatpush2.msra.mxu0 0.0
        %473 = vmatprep.subr.mxu0 0.0
        %474 = vmatpush2.msra.mxu0 0.0
        %475 = vmatprep.subr.mxu0 0.0
        %476 = vmatpush2.msra.mxu0 0.0
        %477 = vmatprep.subr.mxu0 0.0
        %478 = vmatpush2.msra.mxu0 0.0
        %479 = vmatprep.subr.mxu0 0.0
        %480 = vmatpush2.msra.mxu0 0.0
        %481 = vmatprep.mubr.f32.mxu0 0.0
        %482 = vmatmul.mubr.f32.gmra.mxu0 %v385
        %v483 = vpop.f32.mrf.mxu0
        %v484 = vadd.f32 %v342, %v483
        %v485 = vpop.f32.mrf.mxu0
        %v486 = vadd.f32 %v342, %v485
        %487 = vmatprep.mubr.f32.mxu0 0.0
        %488 = vmatmul.mubr.f32.gmra.mxu0 %v388
        %v489 = vpop.f32.mrf.mxu0
        %v490 = vadd.f32 %v347, %v489
        %v491 = vpop.f32.mrf.mxu0
        %v492 = vadd.f32 %v347, %v491
        %493 = vmatprep.mubr.f32.mxu0 0.0
        %494 = vmatmul.mubr.f32.gmra.mxu0 %v391
        %v495 = vpop.f32.mrf.mxu0
        %v496 = vadd.f32 %v352, %v495
        %v497 = vpop.f32.mrf.mxu0
        %v498 = vadd.f32 %v352, %v497
        %499 = vmatprep.mubr.f32.mxu0 0.0
        %500 = vmatmul.mubr.f32.gmra.mxu0 %v394
        %v501 = vpop.f32.mrf.mxu0
        %v502 = vadd.f32 %v357, %v501
        %v503 = vpop.f32.mrf.mxu0
        %v504 = vadd.f32 %v357, %v503
        %505 = vmatprep.mubr.f32.mxu0 0.0
        %506 = vmatmul.mubr.f32.gmra.mxu0 %v397
        %v507 = vpop.f32.mrf.mxu0
        %v508 = vadd.f32 %v362, %v507
        %v509 = vpop.f32.mrf.mxu0
        %v510 = vadd.f32 %v362, %v509
        %511 = vmatprep.mubr.f32.mxu0 0.0
        %512 = vmatmul.mubr.f32.gmra.mxu0 %v400
        %v513 = vpop.f32.mrf.mxu0
        %v514 = vadd.f32 %v367, %v513
        %v515 = vpop.f32.mrf.mxu0
        %v516 = vadd.f32 %v367, %v515
        %517 = vmatprep.mubr.f32.mxu0 0.0
        %518 = vmatmul.mubr.f32.gmra.mxu0 %v403
        %v519 = vpop.f32.mrf.mxu0
        %v520 = vadd.f32 %v372, %v519
        %v521 = vpop.f32.mrf.mxu0
        %v522 = vadd.f32 %v372, %v521
        %523 = vmatprep.mubr.f32.mxu0 0.0
        %524 = vmatmul.mubr.f32.gmra.mxu0 %v406
        %v525 = vpop.f32.mrf.mxu0
        %v526 = vadd.f32 %v377, %v525
        %v527 = vpop.f32.mrf.mxu0
        %v528 = vadd.f32 %v377, %v527
        %529 = vdwg.mxu0
        %530 = vmatprep.subr.mxu0 0.0
        %531 = vmatpush1.msra.mxu0 0.0
        %532 = vmatprep.subr.mxu0 0.0
        %533 = vmatpush1.msra.mxu0 0.0
        %534 = vmatprep.subr.mxu0 0.0
        %535 = vmatpush1.msra.mxu0 0.0
        %536 = vmatprep.subr.mxu0 0.0
        %537 = vmatpush1.msra.mxu0 0.0
        %538 = vmatprep.subr.mxu0 0.0
        %539 = vmatpush1.msra.mxu0 0.0
        %540 = vmatprep.subr.mxu0 0.0
        %541 = vmatpush1.msra.mxu0 0.0
        %542 = vmatprep.subr.mxu0 0.0
        %543 = vmatpush1.msra.mxu0 0.0
        %544 = vmatprep.subr.mxu0 0.0
        %545 = vmatpush1.msra.mxu0 0.0
        %546 = vmatprep.subr.mxu0 0.0
        %547 = vmatpush1.msra.mxu0 0.0
        %548 = vmatprep.subr.mxu0 0.0
        %549 = vmatpush1.msra.mxu0 0.0
        %550 = vmatprep.subr.mxu0 0.0
        %551 = vmatpush1.msra.mxu0 0.0
        %552 = vmatprep.subr.mxu0 0.0
        %553 = vmatpush1.msra.mxu0 0.0
        %554 = vmatprep.subr.mxu0 0.0
        %555 = vmatpush1.msra.mxu0 0.0
        %556 = vmatprep.subr.mxu0 0.0
        %557 = vmatpush1.msra.mxu0 0.0
        %558 = vmatprep.subr.mxu0 0.0
        %559 = vmatpush1.msra.mxu0 0.0
        %560 = vmatprep.subr.mxu0 %v415
        %561 = vmatpush1.msra.mxu0 %v413
        %562 = vmatprep.subr.mxu0 0.0
        %563 = vmatpush2.msra.mxu0 0.0
        %564 = vmatprep.subr.mxu0 0.0
        %565 = vmatpush2.msra.mxu0 0.0
        %566 = vmatprep.subr.mxu0 0.0
        %567 = vmatpush2.msra.mxu0 0.0
        %568 = vmatprep.subr.mxu0 0.0
        %569 = vmatpush2.msra.mxu0 0.0
        %570 = vmatprep.subr.mxu0 0.0
        %571 = vmatpush2.msra.mxu0 0.0
        %572 = vmatprep.subr.mxu0 0.0
        %573 = vmatpush2.msra.mxu0 0.0
        %574 = vmatprep.subr.mxu0 0.0
        %575 = vmatpush2.msra.mxu0 0.0
        %576 = vmatprep.subr.mxu0 0.0
        %577 = vmatpush2.msra.mxu0 0.0
        %578 = vmatprep.subr.mxu0 0.0
        %579 = vmatpush2.msra.mxu0 0.0
        %580 = vmatprep.subr.mxu0 0.0
        %581 = vmatpush2.msra.mxu0 0.0
        %582 = vmatprep.subr.mxu0 0.0
        %583 = vmatpush2.msra.mxu0 0.0
        %584 = vmatprep.subr.mxu0 0.0
        %585 = vmatpush2.msra.mxu0 0.0
        %586 = vmatprep.subr.mxu0 0.0
        %587 = vmatpush2.msra.mxu0 0.0
        %588 = vmatprep.subr.mxu0 0.0
        %589 = vmatpush2.msra.mxu0 0.0
        %590 = vmatprep.subr.mxu0 0.0
        %591 = vmatpush2.msra.mxu0 0.0
        %592 = vmatprep.subr.mxu0 0.0
        %593 = vmatpush2.msra.mxu0 0.0
        %594 = vmatprep.mubr.f32.mxu0 0.0
        %595 = vmatmul.mubr.f32.gmra.mxu0 %v385
        %v596 = vpop.f32.mrf.mxu0
        %v597 = vadd.f32 %v342, %v596
        %v598 = vpop.f32.mrf.mxu0
        %v599 = vadd.f32 %v342, %v598
        %600 = vmatprep.mubr.f32.mxu0 0.0
        %601 = vmatmul.mubr.f32.gmra.mxu0 %v388
        %v602 = vpop.f32.mrf.mxu0
        %v603 = vadd.f32 %v347, %v602
        %v604 = vpop.f32.mrf.mxu0
        %v605 = vadd.f32 %v347, %v604
        %606 = vmatprep.mubr.f32.mxu0 0.0
        %607 = vmatmul.mubr.f32.gmra.mxu0 %v391
        %v608 = vpop.f32.mrf.mxu0
        %v609 = vadd.f32 %v352, %v608
        %v610 = vpop.f32.mrf.mxu0
        %v611 = vadd.f32 %v352, %v610
        %612 = vmatprep.mubr.f32.mxu0 0.0
        %613 = vmatmul.mubr.f32.gmra.mxu0 %v394
        %v614 = vpop.f32.mrf.mxu0
        %v615 = vadd.f32 %v357, %v614
        %v616 = vpop.f32.mrf.mxu0
        %v617 = vadd.f32 %v357, %v616
        %618 = vmatprep.mubr.f32.mxu0 0.0
        %619 = vmatmul.mubr.f32.gmra.mxu0 %v397
        %v620 = vpop.f32.mrf.mxu0
        %v621 = vadd.f32 %v362, %v620
        %v622 = vpop.f32.mrf.mxu0
        %v623 = vadd.f32 %v362, %v622
        %624 = vmatprep.mubr.f32.mxu0 0.0
        %625 = vmatmul.mubr.f32.gmra.mxu0 %v400
        %v626 = vpop.f32.mrf.mxu0
        %v627 = vadd.f32 %v367, %v626
        %v628 = vpop.f32.mrf.mxu0
        %v629 = vadd.f32 %v367, %v628
        %630 = vmatprep.mubr.f32.mxu0 0.0
        %631 = vmatmul.mubr.f32.gmra.mxu0 %v403
        %v632 = vpop.f32.mrf.mxu0
        %v633 = vadd.f32 %v372, %v632
        %v634 = vpop.f32.mrf.mxu0
        %v635 = vadd.f32 %v372, %v634
        %636 = vmatprep.mubr.f32.mxu0 0.0
        %637 = vmatmul.mubr.f32.gmra.mxu0 %v406
        %v638 = vpop.f32.mrf.mxu0
        %v639 = vadd.f32 %v377, %v638
        %v640 = vpop.f32.mrf.mxu0
        %v641 = vadd.f32 %v377, %v640
        %642 = vdwg.mxu0
        %643 = vst [vmem:[#allocation2 + $0x8] sm:$0xff] %v484
        %644 = vst [vmem:[#allocation2 + $0x10] sm:$0xff] %v486
        %645 = vst [vmem:[#allocation2 + $0x18] sm:$0xff] %v597
        %646 = vst [vmem:[#allocation2 + $0x20] sm:$0xff] %v599
        %647 = vst [vmem:[#allocation2 + $0x38] sm:$0xff] %v490
        %648 = vst [vmem:[#allocation2 + $0x40] sm:$0xff] %v492
        %649 = vst [vmem:[#allocation2 + $0x48] sm:$0xff] %v603
        %650 = vst [vmem:[#allocation2 + $0x50] sm:$0xff] %v605
        %651 = vst [vmem:[#allocation2 + $0x68] sm:$0xff] %v496
        %652 = vst [vmem:[#allocation2 + $0x70] sm:$0xff] %v498
        %653 = vst [vmem:[#allocation2 + $0x78] sm:$0xff] %v609
        %654 = vst [vmem:[#allocation2 + $0x80] sm:$0xff] %v611
        %655 = vst [vmem:[#allocation2 + $0x98] sm:$0xff] %v502
        %656 = vst [vmem:[#allocation2 + $0xa0] sm:$0xff] %v504
        %657 = vst [vmem:[#allocation2 + $0xa8] sm:$0xff] %v615
        %658 = vst [vmem:[#allocation2 + $0xb0] sm:$0xff] %v617
        %659 = vst [vmem:[#allocation2 + $0xc8] sm:$0xff] %v508
        %660 = vst [vmem:[#allocation2 + $0xd0] sm:$0xff] %v510
        %661 = vst [vmem:[#allocation2 + $0xd8] sm:$0xff] %v621
        %662 = vst [vmem:[#allocation2 + $0xe0] sm:$0xff] %v623
        %663 = vst [vmem:[#allocation2 + $0xf8] sm:$0xff] %v514
        %664 = vst [vmem:[#allocation2 + $0x100] sm:$0xff] %v516
        %665 = vst [vmem:[#allocation2 + $0x108] sm:$0xff] %v627
        %666 = vst [vmem:[#allocation2 + $0x110] sm:$0xff] %v629
        %667 = vst [vmem:[#allocation2 + $0x128] sm:$0xff] %v520
        %668 = vst [vmem:[#allocation2 + $0x130] sm:$0xff] %v522
        %669 = vst [vmem:[#allocation2 + $0x138] sm:$0xff] %v633
        %670 = vst [vmem:[#allocation2 + $0x140] sm:$0xff] %v635
        %671 = vst [vmem:[#allocation2 + $0x158] sm:$0xff] %v526
        %672 = vst [vmem:[#allocation2 + $0x160] sm:$0xff] %v528
        %673 = vst [vmem:[#allocation2 + $0x168] sm:$0xff] %v639
        %674 = vst [vmem:[#allocation2 + $0x170] sm:$0xff] %v641
        %v675 = vld [vmem:[#allocation2] sm:$0xff]
        %v676 = vld [vmem:[#allocation2 + $0x8] sm:$0xff]
        %v677 = vld [vmem:[#allocation2 + $0x10] sm:$0xff]
        %v678 = vld [vmem:[#allocation2 + $0x18] sm:$0xff]
        %v679 = vld [vmem:[#allocation2 + $0x20] sm:$0xff]
        %v680 = vld [vmem:[#allocation2 + $0x30] sm:$0xff]
        %v681 = vld [vmem:[#allocation2 + $0x38] sm:$0xff]
        %v682 = vld [vmem:[#allocation2 + $0x40] sm:$0xff]
        %v683 = vld [vmem:[#allocation2 + $0x48] sm:$0xff]
        %v684 = vld [vmem:[#allocation2 + $0x50] sm:$0xff]
        %v685 = vld [vmem:[#allocation2 + $0x60] sm:$0xff]
        %v686 = vld [vmem:[#allocation2 + $0x68] sm:$0xff]
        %v687 = vld [vmem:[#allocation2 + $0x70] sm:$0xff]
        %v688 = vld [vmem:[#allocation2 + $0x78] sm:$0xff]
        %v689 = vld [vmem:[#allocation2 + $0x80] sm:$0xff]
        %v690 = vld [vmem:[#allocation2 + $0x90] sm:$0xff]
        %v691 = vld [vmem:[#allocation2 + $0x98] sm:$0xff]
        %v692 = vld [vmem:[#allocation2 + $0xa0] sm:$0xff]
        %v693 = vld [vmem:[#allocation2 + $0xa8] sm:$0xff]
        %v694 = vld [vmem:[#allocation2 + $0xb0] sm:$0xff]
        %v695 = vld [vmem:[#allocation2 + $0xc0] sm:$0xff]
        %v696 = vld [vmem:[#allocation2 + $0xc8] sm:$0xff]
        %v697 = vld [vmem:[#allocation2 + $0xd0] sm:$0xff]
        %v698 = vld [vmem:[#allocation2 + $0xd8] sm:$0xff]
        %v699 = vld [vmem:[#allocation2 + $0xe0] sm:$0xff]
        %v700 = vld [vmem:[#allocation2 + $0xf0] sm:$0xff]
        %v701 = vld [vmem:[#allocation2 + $0xf8] sm:$0xff]
        %v702 = vld [vmem:[#allocation2 + $0x100] sm:$0xff]
        %v703 = vld [vmem:[#allocation2 + $0x108] sm:$0xff]
        %v704 = vld [vmem:[#allocation2 + $0x110] sm:$0xff]
        %v705 = vld [vmem:[#allocation2 + $0x120] sm:$0xff]
        %v706 = vld [vmem:[#allocation2 + $0x128] sm:$0xff]
        %v707 = vld [vmem:[#allocation2 + $0x130] sm:$0xff]
        %v708 = vld [vmem:[#allocation2 + $0x138] sm:$0xff]
        %v709 = vld [vmem:[#allocation2 + $0x140] sm:$0xff]
        %v710 = vld [vmem:[#allocation2 + $0x150] sm:$0xff]
        %v711 = vld [vmem:[#allocation2 + $0x158] sm:$0xff]
        %v712 = vld [vmem:[#allocation2 + $0x160] sm:$0xff]
        %v713 = vld [vmem:[#allocation2 + $0x168] sm:$0xff]
        %v714 = vld [vmem:[#allocation2 + $0x170] sm:$0xff]
        %v715 = vld [vmem:[#allocation5] ss:$8 sm:$0xf]
        %vm716 = vcmp.gt.f32.partialorder %v715, 0.5
        %v717 = vsel %vm716, 1, 0
        %v718 = vlaneseq
        %v719 = vshrl.u32 %v718, 7
        %v720 = vsub.s32 0, %v719
        %v721 = vrot.slane %v717, %v720
        %v722 = vlaneseq
        %v723 = vshrl.u32 %v722, 7
        %v724 = vsub.s32 1, %v723
        %v725 = vrot.slane %v717, %v724
        %v726 = vlaneseq
        %v727 = vshrl.u32 %v726, 7
        %v728 = vsub.s32 2, %v727
        %v729 = vrot.slane %v717, %v728
        %v730 = vlaneseq
        %v731 = vshrl.u32 %v730, 7
        %v732 = vsub.s32 3, %v731
        %v733 = vrot.slane %v717, %v732
        %vm734 = vcmp.eq.s32.totalorder %v721, 1
        %vm735 = vcmp.eq.s32.totalorder %v725, 1
        %vm736 = vcmp.eq.s32.totalorder %v729, 1
        %vm737 = vcmp.eq.s32.totalorder %v733, 1
        %778 = vrot.lane.b32.xlu0 %v675, 17
        %v779 = vpop.permute.xlu0 %778
        %780 = vrot.lane.b32.xlu0 %v676, 17
        %v781 = vpop.permute.xlu0 %780
        %782 = vrot.lane.b32.xlu0 %v677, 17
        %v783 = vpop.permute.xlu0 %782
        %784 = vrot.lane.b32.xlu0 %v678, 17
        %v785 = vpop.permute.xlu0 %784
        %786 = vrot.lane.b32.xlu0 %v679, 17
        %v787 = vpop.permute.xlu0 %786
        %788 = vrot.lane.b32.xlu0 %v680, 17
        %v789 = vpop.permute.xlu0 %788
        %790 = vrot.lane.b32.xlu0 %v681, 17
        %v791 = vpop.permute.xlu0 %790
        %792 = vrot.lane.b32.xlu0 %v682, 17
        %v793 = vpop.permute.xlu0 %792
        %794 = vrot.lane.b32.xlu0 %v683, 17
        %v795 = vpop.permute.xlu0 %794
        %796 = vrot.lane.b32.xlu0 %v684, 17
        %v797 = vpop.permute.xlu0 %796
        %798 = vrot.lane.b32.xlu0 %v685, 17
        %v799 = vpop.permute.xlu0 %798
        %800 = vrot.lane.b32.xlu0 %v686, 17
        %v801 = vpop.permute.xlu0 %800
        %802 = vrot.lane.b32.xlu0 %v687, 17
        %v803 = vpop.permute.xlu0 %802
        %804 = vrot.lane.b32.xlu0 %v688, 17
        %v805 = vpop.permute.xlu0 %804
        %806 = vrot.lane.b32.xlu0 %v689, 17
        %v807 = vpop.permute.xlu0 %806
        %808 = vrot.lane.b32.xlu0 %v690, 17
        %v809 = vpop.permute.xlu0 %808
        %810 = vrot.lane.b32.xlu0 %v691, 17
        %v811 = vpop.permute.xlu0 %810
        %812 = vrot.lane.b32.xlu0 %v692, 17
        %v813 = vpop.permute.xlu0 %812
        %814 = vrot.lane.b32.xlu0 %v693, 17
        %v815 = vpop.permute.xlu0 %814
        %816 = vrot.lane.b32.xlu0 %v694, 17
        %v817 = vpop.permute.xlu0 %816
        %818 = vrot.lane.b32.xlu0 %v695, 17
        %v819 = vpop.permute.xlu0 %818
        %820 = vrot.lane.b32.xlu0 %v696, 17
        %v821 = vpop.permute.xlu0 %820
        %822 = vrot.lane.b32.xlu0 %v697, 17
        %v823 = vpop.permute.xlu0 %822
        %824 = vrot.lane.b32.xlu0 %v698, 17
        %v825 = vpop.permute.xlu0 %824
        %826 = vrot.lane.b32.xlu0 %v699, 17
        %v827 = vpop.permute.xlu0 %826
        %828 = vrot.lane.b32.xlu0 %v700, 17
        %v829 = vpop.permute.xlu0 %828
        %830 = vrot.lane.b32.xlu0 %v701, 17
        %v831 = vpop.permute.xlu0 %830
        %832 = vrot.lane.b32.xlu0 %v702, 17
        %v833 = vpop.permute.xlu0 %832
        %834 = vrot.lane.b32.xlu0 %v703, 17
        %v835 = vpop.permute.xlu0 %834
        %836 = vrot.lane.b32.xlu0 %v704, 17
        %v837 = vpop.permute.xlu0 %836
        %838 = vrot.lane.b32.xlu0 %v705, 17
        %v839 = vpop.permute.xlu0 %838
        %840 = vrot.lane.b32.xlu0 %v706, 17
        %v841 = vpop.permute.xlu0 %840
        %842 = vrot.lane.b32.xlu0 %v707, 17
        %v843 = vpop.permute.xlu0 %842
        %844 = vrot.lane.b32.xlu0 %v708, 17
        %v845 = vpop.permute.xlu0 %844
        %846 = vrot.lane.b32.xlu0 %v709, 17
        %v847 = vpop.permute.xlu0 %846
        %848 = vrot.lane.b32.xlu0 %v710, 17
        %v849 = vpop.permute.xlu0 %848
        %850 = vrot.lane.b32.xlu0 %v711, 17
        %v851 = vpop.permute.xlu0 %850
        %852 = vrot.lane.b32.xlu0 %v712, 17
        %v853 = vpop.permute.xlu0 %852
        %854 = vrot.lane.b32.xlu0 %v713, 17
        %v855 = vpop.permute.xlu0 %854
        %856 = vrot.lane.b32.xlu0 %v714, 17
        %v857 = vpop.permute.xlu0 %856
        %vm858 = vcmask 138240
        %v859 = vsel %vm858, %v779, %v781
        %v860 = vsel %vm858, %v781, %v783
        %v861 = vsel %vm858, %v783, %v785
        %v862 = vsel %vm858, %v785, %v787
        %v863 = vsel %vm858, %v789, %v791
        %v864 = vsel %vm858, %v791, %v793
        %v865 = vsel %vm858, %v793, %v795
        %v866 = vsel %vm858, %v795, %v797
        %v867 = vsel %vm858, %v799, %v801
        %v868 = vsel %vm858, %v801, %v803
        %v869 = vsel %vm858, %v803, %v805
        %v870 = vsel %vm858, %v805, %v807
        %v871 = vsel %vm858, %v809, %v811
        %v872 = vsel %vm858, %v811, %v813
        %v873 = vsel %vm858, %v813, %v815
        %v874 = vsel %vm858, %v815, %v817
        %v875 = vsel %vm858, %v819, %v821
        %v876 = vsel %vm858, %v821, %v823
        %v877 = vsel %vm858, %v823, %v825
        %v878 = vsel %vm858, %v825, %v827
        %v879 = vsel %vm858, %v829, %v831
        %v880 = vsel %vm858, %v831, %v833
        %v881 = vsel %vm858, %v833, %v835
        %v882 = vsel %vm858, %v835, %v837
        %v883 = vsel %vm858, %v839, %v841
        %v884 = vsel %vm858, %v841, %v843
        %v885 = vsel %vm858, %v843, %v845
        %v886 = vsel %vm858, %v845, %v847
        %v887 = vsel %vm858, %v849, %v851
        %v888 = vsel %vm858, %v851, %v853
        %v889 = vsel %vm858, %v853, %v855
        %v890 = vsel %vm858, %v855, %v857
        %v923 = vsel %vm734, %v859, 0.0
        %v924 = vsel %vm735, %v860, 0.0
        %v925 = vsel %vm736, %v861, 0.0
        %v926 = vsel %vm737, %v862, 0.0
        %v927 = vsel %vm734, %v863, 0.0
        %v928 = vsel %vm735, %v864, 0.0
        %v929 = vsel %vm736, %v865, 0.0
        %v930 = vsel %vm737, %v866, 0.0
        %v931 = vsel %vm734, %v867, 0.0
        %v932 = vsel %vm735, %v868, 0.0
        %v933 = vsel %vm736, %v869, 0.0
        %v934 = vsel %vm737, %v870, 0.0
        %v935 = vsel %vm734, %v871, 0.0
        %v936 = vsel %vm735, %v872, 0.0
        %v937 = vsel %vm736, %v873, 0.0
        %v938 = vsel %vm737, %v874, 0.0
        %v939 = vsel %vm734, %v875, 0.0
        %v940 = vsel %vm735, %v876, 0.0
        %v941 = vsel %vm736, %v877, 0.0
        %v942 = vsel %vm737, %v878, 0.0
        %v943 = vsel %vm734, %v879, 0.0
        %v944 = vsel %vm735, %v880, 0.0
        %v945 = vsel %vm736, %v881, 0.0
        %v946 = vsel %vm737, %v882, 0.0
        %v947 = vsel %vm734, %v883, 0.0
        %v948 = vsel %vm735, %v884, 0.0
        %v949 = vsel %vm736, %v885, 0.0
        %v950 = vsel %vm737, %v886, 0.0
        %v951 = vsel %vm734, %v887, 0.0
        %v952 = vsel %vm735, %v888, 0.0
        %v953 = vsel %vm736, %v889, 0.0
        %v954 = vsel %vm737, %v890, 0.0
        %955 = vst [vmem:[#allocation3] sm:$0xff] %v923
        %956 = vst [vmem:[#allocation3 + $0x8] sm:$0xff] %v924
        %957 = vst [vmem:[#allocation3 + $0x10] sm:$0xff] %v925
        %958 = vst [vmem:[#allocation3 + $0x18] sm:$0xff] %v926
        %959 = vst [vmem:[#allocation3 + $0x20] sm:$0xff] %v927
        %960 = vst [vmem:[#allocation3 + $0x28] sm:$0xff] %v928
        %961 = vst [vmem:[#allocation3 + $0x30] sm:$0xff] %v929
        %962 = vst [vmem:[#allocation3 + $0x38] sm:$0xff] %v930
        %963 = vst [vmem:[#allocation3 + $0x40] sm:$0xff] %v931
        %964 = vst [vmem:[#allocation3 + $0x48] sm:$0xff] %v932
        %965 = vst [vmem:[#allocation3 + $0x50] sm:$0xff] %v933
        %966 = vst [vmem:[#allocation3 + $0x58] sm:$0xff] %v934
        %967 = vst [vmem:[#allocation3 + $0x60] sm:$0xff] %v935
        %968 = vst [vmem:[#allocation3 + $0x68] sm:$0xff] %v936
        %969 = vst [vmem:[#allocation3 + $0x70] sm:$0xff] %v937
        %970 = vst [vmem:[#allocation3 + $0x78] sm:$0xff] %v938
        %971 = vst [vmem:[#allocation3 + $0x80] sm:$0xff] %v939
        %972 = vst [vmem:[#allocation3 + $0x88] sm:$0xff] %v940
        %973 = vst [vmem:[#allocation3 + $0x90] sm:$0xff] %v941
        %974 = vst [vmem:[#allocation3 + $0x98] sm:$0xff] %v942
        %975 = vst [vmem:[#allocation3 + $0xa0] sm:$0xff] %v943
        %976 = vst [vmem:[#allocation3 + $0xa8] sm:$0xff] %v944
        %977 = vst [vmem:[#allocation3 + $0xb0] sm:$0xff] %v945
        %978 = vst [vmem:[#allocation3 + $0xb8] sm:$0xff] %v946
        %979 = vst [vmem:[#allocation3 + $0xc0] sm:$0xff] %v947
        %980 = vst [vmem:[#allocation3 + $0xc8] sm:$0xff] %v948
        %981 = vst [vmem:[#allocation3 + $0xd0] sm:$0xff] %v949
        %982 = vst [vmem:[#allocation3 + $0xd8] sm:$0xff] %v950
        %983 = vst [vmem:[#allocation3 + $0xe0] sm:$0xff] %v951
        %984 = vst [vmem:[#allocation3 + $0xe8] sm:$0xff] %v952
        %985 = vst [vmem:[#allocation3 + $0xf0] sm:$0xff] %v953
        %986 = vst [vmem:[#allocation3 + $0xf8] sm:$0xff] %v954
        %v987 = vld [vmem:[#allocation2] sm:$0xff]
        %v988 = vld [vmem:[#allocation2 + $0x8] sm:$0xff]
        %v989 = vld [vmem:[#allocation2 + $0x10] sm:$0xff]
        %v990 = vld [vmem:[#allocation2 + $0x18] sm:$0xff]
        %v991 = vld [vmem:[#allocation2 + $0x20] sm:$0xff]
        %v992 = vld [vmem:[#allocation2 + $0x30] sm:$0xff]
        %v993 = vld [vmem:[#allocation2 + $0x38] sm:$0xff]
        %v994 = vld [vmem:[#allocation2 + $0x40] sm:$0xff]
        %v995 = vld [vmem:[#allocation2 + $0x48] sm:$0xff]
        %v996 = vld [vmem:[#allocation2 + $0x50] sm:$0xff]
        %v997 = vld [vmem:[#allocation2 + $0x60] sm:$0xff]
        %v998 = vld [vmem:[#allocation2 + $0x68] sm:$0xff]
        %v999 = vld [vmem:[#allocation2 + $0x70] sm:$0xff]
        %v1000 = vld [vmem:[#allocation2 + $0x78] sm:$0xff]
        %v1001 = vld [vmem:[#allocation2 + $0x80] sm:$0xff]
        %v1002 = vld [vmem:[#allocation2 + $0x90] sm:$0xff]
        %v1003 = vld [vmem:[#allocation2 + $0x98] sm:$0xff]
        %v1004 = vld [vmem:[#allocation2 + $0xa0] sm:$0xff]
        %v1005 = vld [vmem:[#allocation2 + $0xa8] sm:$0xff]
        %v1006 = vld [vmem:[#allocation2 + $0xb0] sm:$0xff]
        %v1007 = vld [vmem:[#allocation2 + $0xc0] sm:$0xff]
        %v1008 = vld [vmem:[#allocation2 + $0xc8] sm:$0xff]
        %v1009 = vld [vmem:[#allocation2 + $0xd0] sm:$0xff]
        %v1010 = vld [vmem:[#allocation2 + $0xd8] sm:$0xff]
        %v1011 = vld [vmem:[#allocation2 + $0xe0] sm:$0xff]
        %v1012 = vld [vmem:[#allocation2 + $0xf0] sm:$0xff]
        %v1013 = vld [vmem:[#allocation2 + $0xf8] sm:$0xff]
        %v1014 = vld [vmem:[#allocation2 + $0x100] sm:$0xff]
        %v1015 = vld [vmem:[#allocation2 + $0x108] sm:$0xff]
        %v1016 = vld [vmem:[#allocation2 + $0x110] sm:$0xff]
        %v1017 = vld [vmem:[#allocation2 + $0x120] sm:$0xff]
        %v1018 = vld [vmem:[#allocation2 + $0x128] sm:$0xff]
        %v1019 = vld [vmem:[#allocation2 + $0x130] sm:$0xff]
        %v1020 = vld [vmem:[#allocation2 + $0x138] sm:$0xff]
        %v1021 = vld [vmem:[#allocation2 + $0x140] sm:$0xff]
        %v1022 = vld [vmem:[#allocation2 + $0x150] sm:$0xff]
        %v1023 = vld [vmem:[#allocation2 + $0x158] sm:$0xff]
        %v1024 = vld [vmem:[#allocation2 + $0x160] sm:$0xff]
        %v1025 = vld [vmem:[#allocation2 + $0x168] sm:$0xff]
        %v1026 = vld [vmem:[#allocation2 + $0x170] sm:$0xff]
        %s1027 = scalar_lea.vmem [#allocation5], 1
        %v1028 = vld [vmem:[%s1027] ss:$8 sm:$0xf]
        %vm1029 = vcmp.gt.f32.partialorder %v1028, 0.5
        %v1030 = vsel %vm1029, 1, 0
        %v1031 = vlaneseq
        %v1032 = vshrl.u32 %v1031, 7
        %v1033 = vsub.s32 0, %v1032
        %v1034 = vrot.slane %v1030, %v1033
        %v1035 = vlaneseq
        %v1036 = vshrl.u32 %v1035, 7
        %v1037 = vsub.s32 1, %v1036
        %v1038 = vrot.slane %v1030, %v1037
        %v1039 = vlaneseq
        %v1040 = vshrl.u32 %v1039, 7
        %v1041 = vsub.s32 2, %v1040
        %v1042 = vrot.slane %v1030, %v1041
        %v1043 = vlaneseq
        %v1044 = vshrl.u32 %v1043, 7
        %v1045 = vsub.s32 3, %v1044
        %v1046 = vrot.slane %v1030, %v1045
        %vm1047 = vcmp.eq.s32.totalorder %v1034, 1
        %vm1048 = vcmp.eq.s32.totalorder %v1038, 1
        %vm1049 = vcmp.eq.s32.totalorder %v1042, 1
        %vm1050 = vcmp.eq.s32.totalorder %v1046, 1
        %1091 = vrot.lane.b32.xlu0 %v987, 16
        %v1092 = vpop.permute.xlu0 %1091
        %1093 = vrot.lane.b32.xlu0 %v988, 16
        %v1094 = vpop.permute.xlu0 %1093
        %1095 = vrot.lane.b32.xlu0 %v989, 16
        %v1096 = vpop.permute.xlu0 %1095
        %1097 = vrot.lane.b32.xlu0 %v990, 16
        %v1098 = vpop.permute.xlu0 %1097
        %1099 = vrot.lane.b32.xlu0 %v991, 16
        %v1100 = vpop.permute.xlu0 %1099
        %1101 = vrot.lane.b32.xlu0 %v992, 16
        %v1102 = vpop.permute.xlu0 %1101
        %1103 = vrot.lane.b32.xlu0 %v993, 16
        %v1104 = vpop.permute.xlu0 %1103
        %1105 = vrot.lane.b32.xlu0 %v994, 16
        %v1106 = vpop.permute.xlu0 %1105
        %1107 = vrot.lane.b32.xlu0 %v995, 16
        %v1108 = vpop.permute.xlu0 %1107
        %1109 = vrot.lane.b32.xlu0 %v996, 16
        %v1110 = vpop.permute.xlu0 %1109
        %1111 = vrot.lane.b32.xlu0 %v997, 16
        %v1112 = vpop.permute.xlu0 %1111
        %1113 = vrot.lane.b32.xlu0 %v998, 16
        %v1114 = vpop.permute.xlu0 %1113
        %1115 = vrot.lane.b32.xlu0 %v999, 16
        %v1116 = vpop.permute.xlu0 %1115
        %1117 = vrot.lane.b32.xlu0 %v1000, 16
        %v1118 = vpop.permute.xlu0 %1117
        %1119 = vrot.lane.b32.xlu0 %v1001, 16
        %v1120 = vpop.permute.xlu0 %1119
        %1121 = vrot.lane.b32.xlu0 %v1002, 16
        %v1122 = vpop.permute.xlu0 %1121
        %1123 = vrot.lane.b32.xlu0 %v1003, 16
        %v1124 = vpop.permute.xlu0 %1123
        %1125 = vrot.lane.b32.xlu0 %v1004, 16
        %v1126 = vpop.permute.xlu0 %1125
        %1127 = vrot.lane.b32.xlu0 %v1005, 16
        %v1128 = vpop.permute.xlu0 %1127
        %1129 = vrot.lane.b32.xlu0 %v1006, 16
        %v1130 = vpop.permute.xlu0 %1129
        %1131 = vrot.lane.b32.xlu0 %v1007, 16
        %v1132 = vpop.permute.xlu0 %1131
        %1133 = vrot.lane.b32.xlu0 %v1008, 16
        %v1134 = vpop.permute.xlu0 %1133
        %1135 = vrot.lane.b32.xlu0 %v1009, 16
        %v1136 = vpop.permute.xlu0 %1135
        %1137 = vrot.lane.b32.xlu0 %v1010, 16
        %v1138 = vpop.permute.xlu0 %1137
        %1139 = vrot.lane.b32.xlu0 %v1011, 16
        %v1140 = vpop.permute.xlu0 %1139
        %1141 = vrot.lane.b32.xlu0 %v1012, 16
        %v1142 = vpop.permute.xlu0 %1141
        %1143 = vrot.lane.b32.xlu0 %v1013, 16
        %v1144 = vpop.permute.xlu0 %1143
        %1145 = vrot.lane.b32.xlu0 %v1014, 16
        %v1146 = vpop.permute.xlu0 %1145
        %1147 = vrot.lane.b32.xlu0 %v1015, 16
        %v1148 = vpop.permute.xlu0 %1147
        %1149 = vrot.lane.b32.xlu0 %v1016, 16
        %v1150 = vpop.permute.xlu0 %1149
        %1151 = vrot.lane.b32.xlu0 %v1017, 16
        %v1152 = vpop.permute.xlu0 %1151
        %1153 = vrot.lane.b32.xlu0 %v1018, 16
        %v1154 = vpop.permute.xlu0 %1153
        %1155 = vrot.lane.b32.xlu0 %v1019, 16
        %v1156 = vpop.permute.xlu0 %1155
        %1157 = vrot.lane.b32.xlu0 %v1020, 16
        %v1158 = vpop.permute.xlu0 %1157
        %1159 = vrot.lane.b32.xlu0 %v1021, 16
        %v1160 = vpop.permute.xlu0 %1159
        %1161 = vrot.lane.b32.xlu0 %v1022, 16
        %v1162 = vpop.permute.xlu0 %1161
        %1163 = vrot.lane.b32.xlu0 %v1023, 16
        %v1164 = vpop.permute.xlu0 %1163
        %1165 = vrot.lane.b32.xlu0 %v1024, 16
        %v1166 = vpop.permute.xlu0 %1165
        %1167 = vrot.lane.b32.xlu0 %v1025, 16
        %v1168 = vpop.permute.xlu0 %1167
        %1169 = vrot.lane.b32.xlu0 %v1026, 16
        %v1170 = vpop.permute.xlu0 %1169
        %vm1171 = vcmask 130048
        %v1172 = vsel %vm1171, %v1092, %v1094
        %v1173 = vsel %vm1171, %v1094, %v1096
        %v1174 = vsel %vm1171, %v1096, %v1098
        %v1175 = vsel %vm1171, %v1098, %v1100
        %v1176 = vsel %vm1171, %v1102, %v1104
        %v1177 = vsel %vm1171, %v1104, %v1106
        %v1178 = vsel %vm1171, %v1106, %v1108
        %v1179 = vsel %vm1171, %v1108, %v1110
        %v1180 = vsel %vm1171, %v1112, %v1114
        %v1181 = vsel %vm1171, %v1114, %v1116
        %v1182 = vsel %vm1171, %v1116, %v1118
        %v1183 = vsel %vm1171, %v1118, %v1120
        %v1184 = vsel %vm1171, %v1122, %v1124
        %v1185 = vsel %vm1171, %v1124, %v1126
        %v1186 = vsel %vm1171, %v1126, %v1128
        %v1187 = vsel %vm1171, %v1128, %v1130
        %v1188 = vsel %vm1171, %v1132, %v1134
        %v1189 = vsel %vm1171, %v1134, %v1136
        %v1190 = vsel %vm1171, %v1136, %v1138
        %v1191 = vsel %vm1171, %v1138, %v1140
        %v1192 = vsel %vm1171, %v1142, %v1144
        %v1193 = vsel %vm1171, %v1144, %v1146
        %v1194 = vsel %vm1171, %v1146, %v1148
        %v1195 = vsel %vm1171, %v1148, %v1150
        %v1196 = vsel %vm1171, %v1152, %v1154
        %v1197 = vsel %vm1171, %v1154, %v1156
        %v1198 = vsel %vm1171, %v1156, %v1158
        %v1199 = vsel %vm1171, %v1158, %v1160
        %v1200 = vsel %vm1171, %v1162, %v1164
        %v1201 = vsel %vm1171, %v1164, %v1166
        %v1202 = vsel %vm1171, %v1166, %v1168
        %v1203 = vsel %vm1171, %v1168, %v1170
        %v1236 = vsel %vm1047, %v1172, 0.0
        %v1237 = vsel %vm1048, %v1173, 0.0
        %v1238 = vsel %vm1049, %v1174, 0.0
        %v1239 = vsel %vm1050, %v1175, 0.0
        %v1240 = vsel %vm1047, %v1176, 0.0
        %v1241 = vsel %vm1048, %v1177, 0.0
        %v1242 = vsel %vm1049, %v1178, 0.0
        %v1243 = vsel %vm1050, %v1179, 0.0
        %v1244 = vsel %vm1047, %v1180, 0.0
        %v1245 = vsel %vm1048, %v1181, 0.0
        %v1246 = vsel %vm1049, %v1182, 0.0
        %v1247 = vsel %vm1050, %v1183, 0.0
        %v1248 = vsel %vm1047, %v1184, 0.0
        %v1249 = vsel %vm1048, %v1185, 0.0
        %v1250 = vsel %vm1049, %v1186, 0.0
        %v1251 = vsel %vm1050, %v1187, 0.0
        %v1252 = vsel %vm1047, %v1188, 0.0
        %v1253 = vsel %vm1048, %v1189, 0.0
        %v1254 = vsel %vm1049, %v1190, 0.0
        %v1255 = vsel %vm1050, %v1191, 0.0
        %v1256 = vsel %vm1047, %v1192, 0.0
        %v1257 = vsel %vm1048, %v1193, 0.0
        %v1258 = vsel %vm1049, %v1194, 0.0
        %v1259 = vsel %vm1050, %v1195, 0.0
        %v1260 = vsel %vm1047, %v1196, 0.0
        %v1261 = vsel %vm1048, %v1197, 0.0
        %v1262 = vsel %vm1049, %v1198, 0.0
        %v1263 = vsel %vm1050, %v1199, 0.0
        %v1264 = vsel %vm1047, %v1200, 0.0
        %v1265 = vsel %vm1048, %v1201, 0.0
        %v1266 = vsel %vm1049, %v1202, 0.0
        %v1267 = vsel %vm1050, %v1203, 0.0
        %1268 = vst [vmem:[#allocation3 + $0x100] sm:$0xff] %v1236
        %1269 = vst [vmem:[#allocation3 + $0x108] sm:$0xff] %v1237
        %1270 = vst [vmem:[#allocation3 + $0x110] sm:$0xff] %v1238
        %1271 = vst [vmem:[#allocation3 + $0x118] sm:$0xff] %v1239
        %1272 = vst [vmem:[#allocation3 + $0x120] sm:$0xff] %v1240
        %1273 = vst [vmem:[#allocation3 + $0x128] sm:$0xff] %v1241
        %1274 = vst [vmem:[#allocation3 + $0x130] sm:$0xff] %v1242
        %1275 = vst [vmem:[#allocation3 + $0x138] sm:$0xff] %v1243
        %1276 = vst [vmem:[#allocation3 + $0x140] sm:$0xff] %v1244
        %1277 = vst [vmem:[#allocation3 + $0x148] sm:$0xff] %v1245
        %1278 = vst [vmem:[#allocation3 + $0x150] sm:$0xff] %v1246
        %1279 = vst [vmem:[#allocation3 + $0x158] sm:$0xff] %v1247
        %1280 = vst [vmem:[#allocation3 + $0x160] sm:$0xff] %v1248
        %1281 = vst [vmem:[#allocation3 + $0x168] sm:$0xff] %v1249
        %1282 = vst [vmem:[#allocation3 + $0x170] sm:$0xff] %v1250
        %1283 = vst [vmem:[#allocation3 + $0x178] sm:$0xff] %v1251
        %1284 = vst [vmem:[#allocation3 + $0x180] sm:$0xff] %v1252
        %1285 = vst [vmem:[#allocation3 + $0x188] sm:$0xff] %v1253
        %1286 = vst [vmem:[#allocation3 + $0x190] sm:$0xff] %v1254
        %1287 = vst [vmem:[#allocation3 + $0x198] sm:$0xff] %v1255
        %1288 = vst [vmem:[#allocation3 + $0x1a0] sm:$0xff] %v1256
        %1289 = vst [vmem:[#allocation3 + $0x1a8] sm:$0xff] %v1257
        %1290 = vst [vmem:[#allocation3 + $0x1b0] sm:$0xff] %v1258
        %1291 = vst [vmem:[#allocation3 + $0x1b8] sm:$0xff] %v1259
        %1292 = vst [vmem:[#allocation3 + $0x1c0] sm:$0xff] %v1260
        %1293 = vst [vmem:[#allocation3 + $0x1c8] sm:$0xff] %v1261
        %1294 = vst [vmem:[#allocation3 + $0x1d0] sm:$0xff] %v1262
        %1295 = vst [vmem:[#allocation3 + $0x1d8] sm:$0xff] %v1263
        %1296 = vst [vmem:[#allocation3 + $0x1e0] sm:$0xff] %v1264
        %1297 = vst [vmem:[#allocation3 + $0x1e8] sm:$0xff] %v1265
        %1298 = vst [vmem:[#allocation3 + $0x1f0] sm:$0xff] %v1266
        %1299 = vst [vmem:[#allocation3 + $0x1f8] sm:$0xff] %v1267
        %v1300 = vld [vmem:[#allocation2] sm:$0xff]
        %v1301 = vld [vmem:[#allocation2 + $0x8] sm:$0xff]
        %v1302 = vld [vmem:[#allocation2 + $0x10] sm:$0xff]
        %v1303 = vld [vmem:[#allocation2 + $0x18] sm:$0xff]
        %v1304 = vld [vmem:[#allocation2 + $0x20] sm:$0xff]
        %v1305 = vld [vmem:[#allocation2 + $0x30] sm:$0xff]
        %v1306 = vld [vmem:[#allocation2 + $0x38] sm:$0xff]
        %v1307 = vld [vmem:[#allocation2 + $0x40] sm:$0xff]
        %v1308 = vld [vmem:[#allocation2 + $0x48] sm:$0xff]
        %v1309 = vld [vmem:[#allocation2 + $0x50] sm:$0xff]
        %v1310 = vld [vmem:[#allocation2 + $0x60] sm:$0xff]
        %v1311 = vld [vmem:[#allocation2 + $0x68] sm:$0xff]
        %v1312 = vld [vmem:[#allocation2 + $0x70] sm:$0xff]
        %v1313 = vld [vmem:[#allocation2 + $0x78] sm:$0xff]
        %v1314 = vld [vmem:[#allocation2 + $0x80] sm:$0xff]
        %v1315 = vld [vmem:[#allocation2 + $0x90] sm:$0xff]
        %v1316 = vld [vmem:[#allocation2 + $0x98] sm:$0xff]
        %v1317 = vld [vmem:[#allocation2 + $0xa0] sm:$0xff]
        %v1318 = vld [vmem:[#allocation2 + $0xa8] sm:$0xff]
        %v1319 = vld [vmem:[#allocation2 + $0xb0] sm:$0xff]
        %v1320 = vld [vmem:[#allocation2 + $0xc0] sm:$0xff]
        %v1321 = vld [vmem:[#allocation2 + $0xc8] sm:$0xff]
        %v1322 = vld [vmem:[#allocation2 + $0xd0] sm:$0xff]
        %v1323 = vld [vmem:[#allocation2 + $0xd8] sm:$0xff]
        %v1324 = vld [vmem:[#allocation2 + $0xe0] sm:$0xff]
        %v1325 = vld [vmem:[#allocation2 + $0xf0] sm:$0xff]
        %v1326 = vld [vmem:[#allocation2 + $0xf8] sm:$0xff]
        %v1327 = vld [vmem:[#allocation2 + $0x100] sm:$0xff]
        %v1328 = vld [vmem:[#allocation2 + $0x108] sm:$0xff]
        %v1329 = vld [vmem:[#allocation2 + $0x110] sm:$0xff]
        %v1330 = vld [vmem:[#allocation2 + $0x120] sm:$0xff]
        %v1331 = vld [vmem:[#allocation2 + $0x128] sm:$0xff]
        %v1332 = vld [vmem:[#allocation2 + $0x130] sm:$0xff]
        %v1333 = vld [vmem:[#allocation2 + $0x138] sm:$0xff]
        %v1334 = vld [vmem:[#allocation2 + $0x140] sm:$0xff]
        %v1335 = vld [vmem:[#allocation2 + $0x150] sm:$0xff]
        %v1336 = vld [vmem:[#allocation2 + $0x158] sm:$0xff]
        %v1337 = vld [vmem:[#allocation2 + $0x160] sm:$0xff]
        %v1338 = vld [vmem:[#allocation2 + $0x168] sm:$0xff]
        %v1339 = vld [vmem:[#allocation2 + $0x170] sm:$0xff]
        %s1340 = scalar_lea.vmem [#allocation5], 2
        %v1341 = vld [vmem:[%s1340] ss:$8 sm:$0xf]
        %vm1342 = vcmp.gt.f32.partialorder %v1341, 0.5
        %v1343 = vsel %vm1342, 1, 0
        %v1344 = vlaneseq
        %v1345 = vshrl.u32 %v1344, 7
        %v1346 = vsub.s32 0, %v1345
        %v1347 = vrot.slane %v1343, %v1346
        %v1348 = vlaneseq
        %v1349 = vshrl.u32 %v1348, 7
        %v1350 = vsub.s32 1, %v1349
        %v1351 = vrot.slane %v1343, %v1350
        %v1352 = vlaneseq
        %v1353 = vshrl.u32 %v1352, 7
        %v1354 = vsub.s32 2, %v1353
        %v1355 = vrot.slane %v1343, %v1354
        %v1356 = vlaneseq
        %v1357 = vshrl.u32 %v1356, 7
        %v1358 = vsub.s32 3, %v1357
        %v1359 = vrot.slane %v1343, %v1358
        %vm1360 = vcmp.eq.s32.totalorder %v1347, 1
        %vm1361 = vcmp.eq.s32.totalorder %v1351, 1
        %vm1362 = vcmp.eq.s32.totalorder %v1355, 1
        %vm1363 = vcmp.eq.s32.totalorder %v1359, 1
        %1404 = vrot.lane.b32.xlu0 %v1300, 15
        %v1405 = vpop.permute.xlu0 %1404
        %1406 = vrot.lane.b32.xlu0 %v1301, 15
        %v1407 = vpop.permute.xlu0 %1406
        %1408 = vrot.lane.b32.xlu0 %v1302, 15
        %v1409 = vpop.permute.xlu0 %1408
        %1410 = vrot.lane.b32.xlu0 %v1303, 15
        %v1411 = vpop.permute.xlu0 %1410
        %1412 = vrot.lane.b32.xlu0 %v1304, 15
        %v1413 = vpop.permute.xlu0 %1412
        %1414 = vrot.lane.b32.xlu0 %v1305, 15
        %v1415 = vpop.permute.xlu0 %1414
        %1416 = vrot.lane.b32.xlu0 %v1306, 15
        %v1417 = vpop.permute.xlu0 %1416
        %1418 = vrot.lane.b32.xlu0 %v1307, 15
        %v1419 = vpop.permute.xlu0 %1418
        %1420 = vrot.lane.b32.xlu0 %v1308, 15
        %v1421 = vpop.permute.xlu0 %1420
        %1422 = vrot.lane.b32.xlu0 %v1309, 15
        %v1423 = vpop.permute.xlu0 %1422
        %1424 = vrot.lane.b32.xlu0 %v1310, 15
        %v1425 = vpop.permute.xlu0 %1424
        %1426 = vrot.lane.b32.xlu0 %v1311, 15
        %v1427 = vpop.permute.xlu0 %1426
        %1428 = vrot.lane.b32.xlu0 %v1312, 15
        %v1429 = vpop.permute.xlu0 %1428
        %1430 = vrot.lane.b32.xlu0 %v1313, 15
        %v1431 = vpop.permute.xlu0 %1430
        %1432 = vrot.lane.b32.xlu0 %v1314, 15
        %v1433 = vpop.permute.xlu0 %1432
        %1434 = vrot.lane.b32.xlu0 %v1315, 15
        %v1435 = vpop.permute.xlu0 %1434
        %1436 = vrot.lane.b32.xlu0 %v1316, 15
        %v1437 = vpop.permute.xlu0 %1436
        %1438 = vrot.lane.b32.xlu0 %v1317, 15
        %v1439 = vpop.permute.xlu0 %1438
        %1440 = vrot.lane.b32.xlu0 %v1318, 15
        %v1441 = vpop.permute.xlu0 %1440
        %1442 = vrot.lane.b32.xlu0 %v1319, 15
        %v1443 = vpop.permute.xlu0 %1442
        %1444 = vrot.lane.b32.xlu0 %v1320, 15
        %v1445 = vpop.permute.xlu0 %1444
        %1446 = vrot.lane.b32.xlu0 %v1321, 15
        %v1447 = vpop.permute.xlu0 %1446
        %1448 = vrot.lane.b32.xlu0 %v1322, 15
        %v1449 = vpop.permute.xlu0 %1448
        %1450 = vrot.lane.b32.xlu0 %v1323, 15
        %v1451 = vpop.permute.xlu0 %1450
        %1452 = vrot.lane.b32.xlu0 %v1324, 15
        %v1453 = vpop.permute.xlu0 %1452
        %1454 = vrot.lane.b32.xlu0 %v1325, 15
        %v1455 = vpop.permute.xlu0 %1454
        %1456 = vrot.lane.b32.xlu0 %v1326, 15
        %v1457 = vpop.permute.xlu0 %1456
        %1458 = vrot.lane.b32.xlu0 %v1327, 15
        %v1459 = vpop.permute.xlu0 %1458
        %1460 = vrot.lane.b32.xlu0 %v1328, 15
        %v1461 = vpop.permute.xlu0 %1460
        %1462 = vrot.lane.b32.xlu0 %v1329, 15
        %v1463 = vpop.permute.xlu0 %1462
        %1464 = vrot.lane.b32.xlu0 %v1330, 15
        %v1465 = vpop.permute.xlu0 %1464
        %1466 = vrot.lane.b32.xlu0 %v1331, 15
        %v1467 = vpop.permute.xlu0 %1466
        %1468 = vrot.lane.b32.xlu0 %v1332, 15
        %v1469 = vpop.permute.xlu0 %1468
        %1470 = vrot.lane.b32.xlu0 %v1333, 15
        %v1471 = vpop.permute.xlu0 %1470
        %1472 = vrot.lane.b32.xlu0 %v1334, 15
        %v1473 = vpop.permute.xlu0 %1472
        %1474 = vrot.lane.b32.xlu0 %v1335, 15
        %v1475 = vpop.permute.xlu0 %1474
        %1476 = vrot.lane.b32.xlu0 %v1336, 15
        %v1477 = vpop.permute.xlu0 %1476
        %1478 = vrot.lane.b32.xlu0 %v1337, 15
        %v1479 = vpop.permute.xlu0 %1478
        %1480 = vrot.lane.b32.xlu0 %v1338, 15
        %v1481 = vpop.permute.xlu0 %1480
        %1482 = vrot.lane.b32.xlu0 %v1339, 15
        %v1483 = vpop.permute.xlu0 %1482
        %vm1484 = vcmask 121856
        %v1485 = vsel %vm1484, %v1405, %v1407
        %v1486 = vsel %vm1484, %v1407, %v1409
        %v1487 = vsel %vm1484, %v1409, %v1411
        %v1488 = vsel %vm1484, %v1411, %v1413
        %v1489 = vsel %vm1484, %v1415, %v1417
        %v1490 = vsel %vm1484, %v1417, %v1419
        %v1491 = vsel %vm1484, %v1419, %v1421
        %v1492 = vsel %vm1484, %v1421, %v1423
        %v1493 = vsel %vm1484, %v1425, %v1427
        %v1494 = vsel %vm1484, %v1427, %v1429
        %v1495 = vsel %vm1484, %v1429, %v1431
        %v1496 = vsel %vm1484, %v1431, %v1433
        %v1497 = vsel %vm1484, %v1435, %v1437
        %v1498 = vsel %vm1484, %v1437, %v1439
        %v1499 = vsel %vm1484, %v1439, %v1441
        %v1500 = vsel %vm1484, %v1441, %v1443
        %v1501 = vsel %vm1484, %v1445, %v1447
        %v1502 = vsel %vm1484, %v1447, %v1449
        %v1503 = vsel %vm1484, %v1449, %v1451
        %v1504 = vsel %vm1484, %v1451, %v1453
        %v1505 = vsel %vm1484, %v1455, %v1457
        %v1506 = vsel %vm1484, %v1457, %v1459
        %v1507 = vsel %vm1484, %v1459, %v1461
        %v1508 = vsel %vm1484, %v1461, %v1463
        %v1509 = vsel %vm1484, %v1465, %v1467
        %v1510 = vsel %vm1484, %v1467, %v1469
        %v1511 = vsel %vm1484, %v1469, %v1471
        %v1512 = vsel %vm1484, %v1471, %v1473
        %v1513 = vsel %vm1484, %v1475, %v1477
        %v1514 = vsel %vm1484, %v1477, %v1479
        %v1515 = vsel %vm1484, %v1479, %v1481
        %v1516 = vsel %vm1484, %v1481, %v1483
        %v1549 = vsel %vm1360, %v1485, 0.0
        %v1550 = vsel %vm1361, %v1486, 0.0
        %v1551 = vsel %vm1362, %v1487, 0.0
        %v1552 = vsel %vm1363, %v1488, 0.0
        %v1553 = vsel %vm1360, %v1489, 0.0
        %v1554 = vsel %vm1361, %v1490, 0.0
        %v1555 = vsel %vm1362, %v1491, 0.0
        %v1556 = vsel %vm1363, %v1492, 0.0
        %v1557 = vsel %vm1360, %v1493, 0.0
        %v1558 = vsel %vm1361, %v1494, 0.0
        %v1559 = vsel %vm1362, %v1495, 0.0
        %v1560 = vsel %vm1363, %v1496, 0.0
        %v1561 = vsel %vm1360, %v1497, 0.0
        %v1562 = vsel %vm1361, %v1498, 0.0
        %v1563 = vsel %vm1362, %v1499, 0.0
        %v1564 = vsel %vm1363, %v1500, 0.0
        %v1565 = vsel %vm1360, %v1501, 0.0
        %v1566 = vsel %vm1361, %v1502, 0.0
        %v1567 = vsel %vm1362, %v1503, 0.0
        %v1568 = vsel %vm1363, %v1504, 0.0
        %v1569 = vsel %vm1360, %v1505, 0.0
        %v1570 = vsel %vm1361, %v1506, 0.0
        %v1571 = vsel %vm1362, %v1507, 0.0
        %v1572 = vsel %vm1363, %v1508, 0.0
        %v1573 = vsel %vm1360, %v1509, 0.0
        %v1574 = vsel %vm1361, %v1510, 0.0
        %v1575 = vsel %vm1362, %v1511, 0.0
        %v1576 = vsel %vm1363, %v1512, 0.0
        %v1577 = vsel %vm1360, %v1513, 0.0
        %v1578 = vsel %vm1361, %v1514, 0.0
        %v1579 = vsel %vm1362, %v1515, 0.0
        %v1580 = vsel %vm1363, %v1516, 0.0
        %1581 = vst [vmem:[#allocation3 + $0x200] sm:$0xff] %v1549
        %1582 = vst [vmem:[#allocation3 + $0x208] sm:$0xff] %v1550
        %1583 = vst [vmem:[#allocation3 + $0x210] sm:$0xff] %v1551
        %1584 = vst [vmem:[#allocation3 + $0x218] sm:$0xff] %v1552
        %1585 = vst [vmem:[#allocation3 + $0x220] sm:$0xff] %v1553
        %1586 = vst [vmem:[#allocation3 + $0x228] sm:$0xff] %v1554
        %1587 = vst [vmem:[#allocation3 + $0x230] sm:$0xff] %v1555
        %1588 = vst [vmem:[#allocation3 + $0x238] sm:$0xff] %v1556
        %1589 = vst [vmem:[#allocation3 + $0x240] sm:$0xff] %v1557
        %1590 = vst [vmem:[#allocation3 + $0x248] sm:$0xff] %v1558
        %1591 = vst [vmem:[#allocation3 + $0x250] sm:$0xff] %v1559
        %1592 = vst [vmem:[#allocation3 + $0x258] sm:$0xff] %v1560
        %1593 = vst [vmem:[#allocation3 + $0x260] sm:$0xff] %v1561
        %1594 = vst [vmem:[#allocation3 + $0x268] sm:$0xff] %v1562
        %1595 = vst [vmem:[#allocation3 + $0x270] sm:$0xff] %v1563
        %1596 = vst [vmem:[#allocation3 + $0x278] sm:$0xff] %v1564
        %1597 = vst [vmem:[#allocation3 + $0x280] sm:$0xff] %v1565
        %1598 = vst [vmem:[#allocation3 + $0x288] sm:$0xff] %v1566
        %1599 = vst [vmem:[#allocation3 + $0x290] sm:$0xff] %v1567
        %1600 = vst [vmem:[#allocation3 + $0x298] sm:$0xff] %v1568
        %1601 = vst [vmem:[#allocation3 + $0x2a0] sm:$0xff] %v1569
        %1602 = vst [vmem:[#allocation3 + $0x2a8] sm:$0xff] %v1570
        %1603 = vst [vmem:[#allocation3 + $0x2b0] sm:$0xff] %v1571
        %1604 = vst [vmem:[#allocation3 + $0x2b8] sm:$0xff] %v1572
        %1605 = vst [vmem:[#allocation3 + $0x2c0] sm:$0xff] %v1573
        %1606 = vst [vmem:[#allocation3 + $0x2c8] sm:$0xff] %v1574
        %1607 = vst [vmem:[#allocation3 + $0x2d0] sm:$0xff] %v1575
        %1608 = vst [vmem:[#allocation3 + $0x2d8] sm:$0xff] %v1576
        %1609 = vst [vmem:[#allocation3 + $0x2e0] sm:$0xff] %v1577
        %1610 = vst [vmem:[#allocation3 + $0x2e8] sm:$0xff] %v1578
        %1611 = vst [vmem:[#allocation3 + $0x2f0] sm:$0xff] %v1579
        %1612 = vst [vmem:[#allocation3 + $0x2f8] sm:$0xff] %v1580
        %v1613 = vld [vmem:[#allocation2] sm:$0xff]
        %v1614 = vld [vmem:[#allocation2 + $0x8] sm:$0xff]
        %v1615 = vld [vmem:[#allocation2 + $0x10] sm:$0xff]
        %v1616 = vld [vmem:[#allocation2 + $0x18] sm:$0xff]
        %v1617 = vld [vmem:[#allocation2 + $0x20] sm:$0xff]
        %v1618 = vld [vmem:[#allocation2 + $0x30] sm:$0xff]
        %v1619 = vld [vmem:[#allocation2 + $0x38] sm:$0xff]
        %v1620 = vld [vmem:[#allocation2 + $0x40] sm:$0xff]
        %v1621 = vld [vmem:[#allocation2 + $0x48] sm:$0xff]
        %v1622 = vld [vmem:[#allocation2 + $0x50] sm:$0xff]
        %v1623 = vld [vmem:[#allocation2 + $0x60] sm:$0xff]
        %v1624 = vld [vmem:[#allocation2 + $0x68] sm:$0xff]
        %v1625 = vld [vmem:[#allocation2 + $0x70] sm:$0xff]
        %v1626 = vld [vmem:[#allocation2 + $0x78] sm:$0xff]
        %v1627 = vld [vmem:[#allocation2 + $0x80] sm:$0xff]
        %v1628 = vld [vmem:[#allocation2 + $0x90] sm:$0xff]
        %v1629 = vld [vmem:[#allocation2 + $0x98] sm:$0xff]
        %v1630 = vld [vmem:[#allocation2 + $0xa0] sm:$0xff]
        %v1631 = vld [vmem:[#allocation2 + $0xa8] sm:$0xff]
        %v1632 = vld [vmem:[#allocation2 + $0xb0] sm:$0xff]
        %v1633 = vld [vmem:[#allocation2 + $0xc0] sm:$0xff]
        %v1634 = vld [vmem:[#allocation2 + $0xc8] sm:$0xff]
        %v1635 = vld [vmem:[#allocation2 + $0xd0] sm:$0xff]
        %v1636 = vld [vmem:[#allocation2 + $0xd8] sm:$0xff]
        %v1637 = vld [vmem:[#allocation2 + $0xe0] sm:$0xff]
        %v1638 = vld [vmem:[#allocation2 + $0xf0] sm:$0xff]
        %v1639 = vld [vmem:[#allocation2 + $0xf8] sm:$0xff]
        %v1640 = vld [vmem:[#allocation2 + $0x100] sm:$0xff]
        %v1641 = vld [vmem:[#allocation2 + $0x108] sm:$0xff]
        %v1642 = vld [vmem:[#allocation2 + $0x110] sm:$0xff]
        %v1643 = vld [vmem:[#allocation2 + $0x120] sm:$0xff]
        %v1644 = vld [vmem:[#allocation2 + $0x128] sm:$0xff]
        %v1645 = vld [vmem:[#allocation2 + $0x130] sm:$0xff]
        %v1646 = vld [vmem:[#allocation2 + $0x138] sm:$0xff]
        %v1647 = vld [vmem:[#allocation2 + $0x140] sm:$0xff]
        %v1648 = vld [vmem:[#allocation2 + $0x150] sm:$0xff]
        %v1649 = vld [vmem:[#allocation2 + $0x158] sm:$0xff]
        %v1650 = vld [vmem:[#allocation2 + $0x160] sm:$0xff]
        %v1651 = vld [vmem:[#allocation2 + $0x168] sm:$0xff]
        %v1652 = vld [vmem:[#allocation2 + $0x170] sm:$0xff]
        %s1653 = scalar_lea.vmem [#allocation5], 3
        %v1654 = vld [vmem:[%s1653] ss:$8 sm:$0xf]
        %vm1655 = vcmp.gt.f32.partialorder %v1654, 0.5
        %v1656 = vsel %vm1655, 1, 0
        %v1657 = vlaneseq
        %v1658 = vshrl.u32 %v1657, 7
        %v1659 = vsub.s32 0, %v1658
        %v1660 = vrot.slane %v1656, %v1659
        %v1661 = vlaneseq
        %v1662 = vshrl.u32 %v1661, 7
        %v1663 = vsub.s32 1, %v1662
        %v1664 = vrot.slane %v1656, %v1663
        %v1665 = vlaneseq
        %v1666 = vshrl.u32 %v1665, 7
        %v1667 = vsub.s32 2, %v1666
        %v1668 = vrot.slane %v1656, %v1667
        %v1669 = vlaneseq
        %v1670 = vshrl.u32 %v1669, 7
        %v1671 = vsub.s32 3, %v1670
        %v1672 = vrot.slane %v1656, %v1671
        %vm1673 = vcmp.eq.s32.totalorder %v1660, 1
        %vm1674 = vcmp.eq.s32.totalorder %v1664, 1
        %vm1675 = vcmp.eq.s32.totalorder %v1668, 1
        %vm1676 = vcmp.eq.s32.totalorder %v1672, 1
        %1717 = vrot.lane.b32.xlu0 %v1613, 1
        %v1718 = vpop.permute.xlu0 %1717
        %1719 = vrot.lane.b32.xlu0 %v1614, 1
        %v1720 = vpop.permute.xlu0 %1719
        %1721 = vrot.lane.b32.xlu0 %v1615, 1
        %v1722 = vpop.permute.xlu0 %1721
        %1723 = vrot.lane.b32.xlu0 %v1616, 1
        %v1724 = vpop.permute.xlu0 %1723
        %1725 = vrot.lane.b32.xlu0 %v1617, 1
        %v1726 = vpop.permute.xlu0 %1725
        %1727 = vrot.lane.b32.xlu0 %v1618, 1
        %v1728 = vpop.permute.xlu0 %1727
        %1729 = vrot.lane.b32.xlu0 %v1619, 1
        %v1730 = vpop.permute.xlu0 %1729
        %1731 = vrot.lane.b32.xlu0 %v1620, 1
        %v1732 = vpop.permute.xlu0 %1731
        %1733 = vrot.lane.b32.xlu0 %v1621, 1
        %v1734 = vpop.permute.xlu0 %1733
        %1735 = vrot.lane.b32.xlu0 %v1622, 1
        %v1736 = vpop.permute.xlu0 %1735
        %1737 = vrot.lane.b32.xlu0 %v1623, 1
        %v1738 = vpop.permute.xlu0 %1737
        %1739 = vrot.lane.b32.xlu0 %v1624, 1
        %v1740 = vpop.permute.xlu0 %1739
        %1741 = vrot.lane.b32.xlu0 %v1625, 1
        %v1742 = vpop.permute.xlu0 %1741
        %1743 = vrot.lane.b32.xlu0 %v1626, 1
        %v1744 = vpop.permute.xlu0 %1743
        %1745 = vrot.lane.b32.xlu0 %v1627, 1
        %v1746 = vpop.permute.xlu0 %1745
        %1747 = vrot.lane.b32.xlu0 %v1628, 1
        %v1748 = vpop.permute.xlu0 %1747
        %1749 = vrot.lane.b32.xlu0 %v1629, 1
        %v1750 = vpop.permute.xlu0 %1749
        %1751 = vrot.lane.b32.xlu0 %v1630, 1
        %v1752 = vpop.permute.xlu0 %1751
        %1753 = vrot.lane.b32.xlu0 %v1631, 1
        %v1754 = vpop.permute.xlu0 %1753
        %1755 = vrot.lane.b32.xlu0 %v1632, 1
        %v1756 = vpop.permute.xlu0 %1755
        %1757 = vrot.lane.b32.xlu0 %v1633, 1
        %v1758 = vpop.permute.xlu0 %1757
        %1759 = vrot.lane.b32.xlu0 %v1634, 1
        %v1760 = vpop.permute.xlu0 %1759
        %1761 = vrot.lane.b32.xlu0 %v1635, 1
        %v1762 = vpop.permute.xlu0 %1761
        %1763 = vrot.lane.b32.xlu0 %v1636, 1
        %v1764 = vpop.permute.xlu0 %1763
        %1765 = vrot.lane.b32.xlu0 %v1637, 1
        %v1766 = vpop.permute.xlu0 %1765
        %1767 = vrot.lane.b32.xlu0 %v1638, 1
        %v1768 = vpop.permute.xlu0 %1767
        %1769 = vrot.lane.b32.xlu0 %v1639, 1
        %v1770 = vpop.permute.xlu0 %1769
        %1771 = vrot.lane.b32.xlu0 %v1640, 1
        %v1772 = vpop.permute.xlu0 %1771
        %1773 = vrot.lane.b32.xlu0 %v1641, 1
        %v1774 = vpop.permute.xlu0 %1773
        %1775 = vrot.lane.b32.xlu0 %v1642, 1
        %v1776 = vpop.permute.xlu0 %1775
        %1777 = vrot.lane.b32.xlu0 %v1643, 1
        %v1778 = vpop.permute.xlu0 %1777
        %1779 = vrot.lane.b32.xlu0 %v1644, 1
        %v1780 = vpop.permute.xlu0 %1779
        %1781 = vrot.lane.b32.xlu0 %v1645, 1
        %v1782 = vpop.permute.xlu0 %1781
        %1783 = vrot.lane.b32.xlu0 %v1646, 1
        %v1784 = vpop.permute.xlu0 %1783
        %1785 = vrot.lane.b32.xlu0 %v1647, 1
        %v1786 = vpop.permute.xlu0 %1785
        %1787 = vrot.lane.b32.xlu0 %v1648, 1
        %v1788 = vpop.permute.xlu0 %1787
        %1789 = vrot.lane.b32.xlu0 %v1649, 1
        %v1790 = vpop.permute.xlu0 %1789
        %1791 = vrot.lane.b32.xlu0 %v1650, 1
        %v1792 = vpop.permute.xlu0 %1791
        %1793 = vrot.lane.b32.xlu0 %v1651, 1
        %v1794 = vpop.permute.xlu0 %1793
        %1795 = vrot.lane.b32.xlu0 %v1652, 1
        %v1796 = vpop.permute.xlu0 %1795
        %vm1797 = vcmask 7168
        %v1798 = vsel %vm1797, %v1718, %v1720
        %v1799 = vsel %vm1797, %v1720, %v1722
        %v1800 = vsel %vm1797, %v1722, %v1724
        %v1801 = vsel %vm1797, %v1724, %v1726
        %v1802 = vsel %vm1797, %v1728, %v1730
        %v1803 = vsel %vm1797, %v1730, %v1732
        %v1804 = vsel %vm1797, %v1732, %v1734
        %v1805 = vsel %vm1797, %v1734, %v1736
        %v1806 = vsel %vm1797, %v1738, %v1740
        %v1807 = vsel %vm1797, %v1740, %v1742
        %v1808 = vsel %vm1797, %v1742, %v1744
        %v1809 = vsel %vm1797, %v1744, %v1746
        %v1810 = vsel %vm1797, %v1748, %v1750
        %v1811 = vsel %vm1797, %v1750, %v1752
        %v1812 = vsel %vm1797, %v1752, %v1754
        %v1813 = vsel %vm1797, %v1754, %v1756
        %v1814 = vsel %vm1797, %v1758, %v1760
        %v1815 = vsel %vm1797, %v1760, %v1762
        %v1816 = vsel %vm1797, %v1762, %v1764
        %v1817 = vsel %vm1797, %v1764, %v1766
        %v1818 = vsel %vm1797, %v1768, %v1770
        %v1819 = vsel %vm1797, %v1770, %v1772
        %v1820 = vsel %vm1797, %v1772, %v1774
        %v1821 = vsel %vm1797, %v1774, %v1776
        %v1822 = vsel %vm1797, %v1778, %v1780
        %v1823 = vsel %vm1797, %v1780, %v1782
        %v1824 = vsel %vm1797, %v1782, %v1784
        %v1825 = vsel %vm1797, %v1784, %v1786
        %v1826 = vsel %vm1797, %v1788, %v1790
        %v1827 = vsel %vm1797, %v1790, %v1792
        %v1828 = vsel %vm1797, %v1792, %v1794
        %v1829 = vsel %vm1797, %v1794, %v1796
        %v1862 = vsel %vm1673, %v1798, 0.0
        %v1863 = vsel %vm1674, %v1799, 0.0
        %v1864 = vsel %vm1675, %v1800, 0.0
        %v1865 = vsel %vm1676, %v1801, 0.0
        %v1866 = vsel %vm1673, %v1802, 0.0
        %v1867 = vsel %vm1674, %v1803, 0.0
        %v1868 = vsel %vm1675, %v1804, 0.0
        %v1869 = vsel %vm1676, %v1805, 0.0
        %v1870 = vsel %vm1673, %v1806, 0.0
        %v1871 = vsel %vm1674, %v1807, 0.0
        %v1872 = vsel %vm1675, %v1808, 0.0
        %v1873 = vsel %vm1676, %v1809, 0.0
        %v1874 = vsel %vm1673, %v1810, 0.0
        %v1875 = vsel %vm1674, %v1811, 0.0
        %v1876 = vsel %vm1675, %v1812, 0.0
        %v1877 = vsel %vm1676, %v1813, 0.0
        %v1878 = vsel %vm1673, %v1814, 0.0
        %v1879 = vsel %vm1674, %v1815, 0.0
        %v1880 = vsel %vm1675, %v1816, 0.0
        %v1881 = vsel %vm1676, %v1817, 0.0
        %v1882 = vsel %vm1673, %v1818, 0.0
        %v1883 = vsel %vm1674, %v1819, 0.0
        %v1884 = vsel %vm1675, %v1820, 0.0
        %v1885 = vsel %vm1676, %v1821, 0.0
        %v1886 = vsel %vm1673, %v1822, 0.0
        %v1887 = vsel %vm1674, %v1823, 0.0
        %v1888 = vsel %vm1675, %v1824, 0.0
        %v1889 = vsel %vm1676, %v1825, 0.0
        %v1890 = vsel %vm1673, %v1826, 0.0
        %v1891 = vsel %vm1674, %v1827, 0.0
        %v1892 = vsel %vm1675, %v1828, 0.0
        %v1893 = vsel %vm1676, %v1829, 0.0
        %1894 = vst [vmem:[#allocation3 + $0x300] sm:$0xff] %v1862
        %1895 = vst [vmem:[#allocation3 + $0x308] sm:$0xff] %v1863
        %1896 = vst [vmem:[#allocation3 + $0x310] sm:$0xff] %v1864
        %1897 = vst [vmem:[#allocation3 + $0x318] sm:$0xff] %v1865
        %1898 = vst [vmem:[#allocation3 + $0x320] sm:$0xff] %v1866
        %1899 = vst [vmem:[#allocation3 + $0x328] sm:$0xff] %v1867
        %1900 = vst [vmem:[#allocation3 + $0x330] sm:$0xff] %v1868
        %1901 = vst [vmem:[#allocation3 + $0x338] sm:$0xff] %v1869
        %1902 = vst [vmem:[#allocation3 + $0x340] sm:$0xff] %v1870
        %1903 = vst [vmem:[#allocation3 + $0x348] sm:$0xff] %v1871
        %1904 = vst [vmem:[#allocation3 + $0x350] sm:$0xff] %v1872
        %1905 = vst [vmem:[#allocation3 + $0x358] sm:$0xff] %v1873
        %1906 = vst [vmem:[#allocation3 + $0x360] sm:$0xff] %v1874
        %1907 = vst [vmem:[#allocation3 + $0x368] sm:$0xff] %v1875
        %1908 = vst [vmem:[#allocation3 + $0x370] sm:$0xff] %v1876
        %1909 = vst [vmem:[#allocation3 + $0x378] sm:$0xff] %v1877
        %1910 = vst [vmem:[#allocation3 + $0x380] sm:$0xff] %v1878
        %1911 = vst [vmem:[#allocation3 + $0x388] sm:$0xff] %v1879
        %1912 = vst [vmem:[#allocation3 + $0x390] sm:$0xff] %v1880
        %1913 = vst [vmem:[#allocation3 + $0x398] sm:$0xff] %v1881
        %1914 = vst [vmem:[#allocation3 + $0x3a0] sm:$0xff] %v1882
        %1915 = vst [vmem:[#allocation3 + $0x3a8] sm:$0xff] %v1883
        %1916 = vst [vmem:[#allocation3 + $0x3b0] sm:$0xff] %v1884
        %1917 = vst [vmem:[#allocation3 + $0x3b8] sm:$0xff] %v1885
        %1918 = vst [vmem:[#allocation3 + $0x3c0] sm:$0xff] %v1886
        %1919 = vst [vmem:[#allocation3 + $0x3c8] sm:$0xff] %v1887
        %1920 = vst [vmem:[#allocation3 + $0x3d0] sm:$0xff] %v1888
        %1921 = vst [vmem:[#allocation3 + $0x3d8] sm:$0xff] %v1889
        %1922 = vst [vmem:[#allocation3 + $0x3e0] sm:$0xff] %v1890
        %1923 = vst [vmem:[#allocation3 + $0x3e8] sm:$0xff] %v1891
        %1924 = vst [vmem:[#allocation3 + $0x3f0] sm:$0xff] %v1892
        %1925 = vst [vmem:[#allocation3 + $0x3f8] sm:$0xff] %v1893
        %v1926 = vld [vmem:[#allocation2 + $0x8] sm:$0xff]
        %v1927 = vld [vmem:[#allocation2 + $0x10] sm:$0xff]
        %v1928 = vld [vmem:[#allocation2 + $0x18] sm:$0xff]
        %v1929 = vld [vmem:[#allocation2 + $0x20] sm:$0xff]
        %v1930 = vld [vmem:[#allocation2 + $0x38] sm:$0xff]
        %v1931 = vld [vmem:[#allocation2 + $0x40] sm:$0xff]
        %v1932 = vld [vmem:[#allocation2 + $0x48] sm:$0xff]
        %v1933 = vld [vmem:[#allocation2 + $0x50] sm:$0xff]
        %v1934 = vld [vmem:[#allocation2 + $0x68] sm:$0xff]
        %v1935 = vld [vmem:[#allocation2 + $0x70] sm:$0xff]
        %v1936 = vld [vmem:[#allocation2 + $0x78] sm:$0xff]
        %v1937 = vld [vmem:[#allocation2 + $0x80] sm:$0xff]
        %v1938 = vld [vmem:[#allocation2 + $0x98] sm:$0xff]
        %v1939 = vld [vmem:[#allocation2 + $0xa0] sm:$0xff]
        %v1940 = vld [vmem:[#allocation2 + $0xa8] sm:$0xff]
        %v1941 = vld [vmem:[#allocation2 + $0xb0] sm:$0xff]
        %v1942 = vld [vmem:[#allocation2 + $0xc8] sm:$0xff]
        %v1943 = vld [vmem:[#allocation2 + $0xd0] sm:$0xff]
        %v1944 = vld [vmem:[#allocation2 + $0xd8] sm:$0xff]
        %v1945 = vld [vmem:[#allocation2 + $0xe0] sm:$0xff]
        %v1946 = vld [vmem:[#allocation2 + $0xf8] sm:$0xff]
        %v1947 = vld [vmem:[#allocation2 + $0x100] sm:$0xff]
        %v1948 = vld [vmem:[#allocation2 + $0x108] sm:$0xff]
        %v1949 = vld [vmem:[#allocation2 + $0x110] sm:$0xff]
        %v1950 = vld [vmem:[#allocation2 + $0x128] sm:$0xff]
        %v1951 = vld [vmem:[#allocation2 + $0x130] sm:$0xff]
        %v1952 = vld [vmem:[#allocation2 + $0x138] sm:$0xff]
        %v1953 = vld [vmem:[#allocation2 + $0x140] sm:$0xff]
        %v1954 = vld [vmem:[#allocation2 + $0x158] sm:$0xff]
        %v1955 = vld [vmem:[#allocation2 + $0x160] sm:$0xff]
        %v1956 = vld [vmem:[#allocation2 + $0x168] sm:$0xff]
        %v1957 = vld [vmem:[#allocation2 + $0x170] sm:$0xff]
        %s1958 = scalar_lea.vmem [#allocation5], 4
        %v1959 = vld [vmem:[%s1958] ss:$8 sm:$0xf]
        %vm1960 = vcmp.gt.f32.partialorder %v1959, 0.5
        %v1961 = vsel %vm1960, 1, 0
        %v1962 = vlaneseq
        %v1963 = vshrl.u32 %v1962, 7
        %v1964 = vsub.s32 0, %v1963
        %v1965 = vrot.slane %v1961, %v1964
        %v1966 = vlaneseq
        %v1967 = vshrl.u32 %v1966, 7
        %v1968 = vsub.s32 1, %v1967
        %v1969 = vrot.slane %v1961, %v1968
        %v1970 = vlaneseq
        %v1971 = vshrl.u32 %v1970, 7
        %v1972 = vsub.s32 2, %v1971
        %v1973 = vrot.slane %v1961, %v1972
        %v1974 = vlaneseq
        %v1975 = vshrl.u32 %v1974, 7
        %v1976 = vsub.s32 3, %v1975
        %v1977 = vrot.slane %v1961, %v1976
        %vm1978 = vcmp.eq.s32.totalorder %v1965, 1
        %vm1979 = vcmp.eq.s32.totalorder %v1969, 1
        %vm1980 = vcmp.eq.s32.totalorder %v1973, 1
        %vm1981 = vcmp.eq.s32.totalorder %v1977, 1
        %v1982 = vsel %vm1978, %v1926, 0.0
        %v1983 = vsel %vm1979, %v1927, 0.0
        %v1984 = vsel %vm1980, %v1928, 0.0
        %v1985 = vsel %vm1981, %v1929, 0.0
        %v1986 = vsel %vm1978, %v1930, 0.0
        %v1987 = vsel %vm1979, %v1931, 0.0
        %v1988 = vsel %vm1980, %v1932, 0.0
        %v1989 = vsel %vm1981, %v1933, 0.0
        %v1990 = vsel %vm1978, %v1934, 0.0
        %v1991 = vsel %vm1979, %v1935, 0.0
        %v1992 = vsel %vm1980, %v1936, 0.0
        %v1993 = vsel %vm1981, %v1937, 0.0
        %v1994 = vsel %vm1978, %v1938, 0.0
        %v1995 = vsel %vm1979, %v1939, 0.0
        %v1996 = vsel %vm1980, %v1940, 0.0
        %v1997 = vsel %vm1981, %v1941, 0.0
        %v1998 = vsel %vm1978, %v1942, 0.0
        %v1999 = vsel %vm1979, %v1943, 0.0
        %v2000 = vsel %vm1980, %v1944, 0.0
        %v2001 = vsel %vm1981, %v1945, 0.0
        %v2002 = vsel %vm1978, %v1946, 0.0
        %v2003 = vsel %vm1979, %v1947, 0.0
        %v2004 = vsel %vm1980, %v1948, 0.0
        %v2005 = vsel %vm1981, %v1949, 0.0
        %v2006 = vsel %vm1978, %v1950, 0.0
        %v2007 = vsel %vm1979, %v1951, 0.0
        %v2008 = vsel %vm1980, %v1952, 0.0
        %v2009 = vsel %vm1981, %v1953, 0.0
        %v2010 = vsel %vm1978, %v1954, 0.0
        %v2011 = vsel %vm1979, %v1955, 0.0
        %v2012 = vsel %vm1980, %v1956, 0.0
        %v2013 = vsel %vm1981, %v1957, 0.0
        %2014 = vst [vmem:[#allocation3 + $0x400] sm:$0xff] %v1982
        %2015 = vst [vmem:[#allocation3 + $0x408] sm:$0xff] %v1983
        %2016 = vst [vmem:[#allocation3 + $0x410] sm:$0xff] %v1984
        %2017 = vst [vmem:[#allocation3 + $0x418] sm:$0xff] %v1985
        %2018 = vst [vmem:[#allocation3 + $0x420] sm:$0xff] %v1986
        %2019 = vst [vmem:[#allocation3 + $0x428] sm:$0xff] %v1987
        %2020 = vst [vmem:[#allocation3 + $0x430] sm:$0xff] %v1988
        %2021 = vst [vmem:[#allocation3 + $0x438] sm:$0xff] %v1989
        %2022 = vst [vmem:[#allocation3 + $0x440] sm:$0xff] %v1990
        %2023 = vst [vmem:[#allocation3 + $0x448] sm:$0xff] %v1991
        %2024 = vst [vmem:[#allocation3 + $0x450] sm:$0xff] %v1992
        %2025 = vst [vmem:[#allocation3 + $0x458] sm:$0xff] %v1993
        %2026 = vst [vmem:[#allocation3 + $0x460] sm:$0xff] %v1994
        %2027 = vst [vmem:[#allocation3 + $0x468] sm:$0xff] %v1995
        %2028 = vst [vmem:[#allocation3 + $0x470] sm:$0xff] %v1996
        %2029 = vst [vmem:[#allocation3 + $0x478] sm:$0xff] %v1997
        %2030 = vst [vmem:[#allocation3 + $0x480] sm:$0xff] %v1998
        %2031 = vst [vmem:[#allocation3 + $0x488] sm:$0xff] %v1999
        %2032 = vst [vmem:[#allocation3 + $0x490] sm:$0xff] %v2000
        %2033 = vst [vmem:[#allocation3 + $0x498] sm:$0xff] %v2001
        %2034 = vst [vmem:[#allocation3 + $0x4a0] sm:$0xff] %v2002
        %2035 = vst [vmem:[#allocation3 + $0x4a8] sm:$0xff] %v2003
        %2036 = vst [vmem:[#allocation3 + $0x4b0] sm:$0xff] %v2004
        %2037 = vst [vmem:[#allocation3 + $0x4b8] sm:$0xff] %v2005
        %2038 = vst [vmem:[#allocation3 + $0x4c0] sm:$0xff] %v2006
        %2039 = vst [vmem:[#allocation3 + $0x4c8] sm:$0xff] %v2007
        %2040 = vst [vmem:[#allocation3 + $0x4d0] sm:$0xff] %v2008
        %2041 = vst [vmem:[#allocation3 + $0x4d8] sm:$0xff] %v2009
        %2042 = vst [vmem:[#allocation3 + $0x4e0] sm:$0xff] %v2010
        %2043 = vst [vmem:[#allocation3 + $0x4e8] sm:$0xff] %v2011
        %2044 = vst [vmem:[#allocation3 + $0x4f0] sm:$0xff] %v2012
        %2045 = vst [vmem:[#allocation3 + $0x4f8] sm:$0xff] %v2013
        %v2046 = vld [vmem:[#allocation2 + $0x8] sm:$0xff]
        %v2047 = vld [vmem:[#allocation2 + $0x10] sm:$0xff]
        %v2048 = vld [vmem:[#allocation2 + $0x18] sm:$0xff]
        %v2049 = vld [vmem:[#allocation2 + $0x20] sm:$0xff]
        %v2050 = vld [vmem:[#allocation2 + $0x28] sm:$0xff]
        %v2051 = vld [vmem:[#allocation2 + $0x38] sm:$0xff]
        %v2052 = vld [vmem:[#allocation2 + $0x40] sm:$0xff]
        %v2053 = vld [vmem:[#allocation2 + $0x48] sm:$0xff]
        %v2054 = vld [vmem:[#allocation2 + $0x50] sm:$0xff]
        %v2055 = vld [vmem:[#allocation2 + $0x58] sm:$0xff]
        %v2056 = vld [vmem:[#allocation2 + $0x68] sm:$0xff]
        %v2057 = vld [vmem:[#allocation2 + $0x70] sm:$0xff]
        %v2058 = vld [vmem:[#allocation2 + $0x78] sm:$0xff]
        %v2059 = vld [vmem:[#allocation2 + $0x80] sm:$0xff]
        %v2060 = vld [vmem:[#allocation2 + $0x88] sm:$0xff]
        %v2061 = vld [vmem:[#allocation2 + $0x98] sm:$0xff]
        %v2062 = vld [vmem:[#allocation2 + $0xa0] sm:$0xff]
        %v2063 = vld [vmem:[#allocation2 + $0xa8] sm:$0xff]
        %v2064 = vld [vmem:[#allocation2 + $0xb0] sm:$0xff]
        %v2065 = vld [vmem:[#allocation2 + $0xb8] sm:$0xff]
        %v2066 = vld [vmem:[#allocation2 + $0xc8] sm:$0xff]
        %v2067 = vld [vmem:[#allocation2 + $0xd0] sm:$0xff]
        %v2068 = vld [vmem:[#allocation2 + $0xd8] sm:$0xff]
        %v2069 = vld [vmem:[#allocation2 + $0xe0] sm:$0xff]
        %v2070 = vld [vmem:[#allocation2 + $0xe8] sm:$0xff]
        %v2071 = vld [vmem:[#allocation2 + $0xf8] sm:$0xff]
        %v2072 = vld [vmem:[#allocation2 + $0x100] sm:$0xff]
        %v2073 = vld [vmem:[#allocation2 + $0x108] sm:$0xff]
        %v2074 = vld [vmem:[#allocation2 + $0x110] sm:$0xff]
        %v2075 = vld [vmem:[#allocation2 + $0x118] sm:$0xff]
        %v2076 = vld [vmem:[#allocation2 + $0x128] sm:$0xff]
        %v2077 = vld [vmem:[#allocation2 + $0x130] sm:$0xff]
        %v2078 = vld [vmem:[#allocation2 + $0x138] sm:$0xff]
        %v2079 = vld [vmem:[#allocation2 + $0x140] sm:$0xff]
        %v2080 = vld [vmem:[#allocation2 + $0x148] sm:$0xff]
        %v2081 = vld [vmem:[#allocation2 + $0x158] sm:$0xff]
        %v2082 = vld [vmem:[#allocation2 + $0x160] sm:$0xff]
        %v2083 = vld [vmem:[#allocation2 + $0x168] sm:$0xff]
        %v2084 = vld [vmem:[#allocation2 + $0x170] sm:$0xff]
        %v2085 = vld [vmem:[#allocation2 + $0x178] sm:$0xff]
        %s2086 = scalar_lea.vmem [#allocation5], 5
        %v2087 = vld [vmem:[%s2086] ss:$8 sm:$0xf]
        %vm2088 = vcmp.gt.f32.partialorder %v2087, 0.5
        %v2089 = vsel %vm2088, 1, 0
        %v2090 = vlaneseq
        %v2091 = vshrl.u32 %v2090, 7
        %v2092 = vsub.s32 0, %v2091
        %v2093 = vrot.slane %v2089, %v2092
        %v2094 = vlaneseq
        %v2095 = vshrl.u32 %v2094, 7
        %v2096 = vsub.s32 1, %v2095
        %v2097 = vrot.slane %v2089, %v2096
        %v2098 = vlaneseq
        %v2099 = vshrl.u32 %v2098, 7
        %v2100 = vsub.s32 2, %v2099
        %v2101 = vrot.slane %v2089, %v2100
        %v2102 = vlaneseq
        %v2103 = vshrl.u32 %v2102, 7
        %v2104 = vsub.s32 3, %v2103
        %v2105 = vrot.slane %v2089, %v2104
        %vm2106 = vcmp.eq.s32.totalorder %v2093, 1
        %vm2107 = vcmp.eq.s32.totalorder %v2097, 1
        %vm2108 = vcmp.eq.s32.totalorder %v2101, 1
        %vm2109 = vcmp.eq.s32.totalorder %v2105, 1
        %2150 = vrot.lane.b32.xlu0 %v2046, 127
        %v2151 = vpop.permute.xlu0 %2150
        %2152 = vrot.lane.b32.xlu0 %v2047, 127
        %v2153 = vpop.permute.xlu0 %2152
        %2154 = vrot.lane.b32.xlu0 %v2048, 127
        %v2155 = vpop.permute.xlu0 %2154
        %2156 = vrot.lane.b32.xlu0 %v2049, 127
        %v2157 = vpop.permute.xlu0 %2156
        %2158 = vrot.lane.b32.xlu0 %v2050, 127
        %v2159 = vpop.permute.xlu0 %2158
        %2160 = vrot.lane.b32.xlu0 %v2051, 127
        %v2161 = vpop.permute.xlu0 %2160
        %2162 = vrot.lane.b32.xlu0 %v2052, 127
        %v2163 = vpop.permute.xlu0 %2162
        %2164 = vrot.lane.b32.xlu0 %v2053, 127
        %v2165 = vpop.permute.xlu0 %2164
        %2166 = vrot.lane.b32.xlu0 %v2054, 127
        %v2167 = vpop.permute.xlu0 %2166
        %2168 = vrot.lane.b32.xlu0 %v2055, 127
        %v2169 = vpop.permute.xlu0 %2168
        %2170 = vrot.lane.b32.xlu0 %v2056, 127
        %v2171 = vpop.permute.xlu0 %2170
        %2172 = vrot.lane.b32.xlu0 %v2057, 127
        %v2173 = vpop.permute.xlu0 %2172
        %2174 = vrot.lane.b32.xlu0 %v2058, 127
        %v2175 = vpop.permute.xlu0 %2174
        %2176 = vrot.lane.b32.xlu0 %v2059, 127
        %v2177 = vpop.permute.xlu0 %2176
        %2178 = vrot.lane.b32.xlu0 %v2060, 127
        %v2179 = vpop.permute.xlu0 %2178
        %2180 = vrot.lane.b32.xlu0 %v2061, 127
        %v2181 = vpop.permute.xlu0 %2180
        %2182 = vrot.lane.b32.xlu0 %v2062, 127
        %v2183 = vpop.permute.xlu0 %2182
        %2184 = vrot.lane.b32.xlu0 %v2063, 127
        %v2185 = vpop.permute.xlu0 %2184
        %2186 = vrot.lane.b32.xlu0 %v2064, 127
        %v2187 = vpop.permute.xlu0 %2186
        %2188 = vrot.lane.b32.xlu0 %v2065, 127
        %v2189 = vpop.permute.xlu0 %2188
        %2190 = vrot.lane.b32.xlu0 %v2066, 127
        %v2191 = vpop.permute.xlu0 %2190
        %2192 = vrot.lane.b32.xlu0 %v2067, 127
        %v2193 = vpop.permute.xlu0 %2192
        %2194 = vrot.lane.b32.xlu0 %v2068, 127
        %v2195 = vpop.permute.xlu0 %2194
        %2196 = vrot.lane.b32.xlu0 %v2069, 127
        %v2197 = vpop.permute.xlu0 %2196
        %2198 = vrot.lane.b32.xlu0 %v2070, 127
        %v2199 = vpop.permute.xlu0 %2198
        %2200 = vrot.lane.b32.xlu0 %v2071, 127
        %v2201 = vpop.permute.xlu0 %2200
        %2202 = vrot.lane.b32.xlu0 %v2072, 127
        %v2203 = vpop.permute.xlu0 %2202
        %2204 = vrot.lane.b32.xlu0 %v2073, 127
        %v2205 = vpop.permute.xlu0 %2204
        %2206 = vrot.lane.b32.xlu0 %v2074, 127
        %v2207 = vpop.permute.xlu0 %2206
        %2208 = vrot.lane.b32.xlu0 %v2075, 127
        %v2209 = vpop.permute.xlu0 %2208
        %2210 = vrot.lane.b32.xlu0 %v2076, 127
        %v2211 = vpop.permute.xlu0 %2210
        %2212 = vrot.lane.b32.xlu0 %v2077, 127
        %v2213 = vpop.permute.xlu0 %2212
        %2214 = vrot.lane.b32.xlu0 %v2078, 127
        %v2215 = vpop.permute.xlu0 %2214
        %2216 = vrot.lane.b32.xlu0 %v2079, 127
        %v2217 = vpop.permute.xlu0 %2216
        %2218 = vrot.lane.b32.xlu0 %v2080, 127
        %v2219 = vpop.permute.xlu0 %2218
        %2220 = vrot.lane.b32.xlu0 %v2081, 127
        %v2221 = vpop.permute.xlu0 %2220
        %2222 = vrot.lane.b32.xlu0 %v2082, 127
        %v2223 = vpop.permute.xlu0 %2222
        %2224 = vrot.lane.b32.xlu0 %v2083, 127
        %v2225 = vpop.permute.xlu0 %2224
        %2226 = vrot.lane.b32.xlu0 %v2084, 127
        %v2227 = vpop.permute.xlu0 %2226
        %2228 = vrot.lane.b32.xlu0 %v2085, 127
        %v2229 = vpop.permute.xlu0 %2228
        %vm2230 = vcmask 1039360
        %v2231 = vsel %vm2230, %v2151, %v2153
        %v2232 = vsel %vm2230, %v2153, %v2155
        %v2233 = vsel %vm2230, %v2155, %v2157
        %v2234 = vsel %vm2230, %v2157, %v2159
        %v2235 = vsel %vm2230, %v2161, %v2163
        %v2236 = vsel %vm2230, %v2163, %v2165
        %v2237 = vsel %vm2230, %v2165, %v2167
        %v2238 = vsel %vm2230, %v2167, %v2169
        %v2239 = vsel %vm2230, %v2171, %v2173
        %v2240 = vsel %vm2230, %v2173, %v2175
        %v2241 = vsel %vm2230, %v2175, %v2177
        %v2242 = vsel %vm2230, %v2177, %v2179
        %v2243 = vsel %vm2230, %v2181, %v2183
        %v2244 = vsel %vm2230, %v2183, %v2185
        %v2245 = vsel %vm2230, %v2185, %v2187
        %v2246 = vsel %vm2230, %v2187, %v2189
        %v2247 = vsel %vm2230, %v2191, %v2193
        %v2248 = vsel %vm2230, %v2193, %v2195
        %v2249 = vsel %vm2230, %v2195, %v2197
        %v2250 = vsel %vm2230, %v2197, %v2199
        %v2251 = vsel %vm2230, %v2201, %v2203
        %v2252 = vsel %vm2230, %v2203, %v2205
        %v2253 = vsel %vm2230, %v2205, %v2207
        %v2254 = vsel %vm2230, %v2207, %v2209
        %v2255 = vsel %vm2230, %v2211, %v2213
        %v2256 = vsel %vm2230, %v2213, %v2215
        %v2257 = vsel %vm2230, %v2215, %v2217
        %v2258 = vsel %vm2230, %v2217, %v2219
        %v2259 = vsel %vm2230, %v2221, %v2223
        %v2260 = vsel %vm2230, %v2223, %v2225
        %v2261 = vsel %vm2230, %v2225, %v2227
        %v2262 = vsel %vm2230, %v2227, %v2229
        %v2295 = vsel %vm2106, %v2231, 0.0
        %v2296 = vsel %vm2107, %v2232, 0.0
        %v2297 = vsel %vm2108, %v2233, 0.0
        %v2298 = vsel %vm2109, %v2234, 0.0
        %v2299 = vsel %vm2106, %v2235, 0.0
        %v2300 = vsel %vm2107, %v2236, 0.0
        %v2301 = vsel %vm2108, %v2237, 0.0
        %v2302 = vsel %vm2109, %v2238, 0.0
        %v2303 = vsel %vm2106, %v2239, 0.0
        %v2304 = vsel %vm2107, %v2240, 0.0
        %v2305 = vsel %vm2108, %v2241, 0.0
        %v2306 = vsel %vm2109, %v2242, 0.0
        %v2307 = vsel %vm2106, %v2243, 0.0
        %v2308 = vsel %vm2107, %v2244, 0.0
        %v2309 = vsel %vm2108, %v2245, 0.0
        %v2310 = vsel %vm2109, %v2246, 0.0
        %v2311 = vsel %vm2106, %v2247, 0.0
        %v2312 = vsel %vm2107, %v2248, 0.0
        %v2313 = vsel %vm2108, %v2249, 0.0
        %v2314 = vsel %vm2109, %v2250, 0.0
        %v2315 = vsel %vm2106, %v2251, 0.0
        %v2316 = vsel %vm2107, %v2252, 0.0
        %v2317 = vsel %vm2108, %v2253, 0.0
        %v2318 = vsel %vm2109, %v2254, 0.0
        %v2319 = vsel %vm2106, %v2255, 0.0
        %v2320 = vsel %vm2107, %v2256, 0.0
        %v2321 = vsel %vm2108, %v2257, 0.0
        %v2322 = vsel %vm2109, %v2258, 0.0
        %v2323 = vsel %vm2106, %v2259, 0.0
        %v2324 = vsel %vm2107, %v2260, 0.0
        %v2325 = vsel %vm2108, %v2261, 0.0
        %v2326 = vsel %vm2109, %v2262, 0.0
        %2327 = vst [vmem:[#allocation3 + $0x500] sm:$0xff] %v2295
        %2328 = vst [vmem:[#allocation3 + $0x508] sm:$0xff] %v2296
        %2329 = vst [vmem:[#allocation3 + $0x510] sm:$0xff] %v2297
        %2330 = vst [vmem:[#allocation3 + $0x518] sm:$0xff] %v2298
        %2331 = vst [vmem:[#allocation3 + $0x520] sm:$0xff] %v2299
        %2332 = vst [vmem:[#allocation3 + $0x528] sm:$0xff] %v2300
        %2333 = vst [vmem:[#allocation3 + $0x530] sm:$0xff] %v2301
        %2334 = vst [vmem:[#allocation3 + $0x538] sm:$0xff] %v2302
        %2335 = vst [vmem:[#allocation3 + $0x540] sm:$0xff] %v2303
        %2336 = vst [vmem:[#allocation3 + $0x548] sm:$0xff] %v2304
        %2337 = vst [vmem:[#allocation3 + $0x550] sm:$0xff] %v2305
        %2338 = vst [vmem:[#allocation3 + $0x558] sm:$0xff] %v2306
        %2339 = vst [vmem:[#allocation3 + $0x560] sm:$0xff] %v2307
        %2340 = vst [vmem:[#allocation3 + $0x568] sm:$0xff] %v2308
        %2341 = vst [vmem:[#allocation3 + $0x570] sm:$0xff] %v2309
        %2342 = vst [vmem:[#allocation3 + $0x578] sm:$0xff] %v2310
        %2343 = vst [vmem:[#allocation3 + $0x580] sm:$0xff] %v2311
        %2344 = vst [vmem:[#allocation3 + $0x588] sm:$0xff] %v2312
        %2345 = vst [vmem:[#allocation3 + $0x590] sm:$0xff] %v2313
        %2346 = vst [vmem:[#allocation3 + $0x598] sm:$0xff] %v2314
        %2347 = vst [vmem:[#allocation3 + $0x5a0] sm:$0xff] %v2315
        %2348 = vst [vmem:[#allocation3 + $0x5a8] sm:$0xff] %v2316
        %2349 = vst [vmem:[#allocation3 + $0x5b0] sm:$0xff] %v2317
        %2350 = vst [vmem:[#allocation3 + $0x5b8] sm:$0xff] %v2318
        %2351 = vst [vmem:[#allocation3 + $0x5c0] sm:$0xff] %v2319
        %2352 = vst [vmem:[#allocation3 + $0x5c8] sm:$0xff] %v2320
        %2353 = vst [vmem:[#allocation3 + $0x5d0] sm:$0xff] %v2321
        %2354 = vst [vmem:[#allocation3 + $0x5d8] sm:$0xff] %v2322
        %2355 = vst [vmem:[#allocation3 + $0x5e0] sm:$0xff] %v2323
        %2356 = vst [vmem:[#allocation3 + $0x5e8] sm:$0xff] %v2324
        %2357 = vst [vmem:[#allocation3 + $0x5f0] sm:$0xff] %v2325
        %2358 = vst [vmem:[#allocation3 + $0x5f8] sm:$0xff] %v2326
        %v2359 = vld [vmem:[#allocation2 + $0x8] sm:$0xff]
        %v2360 = vld [vmem:[#allocation2 + $0x10] sm:$0xff]
        %v2361 = vld [vmem:[#allocation2 + $0x18] sm:$0xff]
        %v2362 = vld [vmem:[#allocation2 + $0x20] sm:$0xff]
        %v2363 = vld [vmem:[#allocation2 + $0x28] sm:$0xff]
        %v2364 = vld [vmem:[#allocation2 + $0x38] sm:$0xff]
        %v2365 = vld [vmem:[#allocation2 + $0x40] sm:$0xff]
        %v2366 = vld [vmem:[#allocation2 + $0x48] sm:$0xff]
        %v2367 = vld [vmem:[#allocation2 + $0x50] sm:$0xff]
        %v2368 = vld [vmem:[#allocation2 + $0x58] sm:$0xff]
        %v2369 = vld [vmem:[#allocation2 + $0x68] sm:$0xff]
        %v2370 = vld [vmem:[#allocation2 + $0x70] sm:$0xff]
        %v2371 = vld [vmem:[#allocation2 + $0x78] sm:$0xff]
        %v2372 = vld [vmem:[#allocation2 + $0x80] sm:$0xff]
        %v2373 = vld [vmem:[#allocation2 + $0x88] sm:$0xff]
        %v2374 = vld [vmem:[#allocation2 + $0x98] sm:$0xff]
        %v2375 = vld [vmem:[#allocation2 + $0xa0] sm:$0xff]
        %v2376 = vld [vmem:[#allocation2 + $0xa8] sm:$0xff]
        %v2377 = vld [vmem:[#allocation2 + $0xb0] sm:$0xff]
        %v2378 = vld [vmem:[#allocation2 + $0xb8] sm:$0xff]
        %v2379 = vld [vmem:[#allocation2 + $0xc8] sm:$0xff]
        %v2380 = vld [vmem:[#allocation2 + $0xd0] sm:$0xff]
        %v2381 = vld [vmem:[#allocation2 + $0xd8] sm:$0xff]
        %v2382 = vld [vmem:[#allocation2 + $0xe0] sm:$0xff]
        %v2383 = vld [vmem:[#allocation2 + $0xe8] sm:$0xff]
        %v2384 = vld [vmem:[#allocation2 + $0xf8] sm:$0xff]
        %v2385 = vld [vmem:[#allocation2 + $0x100] sm:$0xff]
        %v2386 = vld [vmem:[#allocation2 + $0x108] sm:$0xff]
        %v2387 = vld [vmem:[#allocation2 + $0x110] sm:$0xff]
        %v2388 = vld [vmem:[#allocation2 + $0x118] sm:$0xff]
        %v2389 = vld [vmem:[#allocation2 + $0x128] sm:$0xff]
        %v2390 = vld [vmem:[#allocation2 + $0x130] sm:$0xff]
        %v2391 = vld [vmem:[#allocation2 + $0x138] sm:$0xff]
        %v2392 = vld [vmem:[#allocation2 + $0x140] sm:$0xff]
        %v2393 = vld [vmem:[#allocation2 + $0x148] sm:$0xff]
        %v2394 = vld [vmem:[#allocation2 + $0x158] sm:$0xff]
        %v2395 = vld [vmem:[#allocation2 + $0x160] sm:$0xff]
        %v2396 = vld [vmem:[#allocation2 + $0x168] sm:$0xff]
        %v2397 = vld [vmem:[#allocation2 + $0x170] sm:$0xff]
        %v2398 = vld [vmem:[#allocation2 + $0x178] sm:$0xff]
        %s2399 = scalar_lea.vmem [#allocation5], 6
        %v2400 = vld [vmem:[%s2399] ss:$8 sm:$0xf]
        %vm2401 = vcmp.gt.f32.partialorder %v2400, 0.5
        %v2402 = vsel %vm2401, 1, 0
        %v2403 = vlaneseq
        %v2404 = vshrl.u32 %v2403, 7
        %v2405 = vsub.s32 0, %v2404
        %v2406 = vrot.slane %v2402, %v2405
        %v2407 = vlaneseq
        %v2408 = vshrl.u32 %v2407, 7
        %v2409 = vsub.s32 1, %v2408
        %v2410 = vrot.slane %v2402, %v2409
        %v2411 = vlaneseq
        %v2412 = vshrl.u32 %v2411, 7
        %v2413 = vsub.s32 2, %v2412
        %v2414 = vrot.slane %v2402, %v2413
        %v2415 = vlaneseq
        %v2416 = vshrl.u32 %v2415, 7
        %v2417 = vsub.s32 3, %v2416
        %v2418 = vrot.slane %v2402, %v2417
        %vm2419 = vcmp.eq.s32.totalorder %v2406, 1
        %vm2420 = vcmp.eq.s32.totalorder %v2410, 1
        %vm2421 = vcmp.eq.s32.totalorder %v2414, 1
        %vm2422 = vcmp.eq.s32.totalorder %v2418, 1
        %2463 = vrot.lane.b32.xlu0 %v2359, 113
        %v2464 = vpop.permute.xlu0 %2463
        %2465 = vrot.lane.b32.xlu0 %v2360, 113
        %v2466 = vpop.permute.xlu0 %2465
        %2467 = vrot.lane.b32.xlu0 %v2361, 113
        %v2468 = vpop.permute.xlu0 %2467
        %2469 = vrot.lane.b32.xlu0 %v2362, 113
        %v2470 = vpop.permute.xlu0 %2469
        %2471 = vrot.lane.b32.xlu0 %v2363, 113
        %v2472 = vpop.permute.xlu0 %2471
        %2473 = vrot.lane.b32.xlu0 %v2364, 113
        %v2474 = vpop.permute.xlu0 %2473
        %2475 = vrot.lane.b32.xlu0 %v2365, 113
        %v2476 = vpop.permute.xlu0 %2475
        %2477 = vrot.lane.b32.xlu0 %v2366, 113
        %v2478 = vpop.permute.xlu0 %2477
        %2479 = vrot.lane.b32.xlu0 %v2367, 113
        %v2480 = vpop.permute.xlu0 %2479
        %2481 = vrot.lane.b32.xlu0 %v2368, 113
        %v2482 = vpop.permute.xlu0 %2481
        %2483 = vrot.lane.b32.xlu0 %v2369, 113
        %v2484 = vpop.permute.xlu0 %2483
        %2485 = vrot.lane.b32.xlu0 %v2370, 113
        %v2486 = vpop.permute.xlu0 %2485
        %2487 = vrot.lane.b32.xlu0 %v2371, 113
        %v2488 = vpop.permute.xlu0 %2487
        %2489 = vrot.lane.b32.xlu0 %v2372, 113
        %v2490 = vpop.permute.xlu0 %2489
        %2491 = vrot.lane.b32.xlu0 %v2373, 113
        %v2492 = vpop.permute.xlu0 %2491
        %2493 = vrot.lane.b32.xlu0 %v2374, 113
        %v2494 = vpop.permute.xlu0 %2493
        %2495 = vrot.lane.b32.xlu0 %v2375, 113
        %v2496 = vpop.permute.xlu0 %2495
        %2497 = vrot.lane.b32.xlu0 %v2376, 113
        %v2498 = vpop.permute.xlu0 %2497
        %2499 = vrot.lane.b32.xlu0 %v2377, 113
        %v2500 = vpop.permute.xlu0 %2499
        %2501 = vrot.lane.b32.xlu0 %v2378, 113
        %v2502 = vpop.permute.xlu0 %2501
        %2503 = vrot.lane.b32.xlu0 %v2379, 113
        %v2504 = vpop.permute.xlu0 %2503
        %2505 = vrot.lane.b32.xlu0 %v2380, 113
        %v2506 = vpop.permute.xlu0 %2505
        %2507 = vrot.lane.b32.xlu0 %v2381, 113
        %v2508 = vpop.permute.xlu0 %2507
        %2509 = vrot.lane.b32.xlu0 %v2382, 113
        %v2510 = vpop.permute.xlu0 %2509
        %2511 = vrot.lane.b32.xlu0 %v2383, 113
        %v2512 = vpop.permute.xlu0 %2511
        %2513 = vrot.lane.b32.xlu0 %v2384, 113
        %v2514 = vpop.permute.xlu0 %2513
        %2515 = vrot.lane.b32.xlu0 %v2385, 113
        %v2516 = vpop.permute.xlu0 %2515
        %2517 = vrot.lane.b32.xlu0 %v2386, 113
        %v2518 = vpop.permute.xlu0 %2517
        %2519 = vrot.lane.b32.xlu0 %v2387, 113
        %v2520 = vpop.permute.xlu0 %2519
        %2521 = vrot.lane.b32.xlu0 %v2388, 113
        %v2522 = vpop.permute.xlu0 %2521
        %2523 = vrot.lane.b32.xlu0 %v2389, 113
        %v2524 = vpop.permute.xlu0 %2523
        %2525 = vrot.lane.b32.xlu0 %v2390, 113
        %v2526 = vpop.permute.xlu0 %2525
        %2527 = vrot.lane.b32.xlu0 %v2391, 113
        %v2528 = vpop.permute.xlu0 %2527
        %2529 = vrot.lane.b32.xlu0 %v2392, 113
        %v2530 = vpop.permute.xlu0 %2529
        %2531 = vrot.lane.b32.xlu0 %v2393, 113
        %v2532 = vpop.permute.xlu0 %2531
        %2533 = vrot.lane.b32.xlu0 %v2394, 113
        %v2534 = vpop.permute.xlu0 %2533
        %2535 = vrot.lane.b32.xlu0 %v2395, 113
        %v2536 = vpop.permute.xlu0 %2535
        %2537 = vrot.lane.b32.xlu0 %v2396, 113
        %v2538 = vpop.permute.xlu0 %2537
        %2539 = vrot.lane.b32.xlu0 %v2397, 113
        %v2540 = vpop.permute.xlu0 %2539
        %2541 = vrot.lane.b32.xlu0 %v2398, 113
        %v2542 = vpop.permute.xlu0 %2541
        %vm2543 = vcmask 924672
        %v2544 = vsel %vm2543, %v2464, %v2466
        %v2545 = vsel %vm2543, %v2466, %v2468
        %v2546 = vsel %vm2543, %v2468, %v2470
        %v2547 = vsel %vm2543, %v2470, %v2472
        %v2548 = vsel %vm2543, %v2474, %v2476
        %v2549 = vsel %vm2543, %v2476, %v2478
        %v2550 = vsel %vm2543, %v2478, %v2480
        %v2551 = vsel %vm2543, %v2480, %v2482
        %v2552 = vsel %vm2543, %v2484, %v2486
        %v2553 = vsel %vm2543, %v2486, %v2488
        %v2554 = vsel %vm2543, %v2488, %v2490
        %v2555 = vsel %vm2543, %v2490, %v2492
        %v2556 = vsel %vm2543, %v2494, %v2496
        %v2557 = vsel %vm2543, %v2496, %v2498
        %v2558 = vsel %vm2543, %v2498, %v2500
        %v2559 = vsel %vm2543, %v2500, %v2502
        %v2560 = vsel %vm2543, %v2504, %v2506
        %v2561 = vsel %vm2543, %v2506, %v2508
        %v2562 = vsel %vm2543, %v2508, %v2510
        %v2563 = vsel %vm2543, %v2510, %v2512
        %v2564 = vsel %vm2543, %v2514, %v2516
        %v2565 = vsel %vm2543, %v2516, %v2518
        %v2566 = vsel %vm2543, %v2518, %v2520
        %v2567 = vsel %vm2543, %v2520, %v2522
        %v2568 = vsel %vm2543, %v2524, %v2526
        %v2569 = vsel %vm2543, %v2526, %v2528
        %v2570 = vsel %vm2543, %v2528, %v2530
        %v2571 = vsel %vm2543, %v2530, %v2532
        %v2572 = vsel %vm2543, %v2534, %v2536
        %v2573 = vsel %vm2543, %v2536, %v2538
        %v2574 = vsel %vm2543, %v2538, %v2540
        %v2575 = vsel %vm2543, %v2540, %v2542
        %v2608 = vsel %vm2419, %v2544, 0.0
        %v2609 = vsel %vm2420, %v2545, 0.0
        %v2610 = vsel %vm2421, %v2546, 0.0
        %v2611 = vsel %vm2422, %v2547, 0.0
        %v2612 = vsel %vm2419, %v2548, 0.0
        %v2613 = vsel %vm2420, %v2549, 0.0
        %v2614 = vsel %vm2421, %v2550, 0.0
        %v2615 = vsel %vm2422, %v2551, 0.0
        %v2616 = vsel %vm2419, %v2552, 0.0
        %v2617 = vsel %vm2420, %v2553, 0.0
        %v2618 = vsel %vm2421, %v2554, 0.0
        %v2619 = vsel %vm2422, %v2555, 0.0
        %v2620 = vsel %vm2419, %v2556, 0.0
        %v2621 = vsel %vm2420, %v2557, 0.0
        %v2622 = vsel %vm2421, %v2558, 0.0
        %v2623 = vsel %vm2422, %v2559, 0.0
        %v2624 = vsel %vm2419, %v2560, 0.0
        %v2625 = vsel %vm2420, %v2561, 0.0
        %v2626 = vsel %vm2421, %v2562, 0.0
        %v2627 = vsel %vm2422, %v2563, 0.0
        %v2628 = vsel %vm2419, %v2564, 0.0
        %v2629 = vsel %vm2420, %v2565, 0.0
        %v2630 = vsel %vm2421, %v2566, 0.0
        %v2631 = vsel %vm2422, %v2567, 0.0
        %v2632 = vsel %vm2419, %v2568, 0.0
        %v2633 = vsel %vm2420, %v2569, 0.0
        %v2634 = vsel %vm2421, %v2570, 0.0
        %v2635 = vsel %vm2422, %v2571, 0.0
        %v2636 = vsel %vm2419, %v2572, 0.0
        %v2637 = vsel %vm2420, %v2573, 0.0
        %v2638 = vsel %vm2421, %v2574, 0.0
        %v2639 = vsel %vm2422, %v2575, 0.0
        %2640 = vst [vmem:[#allocation3 + $0x600] sm:$0xff] %v2608
        %2641 = vst [vmem:[#allocation3 + $0x608] sm:$0xff] %v2609
        %2642 = vst [vmem:[#allocation3 + $0x610] sm:$0xff] %v2610
        %2643 = vst [vmem:[#allocation3 + $0x618] sm:$0xff] %v2611
        %2644 = vst [vmem:[#allocation3 + $0x620] sm:$0xff] %v2612
        %2645 = vst [vmem:[#allocation3 + $0x628] sm:$0xff] %v2613
        %2646 = vst [vmem:[#allocation3 + $0x630] sm:$0xff] %v2614
        %2647 = vst [vmem:[#allocation3 + $0x638] sm:$0xff] %v2615
        %2648 = vst [vmem:[#allocation3 + $0x640] sm:$0xff] %v2616
        %2649 = vst [vmem:[#allocation3 + $0x648] sm:$0xff] %v2617
        %2650 = vst [vmem:[#allocation3 + $0x650] sm:$0xff] %v2618
        %2651 = vst [vmem:[#allocation3 + $0x658] sm:$0xff] %v2619
        %2652 = vst [vmem:[#allocation3 + $0x660] sm:$0xff] %v2620
        %2653 = vst [vmem:[#allocation3 + $0x668] sm:$0xff] %v2621
        %2654 = vst [vmem:[#allocation3 + $0x670] sm:$0xff] %v2622
        %2655 = vst [vmem:[#allocation3 + $0x678] sm:$0xff] %v2623
        %2656 = vst [vmem:[#allocation3 + $0x680] sm:$0xff] %v2624
        %2657 = vst [vmem:[#allocation3 + $0x688] sm:$0xff] %v2625
        %2658 = vst [vmem:[#allocation3 + $0x690] sm:$0xff] %v2626
        %2659 = vst [vmem:[#allocation3 + $0x698] sm:$0xff] %v2627
        %2660 = vst [vmem:[#allocation3 + $0x6a0] sm:$0xff] %v2628
        %2661 = vst [vmem:[#allocation3 + $0x6a8] sm:$0xff] %v2629
        %2662 = vst [vmem:[#allocation3 + $0x6b0] sm:$0xff] %v2630
        %2663 = vst [vmem:[#allocation3 + $0x6b8] sm:$0xff] %v2631
        %2664 = vst [vmem:[#allocation3 + $0x6c0] sm:$0xff] %v2632
        %2665 = vst [vmem:[#allocation3 + $0x6c8] sm:$0xff] %v2633
        %2666 = vst [vmem:[#allocation3 + $0x6d0] sm:$0xff] %v2634
        %2667 = vst [vmem:[#allocation3 + $0x6d8] sm:$0xff] %v2635
        %2668 = vst [vmem:[#allocation3 + $0x6e0] sm:$0xff] %v2636
        %2669 = vst [vmem:[#allocation3 + $0x6e8] sm:$0xff] %v2637
        %2670 = vst [vmem:[#allocation3 + $0x6f0] sm:$0xff] %v2638
        %2671 = vst [vmem:[#allocation3 + $0x6f8] sm:$0xff] %v2639
        %v2672 = vld [vmem:[#allocation2 + $0x8] sm:$0xff]
        %v2673 = vld [vmem:[#allocation2 + $0x10] sm:$0xff]
        %v2674 = vld [vmem:[#allocation2 + $0x18] sm:$0xff]
        %v2675 = vld [vmem:[#allocation2 + $0x20] sm:$0xff]
        %v2676 = vld [vmem:[#allocation2 + $0x28] sm:$0xff]
        %v2677 = vld [vmem:[#allocation2 + $0x38] sm:$0xff]
        %v2678 = vld [vmem:[#allocation2 + $0x40] sm:$0xff]
        %v2679 = vld [vmem:[#allocation2 + $0x48] sm:$0xff]
        %v2680 = vld [vmem:[#allocation2 + $0x50] sm:$0xff]
        %v2681 = vld [vmem:[#allocation2 + $0x58] sm:$0xff]
        %v2682 = vld [vmem:[#allocation2 + $0x68] sm:$0xff]
        %v2683 = vld [vmem:[#allocation2 + $0x70] sm:$0xff]
        %v2684 = vld [vmem:[#allocation2 + $0x78] sm:$0xff]
        %v2685 = vld [vmem:[#allocation2 + $0x80] sm:$0xff]
        %v2686 = vld [vmem:[#allocation2 + $0x88] sm:$0xff]
        %v2687 = vld [vmem:[#allocation2 + $0x98] sm:$0xff]
        %v2688 = vld [vmem:[#allocation2 + $0xa0] sm:$0xff]
        %v2689 = vld [vmem:[#allocation2 + $0xa8] sm:$0xff]
        %v2690 = vld [vmem:[#allocation2 + $0xb0] sm:$0xff]
        %v2691 = vld [vmem:[#allocation2 + $0xb8] sm:$0xff]
        %v2692 = vld [vmem:[#allocation2 + $0xc8] sm:$0xff]
        %v2693 = vld [vmem:[#allocation2 + $0xd0] sm:$0xff]
        %v2694 = vld [vmem:[#allocation2 + $0xd8] sm:$0xff]
        %v2695 = vld [vmem:[#allocation2 + $0xe0] sm:$0xff]
        %v2696 = vld [vmem:[#allocation2 + $0xe8] sm:$0xff]
        %v2697 = vld [vmem:[#allocation2 + $0xf8] sm:$0xff]
        %v2698 = vld [vmem:[#allocation2 + $0x100] sm:$0xff]
        %v2699 = vld [vmem:[#allocation2 + $0x108] sm:$0xff]
        %v2700 = vld [vmem:[#allocation2 + $0x110] sm:$0xff]
        %v2701 = vld [vmem:[#allocation2 + $0x118] sm:$0xff]
        %v2702 = vld [vmem:[#allocation2 + $0x128] sm:$0xff]
        %v2703 = vld [vmem:[#allocation2 + $0x130] sm:$0xff]
        %v2704 = vld [vmem:[#allocation2 + $0x138] sm:$0xff]
        %v2705 = vld [vmem:[#allocation2 + $0x140] sm:$0xff]
        %v2706 = vld [vmem:[#allocation2 + $0x148] sm:$0xff]
        %v2707 = vld [vmem:[#allocation2 + $0x158] sm:$0xff]
        %v2708 = vld [vmem:[#allocation2 + $0x160] sm:$0xff]
        %v2709 = vld [vmem:[#allocation2 + $0x168] sm:$0xff]
        %v2710 = vld [vmem:[#allocation2 + $0x170] sm:$0xff]
        %v2711 = vld [vmem:[#allocation2 + $0x178] sm:$0xff]
        %s2712 = scalar_lea.vmem [#allocation5], 7
        %v2713 = vld [vmem:[%s2712] ss:$8 sm:$0xf]
        %vm2714 = vcmp.gt.f32.partialorder %v2713, 0.5
        %v2715 = vsel %vm2714, 1, 0
        %v2716 = vlaneseq
        %v2717 = vshrl.u32 %v2716, 7
        %v2718 = vsub.s32 0, %v2717
        %v2719 = vrot.slane %v2715, %v2718
        %v2720 = vlaneseq
        %v2721 = vshrl.u32 %v2720, 7
        %v2722 = vsub.s32 1, %v2721
        %v2723 = vrot.slane %v2715, %v2722
        %v2724 = vlaneseq
        %v2725 = vshrl.u32 %v2724, 7
        %v2726 = vsub.s32 2, %v2725
        %v2727 = vrot.slane %v2715, %v2726
        %v2728 = vlaneseq
        %v2729 = vshrl.u32 %v2728, 7
        %v2730 = vsub.s32 3, %v2729
        %v2731 = vrot.slane %v2715, %v2730
        %vm2732 = vcmp.eq.s32.totalorder %v2719, 1
        %vm2733 = vcmp.eq.s32.totalorder %v2723, 1
        %vm2734 = vcmp.eq.s32.totalorder %v2727, 1
        %vm2735 = vcmp.eq.s32.totalorder %v2731, 1
        %2776 = vrot.lane.b32.xlu0 %v2672, 112
        %v2777 = vpop.permute.xlu0 %2776
        %2778 = vrot.lane.b32.xlu0 %v2673, 112
        %v2779 = vpop.permute.xlu0 %2778
        %2780 = vrot.lane.b32.xlu0 %v2674, 112
        %v2781 = vpop.permute.xlu0 %2780
        %2782 = vrot.lane.b32.xlu0 %v2675, 112
        %v2783 = vpop.permute.xlu0 %2782
        %2784 = vrot.lane.b32.xlu0 %v2676, 112
        %v2785 = vpop.permute.xlu0 %2784
        %2786 = vrot.lane.b32.xlu0 %v2677, 112
        %v2787 = vpop.permute.xlu0 %2786
        %2788 = vrot.lane.b32.xlu0 %v2678, 112
        %v2789 = vpop.permute.xlu0 %2788
        %2790 = vrot.lane.b32.xlu0 %v2679, 112
        %v2791 = vpop.permute.xlu0 %2790
        %2792 = vrot.lane.b32.xlu0 %v2680, 112
        %v2793 = vpop.permute.xlu0 %2792
        %2794 = vrot.lane.b32.xlu0 %v2681, 112
        %v2795 = vpop.permute.xlu0 %2794
        %2796 = vrot.lane.b32.xlu0 %v2682, 112
        %v2797 = vpop.permute.xlu0 %2796
        %2798 = vrot.lane.b32.xlu0 %v2683, 112
        %v2799 = vpop.permute.xlu0 %2798
        %2800 = vrot.lane.b32.xlu0 %v2684, 112
        %v2801 = vpop.permute.xlu0 %2800
        %2802 = vrot.lane.b32.xlu0 %v2685, 112
        %v2803 = vpop.permute.xlu0 %2802
        %2804 = vrot.lane.b32.xlu0 %v2686, 112
        %v2805 = vpop.permute.xlu0 %2804
        %2806 = vrot.lane.b32.xlu0 %v2687, 112
        %v2807 = vpop.permute.xlu0 %2806
        %2808 = vrot.lane.b32.xlu0 %v2688, 112
        %v2809 = vpop.permute.xlu0 %2808
        %2810 = vrot.lane.b32.xlu0 %v2689, 112
        %v2811 = vpop.permute.xlu0 %2810
        %2812 = vrot.lane.b32.xlu0 %v2690, 112
        %v2813 = vpop.permute.xlu0 %2812
        %2814 = vrot.lane.b32.xlu0 %v2691, 112
        %v2815 = vpop.permute.xlu0 %2814
        %2816 = vrot.lane.b32.xlu0 %v2692, 112
        %v2817 = vpop.permute.xlu0 %2816
        %2818 = vrot.lane.b32.xlu0 %v2693, 112
        %v2819 = vpop.permute.xlu0 %2818
        %2820 = vrot.lane.b32.xlu0 %v2694, 112
        %v2821 = vpop.permute.xlu0 %2820
        %2822 = vrot.lane.b32.xlu0 %v2695, 112
        %v2823 = vpop.permute.xlu0 %2822
        %2824 = vrot.lane.b32.xlu0 %v2696, 112
        %v2825 = vpop.permute.xlu0 %2824
        %2826 = vrot.lane.b32.xlu0 %v2697, 112
        %v2827 = vpop.permute.xlu0 %2826
        %2828 = vrot.lane.b32.xlu0 %v2698, 112
        %v2829 = vpop.permute.xlu0 %2828
        %2830 = vrot.lane.b32.xlu0 %v2699, 112
        %v2831 = vpop.permute.xlu0 %2830
        %2832 = vrot.lane.b32.xlu0 %v2700, 112
        %v2833 = vpop.permute.xlu0 %2832
        %2834 = vrot.lane.b32.xlu0 %v2701, 112
        %v2835 = vpop.permute.xlu0 %2834
        %2836 = vrot.lane.b32.xlu0 %v2702, 112
        %v2837 = vpop.permute.xlu0 %2836
        %2838 = vrot.lane.b32.xlu0 %v2703, 112
        %v2839 = vpop.permute.xlu0 %2838
        %2840 = vrot.lane.b32.xlu0 %v2704, 112
        %v2841 = vpop.permute.xlu0 %2840
        %2842 = vrot.lane.b32.xlu0 %v2705, 112
        %v2843 = vpop.permute.xlu0 %2842
        %2844 = vrot.lane.b32.xlu0 %v2706, 112
        %v2845 = vpop.permute.xlu0 %2844
        %2846 = vrot.lane.b32.xlu0 %v2707, 112
        %v2847 = vpop.permute.xlu0 %2846
        %2848 = vrot.lane.b32.xlu0 %v2708, 112
        %v2849 = vpop.permute.xlu0 %2848
        %2850 = vrot.lane.b32.xlu0 %v2709, 112
        %v2851 = vpop.permute.xlu0 %2850
        %2852 = vrot.lane.b32.xlu0 %v2710, 112
        %v2853 = vpop.permute.xlu0 %2852
        %2854 = vrot.lane.b32.xlu0 %v2711, 112
        %v2855 = vpop.permute.xlu0 %2854
        %vm2856 = vcmask 916480
        %v2857 = vsel %vm2856, %v2777, %v2779
        %v2858 = vsel %vm2856, %v2779, %v2781
        %v2859 = vsel %vm2856, %v2781, %v2783
        %v2860 = vsel %vm2856, %v2783, %v2785
        %v2861 = vsel %vm2856, %v2787, %v2789
        %v2862 = vsel %vm2856, %v2789, %v2791
        %v2863 = vsel %vm2856, %v2791, %v2793
        %v2864 = vsel %vm2856, %v2793, %v2795
        %v2865 = vsel %vm2856, %v2797, %v2799
        %v2866 = vsel %vm2856, %v2799, %v2801
        %v2867 = vsel %vm2856, %v2801, %v2803
        %v2868 = vsel %vm2856, %v2803, %v2805
        %v2869 = vsel %vm2856, %v2807, %v2809
        %v2870 = vsel %vm2856, %v2809, %v2811
        %v2871 = vsel %vm2856, %v2811, %v2813
        %v2872 = vsel %vm2856, %v2813, %v2815
        %v2873 = vsel %vm2856, %v2817, %v2819
        %v2874 = vsel %vm2856, %v2819, %v2821
        %v2875 = vsel %vm2856, %v2821, %v2823
        %v2876 = vsel %vm2856, %v2823, %v2825
        %v2877 = vsel %vm2856, %v2827, %v2829
        %v2878 = vsel %vm2856, %v2829, %v2831
        %v2879 = vsel %vm2856, %v2831, %v2833
        %v2880 = vsel %vm2856, %v2833, %v2835
        %v2881 = vsel %vm2856, %v2837, %v2839
        %v2882 = vsel %vm2856, %v2839, %v2841
        %v2883 = vsel %vm2856, %v2841, %v2843
        %v2884 = vsel %vm2856, %v2843, %v2845
        %v2885 = vsel %vm2856, %v2847, %v2849
        %v2886 = vsel %vm2856, %v2849, %v2851
        %v2887 = vsel %vm2856, %v2851, %v2853
        %v2888 = vsel %vm2856, %v2853, %v2855
        %v2921 = vsel %vm2732, %v2857, 0.0
        %v2922 = vsel %vm2733, %v2858, 0.0
        %v2923 = vsel %vm2734, %v2859, 0.0
        %v2924 = vsel %vm2735, %v2860, 0.0
        %v2925 = vsel %vm2732, %v2861, 0.0
        %v2926 = vsel %vm2733, %v2862, 0.0
        %v2927 = vsel %vm2734, %v2863, 0.0
        %v2928 = vsel %vm2735, %v2864, 0.0
        %v2929 = vsel %vm2732, %v2865, 0.0
        %v2930 = vsel %vm2733, %v2866, 0.0
        %v2931 = vsel %vm2734, %v2867, 0.0
        %v2932 = vsel %vm2735, %v2868, 0.0
        %v2933 = vsel %vm2732, %v2869, 0.0
        %v2934 = vsel %vm2733, %v2870, 0.0
        %v2935 = vsel %vm2734, %v2871, 0.0
        %v2936 = vsel %vm2735, %v2872, 0.0
        %v2937 = vsel %vm2732, %v2873, 0.0
        %v2938 = vsel %vm2733, %v2874, 0.0
        %v2939 = vsel %vm2734, %v2875, 0.0
        %v2940 = vsel %vm2735, %v2876, 0.0
        %v2941 = vsel %vm2732, %v2877, 0.0
        %v2942 = vsel %vm2733, %v2878, 0.0
        %v2943 = vsel %vm2734, %v2879, 0.0
        %v2944 = vsel %vm2735, %v2880, 0.0
        %v2945 = vsel %vm2732, %v2881, 0.0
        %v2946 = vsel %vm2733, %v2882, 0.0
        %v2947 = vsel %vm2734, %v2883, 0.0
        %v2948 = vsel %vm2735, %v2884, 0.0
        %v2949 = vsel %vm2732, %v2885, 0.0
        %v2950 = vsel %vm2733, %v2886, 0.0
        %v2951 = vsel %vm2734, %v2887, 0.0
        %v2952 = vsel %vm2735, %v2888, 0.0
        %2953 = vst [vmem:[#allocation3 + $0x700] sm:$0xff] %v2921
        %2954 = vst [vmem:[#allocation3 + $0x708] sm:$0xff] %v2922
        %2955 = vst [vmem:[#allocation3 + $0x710] sm:$0xff] %v2923
        %2956 = vst [vmem:[#allocation3 + $0x718] sm:$0xff] %v2924
        %2957 = vst [vmem:[#allocation3 + $0x720] sm:$0xff] %v2925
        %2958 = vst [vmem:[#allocation3 + $0x728] sm:$0xff] %v2926
        %2959 = vst [vmem:[#allocation3 + $0x730] sm:$0xff] %v2927
        %2960 = vst [vmem:[#allocation3 + $0x738] sm:$0xff] %v2928
        %2961 = vst [vmem:[#allocation3 + $0x740] sm:$0xff] %v2929
        %2962 = vst [vmem:[#allocation3 + $0x748] sm:$0xff] %v2930
        %2963 = vst [vmem:[#allocation3 + $0x750] sm:$0xff] %v2931
        %2964 = vst [vmem:[#allocation3 + $0x758] sm:$0xff] %v2932
        %2965 = vst [vmem:[#allocation3 + $0x760] sm:$0xff] %v2933
        %2966 = vst [vmem:[#allocation3 + $0x768] sm:$0xff] %v2934
        %2967 = vst [vmem:[#allocation3 + $0x770] sm:$0xff] %v2935
        %2968 = vst [vmem:[#allocation3 + $0x778] sm:$0xff] %v2936
        %2969 = vst [vmem:[#allocation3 + $0x780] sm:$0xff] %v2937
        %2970 = vst [vmem:[#allocation3 + $0x788] sm:$0xff] %v2938
        %2971 = vst [vmem:[#allocation3 + $0x790] sm:$0xff] %v2939
        %2972 = vst [vmem:[#allocation3 + $0x798] sm:$0xff] %v2940
        %2973 = vst [vmem:[#allocation3 + $0x7a0] sm:$0xff] %v2941
        %2974 = vst [vmem:[#allocation3 + $0x7a8] sm:$0xff] %v2942
        %2975 = vst [vmem:[#allocation3 + $0x7b0] sm:$0xff] %v2943
        %2976 = vst [vmem:[#allocation3 + $0x7b8] sm:$0xff] %v2944
        %2977 = vst [vmem:[#allocation3 + $0x7c0] sm:$0xff] %v2945
        %2978 = vst [vmem:[#allocation3 + $0x7c8] sm:$0xff] %v2946
        %2979 = vst [vmem:[#allocation3 + $0x7d0] sm:$0xff] %v2947
        %2980 = vst [vmem:[#allocation3 + $0x7d8] sm:$0xff] %v2948
        %2981 = vst [vmem:[#allocation3 + $0x7e0] sm:$0xff] %v2949
        %2982 = vst [vmem:[#allocation3 + $0x7e8] sm:$0xff] %v2950
        %2983 = vst [vmem:[#allocation3 + $0x7f0] sm:$0xff] %v2951
        %2984 = vst [vmem:[#allocation3 + $0x7f8] sm:$0xff] %v2952
        %v2985 = vld [vmem:[#allocation2 + $0x8] sm:$0xff]
        %v2986 = vld [vmem:[#allocation2 + $0x10] sm:$0xff]
        %v2987 = vld [vmem:[#allocation2 + $0x18] sm:$0xff]
        %v2988 = vld [vmem:[#allocation2 + $0x20] sm:$0xff]
        %v2989 = vld [vmem:[#allocation2 + $0x28] sm:$0xff]
        %v2990 = vld [vmem:[#allocation2 + $0x38] sm:$0xff]
        %v2991 = vld [vmem:[#allocation2 + $0x40] sm:$0xff]
        %v2992 = vld [vmem:[#allocation2 + $0x48] sm:$0xff]
        %v2993 = vld [vmem:[#allocation2 + $0x50] sm:$0xff]
        %v2994 = vld [vmem:[#allocation2 + $0x58] sm:$0xff]
        %v2995 = vld [vmem:[#allocation2 + $0x68] sm:$0xff]
        %v2996 = vld [vmem:[#allocation2 + $0x70] sm:$0xff]
        %v2997 = vld [vmem:[#allocation2 + $0x78] sm:$0xff]
        %v2998 = vld [vmem:[#allocation2 + $0x80] sm:$0xff]
        %v2999 = vld [vmem:[#allocation2 + $0x88] sm:$0xff]
        %v3000 = vld [vmem:[#allocation2 + $0x98] sm:$0xff]
        %v3001 = vld [vmem:[#allocation2 + $0xa0] sm:$0xff]
        %v3002 = vld [vmem:[#allocation2 + $0xa8] sm:$0xff]
        %v3003 = vld [vmem:[#allocation2 + $0xb0] sm:$0xff]
        %v3004 = vld [vmem:[#allocation2 + $0xb8] sm:$0xff]
        %v3005 = vld [vmem:[#allocation2 + $0xc8] sm:$0xff]
        %v3006 = vld [vmem:[#allocation2 + $0xd0] sm:$0xff]
        %v3007 = vld [vmem:[#allocation2 + $0xd8] sm:$0xff]
        %v3008 = vld [vmem:[#allocation2 + $0xe0] sm:$0xff]
        %v3009 = vld [vmem:[#allocation2 + $0xe8] sm:$0xff]
        %v3010 = vld [vmem:[#allocation2 + $0xf8] sm:$0xff]
        %v3011 = vld [vmem:[#allocation2 + $0x100] sm:$0xff]
        %v3012 = vld [vmem:[#allocation2 + $0x108] sm:$0xff]
        %v3013 = vld [vmem:[#allocation2 + $0x110] sm:$0xff]
        %v3014 = vld [vmem:[#allocation2 + $0x118] sm:$0xff]
        %v3015 = vld [vmem:[#allocation2 + $0x128] sm:$0xff]
        %v3016 = vld [vmem:[#allocation2 + $0x130] sm:$0xff]
        %v3017 = vld [vmem:[#allocation2 + $0x138] sm:$0xff]
        %v3018 = vld [vmem:[#allocation2 + $0x140] sm:$0xff]
        %v3019 = vld [vmem:[#allocation2 + $0x148] sm:$0xff]
        %v3020 = vld [vmem:[#allocation2 + $0x158] sm:$0xff]
        %v3021 = vld [vmem:[#allocation2 + $0x160] sm:$0xff]
        %v3022 = vld [vmem:[#allocation2 + $0x168] sm:$0xff]
        %v3023 = vld [vmem:[#allocation2 + $0x170] sm:$0xff]
        %v3024 = vld [vmem:[#allocation2 + $0x178] sm:$0xff]
        %s3025 = scalar_lea.vmem [#allocation5], 32
        %v3026 = vld [vmem:[%s3025] ss:$8 sm:$0xf]
        %vm3027 = vcmp.gt.f32.partialorder %v3026, 0.5
        %v3028 = vsel %vm3027, 1, 0
        %v3029 = vlaneseq
        %v3030 = vshrl.u32 %v3029, 7
        %v3031 = vsub.s32 0, %v3030
        %v3032 = vrot.slane %v3028, %v3031
        %v3033 = vlaneseq
        %v3034 = vshrl.u32 %v3033, 7
        %v3035 = vsub.s32 1, %v3034
        %v3036 = vrot.slane %v3028, %v3035
        %v3037 = vlaneseq
        %v3038 = vshrl.u32 %v3037, 7
        %v3039 = vsub.s32 2, %v3038
        %v3040 = vrot.slane %v3028, %v3039
        %v3041 = vlaneseq
        %v3042 = vshrl.u32 %v3041, 7
        %v3043 = vsub.s32 3, %v3042
        %v3044 = vrot.slane %v3028, %v3043
        %vm3045 = vcmp.eq.s32.totalorder %v3032, 1
        %vm3046 = vcmp.eq.s32.totalorder %v3036, 1
        %vm3047 = vcmp.eq.s32.totalorder %v3040, 1
        %vm3048 = vcmp.eq.s32.totalorder %v3044, 1
        %3089 = vrot.lane.b32.xlu0 %v2985, 111
        %v3090 = vpop.permute.xlu0 %3089
        %3091 = vrot.lane.b32.xlu0 %v2986, 111
        %v3092 = vpop.permute.xlu0 %3091
        %3093 = vrot.lane.b32.xlu0 %v2987, 111
        %v3094 = vpop.permute.xlu0 %3093
        %3095 = vrot.lane.b32.xlu0 %v2988, 111
        %v3096 = vpop.permute.xlu0 %3095
        %3097 = vrot.lane.b32.xlu0 %v2989, 111
        %v3098 = vpop.permute.xlu0 %3097
        %3099 = vrot.lane.b32.xlu0 %v2990, 111
        %v3100 = vpop.permute.xlu0 %3099
        %3101 = vrot.lane.b32.xlu0 %v2991, 111
        %v3102 = vpop.permute.xlu0 %3101
        %3103 = vrot.lane.b32.xlu0 %v2992, 111
        %v3104 = vpop.permute.xlu0 %3103
        %3105 = vrot.lane.b32.xlu0 %v2993, 111
        %v3106 = vpop.permute.xlu0 %3105
        %3107 = vrot.lane.b32.xlu0 %v2994, 111
        %v3108 = vpop.permute.xlu0 %3107
        %3109 = vrot.lane.b32.xlu0 %v2995, 111
        %v3110 = vpop.permute.xlu0 %3109
        %3111 = vrot.lane.b32.xlu0 %v2996, 111
        %v3112 = vpop.permute.xlu0 %3111
        %3113 = vrot.lane.b32.xlu0 %v2997, 111
        %v3114 = vpop.permute.xlu0 %3113
        %3115 = vrot.lane.b32.xlu0 %v2998, 111
        %v3116 = vpop.permute.xlu0 %3115
        %3117 = vrot.lane.b32.xlu0 %v2999, 111
        %v3118 = vpop.permute.xlu0 %3117
        %3119 = vrot.lane.b32.xlu0 %v3000, 111
        %v3120 = vpop.permute.xlu0 %3119
        %3121 = vrot.lane.b32.xlu0 %v3001, 111
        %v3122 = vpop.permute.xlu0 %3121
        %3123 = vrot.lane.b32.xlu0 %v3002, 111
        %v3124 = vpop.permute.xlu0 %3123
        %3125 = vrot.lane.b32.xlu0 %v3003, 111
        %v3126 = vpop.permute.xlu0 %3125
        %3127 = vrot.lane.b32.xlu0 %v3004, 111
        %v3128 = vpop.permute.xlu0 %3127
        %3129 = vrot.lane.b32.xlu0 %v3005, 111
        %v3130 = vpop.permute.xlu0 %3129
        %3131 = vrot.lane.b32.xlu0 %v3006, 111
        %v3132 = vpop.permute.xlu0 %3131
        %3133 = vrot.lane.b32.xlu0 %v3007, 111
        %v3134 = vpop.permute.xlu0 %3133
        %3135 = vrot.lane.b32.xlu0 %v3008, 111
        %v3136 = vpop.permute.xlu0 %3135
        %3137 = vrot.lane.b32.xlu0 %v3009, 111
        %v3138 = vpop.permute.xlu0 %3137
        %3139 = vrot.lane.b32.xlu0 %v3010, 111
        %v3140 = vpop.permute.xlu0 %3139
        %3141 = vrot.lane.b32.xlu0 %v3011, 111
        %v3142 = vpop.permute.xlu0 %3141
        %3143 = vrot.lane.b32.xlu0 %v3012, 111
        %v3144 = vpop.permute.xlu0 %3143
        %3145 = vrot.lane.b32.xlu0 %v3013, 111
        %v3146 = vpop.permute.xlu0 %3145
        %3147 = vrot.lane.b32.xlu0 %v3014, 111
        %v3148 = vpop.permute.xlu0 %3147
        %3149 = vrot.lane.b32.xlu0 %v3015, 111
        %v3150 = vpop.permute.xlu0 %3149
        %3151 = vrot.lane.b32.xlu0 %v3016, 111
        %v3152 = vpop.permute.xlu0 %3151
        %3153 = vrot.lane.b32.xlu0 %v3017, 111
        %v3154 = vpop.permute.xlu0 %3153
        %3155 = vrot.lane.b32.xlu0 %v3018, 111
        %v3156 = vpop.permute.xlu0 %3155
        %3157 = vrot.lane.b32.xlu0 %v3019, 111
        %v3158 = vpop.permute.xlu0 %3157
        %3159 = vrot.lane.b32.xlu0 %v3020, 111
        %v3160 = vpop.permute.xlu0 %3159
        %3161 = vrot.lane.b32.xlu0 %v3021, 111
        %v3162 = vpop.permute.xlu0 %3161
        %3163 = vrot.lane.b32.xlu0 %v3022, 111
        %v3164 = vpop.permute.xlu0 %3163
        %3165 = vrot.lane.b32.xlu0 %v3023, 111
        %v3166 = vpop.permute.xlu0 %3165
        %3167 = vrot.lane.b32.xlu0 %v3024, 111
        %v3168 = vpop.permute.xlu0 %3167
        %vm3169 = vcmask 908288
        %v3170 = vsel %vm3169, %v3090, %v3092
        %v3171 = vsel %vm3169, %v3092, %v3094
        %v3172 = vsel %vm3169, %v3094, %v3096
        %v3173 = vsel %vm3169, %v3096, %v3098
        %v3174 = vsel %vm3169, %v3100, %v3102
        %v3175 = vsel %vm3169, %v3102, %v3104
        %v3176 = vsel %vm3169, %v3104, %v3106
        %v3177 = vsel %vm3169, %v3106, %v3108
        %v3178 = vsel %vm3169, %v3110, %v3112
        %v3179 = vsel %vm3169, %v3112, %v3114
        %v3180 = vsel %vm3169, %v3114, %v3116
        %v3181 = vsel %vm3169, %v3116, %v3118
        %v3182 = vsel %vm3169, %v3120, %v3122
        %v3183 = vsel %vm3169, %v3122, %v3124
        %v3184 = vsel %vm3169, %v3124, %v3126
        %v3185 = vsel %vm3169, %v3126, %v3128
        %v3186 = vsel %vm3169, %v3130, %v3132
        %v3187 = vsel %vm3169, %v3132, %v3134
        %v3188 = vsel %vm3169, %v3134, %v3136
        %v3189 = vsel %vm3169, %v3136, %v3138
        %v3190 = vsel %vm3169, %v3140, %v3142
        %v3191 = vsel %vm3169, %v3142, %v3144
        %v3192 = vsel %vm3169, %v3144, %v3146
        %v3193 = vsel %vm3169, %v3146, %v3148
        %v3194 = vsel %vm3169, %v3150, %v3152
        %v3195 = vsel %vm3169, %v3152, %v3154
        %v3196 = vsel %vm3169, %v3154, %v3156
        %v3197 = vsel %vm3169, %v3156, %v3158
        %v3198 = vsel %vm3169, %v3160, %v3162
        %v3199 = vsel %vm3169, %v3162, %v3164
        %v3200 = vsel %vm3169, %v3164, %v3166
        %v3201 = vsel %vm3169, %v3166, %v3168
        %v3234 = vsel %vm3045, %v3170, 0.0
        %v3235 = vsel %vm3046, %v3171, 0.0
        %v3236 = vsel %vm3047, %v3172, 0.0
        %v3237 = vsel %vm3048, %v3173, 0.0
        %v3238 = vsel %vm3045, %v3174, 0.0
        %v3239 = vsel %vm3046, %v3175, 0.0
        %v3240 = vsel %vm3047, %v3176, 0.0
        %v3241 = vsel %vm3048, %v3177, 0.0
        %v3242 = vsel %vm3045, %v3178, 0.0
        %v3243 = vsel %vm3046, %v3179, 0.0
        %v3244 = vsel %vm3047, %v3180, 0.0
        %v3245 = vsel %vm3048, %v3181, 0.0
        %v3246 = vsel %vm3045, %v3182, 0.0
        %v3247 = vsel %vm3046, %v3183, 0.0
        %v3248 = vsel %vm3047, %v3184, 0.0
        %v3249 = vsel %vm3048, %v3185, 0.0
        %v3250 = vsel %vm3045, %v3186, 0.0
        %v3251 = vsel %vm3046, %v3187, 0.0
        %v3252 = vsel %vm3047, %v3188, 0.0
        %v3253 = vsel %vm3048, %v3189, 0.0
        %v3254 = vsel %vm3045, %v3190, 0.0
        %v3255 = vsel %vm3046, %v3191, 0.0
        %v3256 = vsel %vm3047, %v3192, 0.0
        %v3257 = vsel %vm3048, %v3193, 0.0
        %v3258 = vsel %vm3045, %v3194, 0.0
        %v3259 = vsel %vm3046, %v3195, 0.0
        %v3260 = vsel %vm3047, %v3196, 0.0
        %v3261 = vsel %vm3048, %v3197, 0.0
        %v3262 = vsel %vm3045, %v3198, 0.0
        %v3263 = vsel %vm3046, %v3199, 0.0
        %v3264 = vsel %vm3047, %v3200, 0.0
        %v3265 = vsel %vm3048, %v3201, 0.0
        %3266 = vst [vmem:[#allocation3 + $0x800] sm:$0xff] %v3234
        %3267 = vst [vmem:[#allocation3 + $0x808] sm:$0xff] %v3235
        %3268 = vst [vmem:[#allocation3 + $0x810] sm:$0xff] %v3236
        %3269 = vst [vmem:[#allocation3 + $0x818] sm:$0xff] %v3237
        %3270 = vst [vmem:[#allocation3 + $0x820] sm:$0xff] %v3238
        %3271 = vst [vmem:[#allocation3 + $0x828] sm:$0xff] %v3239
        %3272 = vst [vmem:[#allocation3 + $0x830] sm:$0xff] %v3240
        %3273 = vst [vmem:[#allocation3 + $0x838] sm:$0xff] %v3241
        %3274 = vst [vmem:[#allocation3 + $0x840] sm:$0xff] %v3242
        %3275 = vst [vmem:[#allocation3 + $0x848] sm:$0xff] %v3243
        %3276 = vst [vmem:[#allocation3 + $0x850] sm:$0xff] %v3244
        %3277 = vst [vmem:[#allocation3 + $0x858] sm:$0xff] %v3245
        %3278 = vst [vmem:[#allocation3 + $0x860] sm:$0xff] %v3246
        %3279 = vst [vmem:[#allocation3 + $0x868] sm:$0xff] %v3247
        %3280 = vst [vmem:[#allocation3 + $0x870] sm:$0xff] %v3248
        %3281 = vst [vmem:[#allocation3 + $0x878] sm:$0xff] %v3249
        %3282 = vst [vmem:[#allocation3 + $0x880] sm:$0xff] %v3250
        %3283 = vst [vmem:[#allocation3 + $0x888] sm:$0xff] %v3251
        %3284 = vst [vmem:[#allocation3 + $0x890] sm:$0xff] %v3252
        %3285 = vst [vmem:[#allocation3 + $0x898] sm:$0xff] %v3253
        %3286 = vst [vmem:[#allocation3 + $0x8a0] sm:$0xff] %v3254
        %3287 = vst [vmem:[#allocation3 + $0x8a8] sm:$0xff] %v3255
        %3288 = vst [vmem:[#allocation3 + $0x8b0] sm:$0xff] %v3256
        %3289 = vst [vmem:[#allocation3 + $0x8b8] sm:$0xff] %v3257
        %3290 = vst [vmem:[#allocation3 + $0x8c0] sm:$0xff] %v3258
        %3291 = vst [vmem:[#allocation3 + $0x8c8] sm:$0xff] %v3259
        %3292 = vst [vmem:[#allocation3 + $0x8d0] sm:$0xff] %v3260
        %3293 = vst [vmem:[#allocation3 + $0x8d8] sm:$0xff] %v3261
        %3294 = vst [vmem:[#allocation3 + $0x8e0] sm:$0xff] %v3262
        %3295 = vst [vmem:[#allocation3 + $0x8e8] sm:$0xff] %v3263
        %3296 = vst [vmem:[#allocation3 + $0x8f0] sm:$0xff] %v3264
        %3297 = vst [vmem:[#allocation3 + $0x8f8] sm:$0xff] %v3265
        %v3298 = vld [vmem:[%s4] sm:$0xff]
        %v3299 = vld [vmem:[%s4 + $0x8] sm:$0xff]
        %v3300 = vld [vmem:[%s4 + $0x10] sm:$0xff]
        %v3301 = vld [vmem:[%s4 + $0x18] sm:$0xff]
        %v3302 = vld [vmem:[%s4 + $0x20] sm:$0xff]
        %v3303 = vld [vmem:[%s4 + $0x28] sm:$0xff]
        %v3304 = vld [vmem:[%s4 + $0x30] sm:$0xff]
        %v3305 = vld [vmem:[%s4 + $0x38] sm:$0xff]
        %v3306 = vld [vmem:[%s4 + $0x40] sm:$0xff]
        %v3307 = vld [vmem:[%s4 + $0x48] sm:$0xff]
        %v3308 = vld [vmem:[%s4 + $0x50] sm:$0xff]
        %v3309 = vld [vmem:[%s4 + $0x58] sm:$0xff]
        %v3310 = vld [vmem:[%s4 + $0x60] sm:$0xff]
        %v3311 = vld [vmem:[%s4 + $0x68] sm:$0xff]
        %v3312 = vld [vmem:[%s4 + $0x70] sm:$0xff]
        %v3313 = vld [vmem:[%s4 + $0x78] sm:$0xff]
        %v3314 = vld [vmem:[%s4 + $0x80] sm:$0xff]
        %v3315 = vld [vmem:[%s4 + $0x88] sm:$0xff]
        %v3316 = vld [vmem:[%s4 + $0x90] sm:$0xff]
        %v3317 = vld [vmem:[%s4 + $0x98] sm:$0xff]
        %v3318 = vld [vmem:[#allocation3] sm:$0xff]
        %v3319 = vld [vmem:[#allocation3 + $0x8] sm:$0xff]
        %v3320 = vld [vmem:[#allocation3 + $0x10] sm:$0xff]
        %v3321 = vld [vmem:[#allocation3 + $0x18] sm:$0xff]
        %v3322 = vld [vmem:[#allocation3 + $0x20] sm:$0xff]
        %v3323 = vld [vmem:[#allocation3 + $0x28] sm:$0xff]
        %v3324 = vld [vmem:[#allocation3 + $0x30] sm:$0xff]
        %v3325 = vld [vmem:[#allocation3 + $0x38] sm:$0xff]
        %v3326 = vld [vmem:[#allocation3 + $0x40] sm:$0xff]
        %v3327 = vld [vmem:[#allocation3 + $0x48] sm:$0xff]
        %v3328 = vld [vmem:[#allocation3 + $0x50] sm:$0xff]
        %v3329 = vld [vmem:[#allocation3 + $0x58] sm:$0xff]
        %v3330 = vld [vmem:[#allocation3 + $0x60] sm:$0xff]
        %v3331 = vld [vmem:[#allocation3 + $0x68] sm:$0xff]
        %v3332 = vld [vmem:[#allocation3 + $0x70] sm:$0xff]
        %v3333 = vld [vmem:[#allocation3 + $0x78] sm:$0xff]
        %v3334 = vld [vmem:[#allocation3 + $0x80] sm:$0xff]
        %v3335 = vld [vmem:[#allocation3 + $0x88] sm:$0xff]
        %v3336 = vld [vmem:[#allocation3 + $0x90] sm:$0xff]
        %v3337 = vld [vmem:[#allocation3 + $0x98] sm:$0xff]
        %v3338 = vld [vmem:[#allocation3 + $0xa0] sm:$0xff]
        %v3339 = vld [vmem:[#allocation3 + $0xa8] sm:$0xff]
        %v3340 = vld [vmem:[#allocation3 + $0xb0] sm:$0xff]
        %v3341 = vld [vmem:[#allocation3 + $0xb8] sm:$0xff]
        %v3342 = vld [vmem:[#allocation3 + $0xc0] sm:$0xff]
        %v3343 = vld [vmem:[#allocation3 + $0xc8] sm:$0xff]
        %v3344 = vld [vmem:[#allocation3 + $0xd0] sm:$0xff]
        %v3345 = vld [vmem:[#allocation3 + $0xd8] sm:$0xff]
        %v3346 = vld [vmem:[#allocation3 + $0xe0] sm:$0xff]
        %v3347 = vld [vmem:[#allocation3 + $0xe8] sm:$0xff]
        %v3348 = vld [vmem:[#allocation3 + $0xf0] sm:$0xff]
        %v3349 = vld [vmem:[#allocation3 + $0xf8] sm:$0xff]
        %v3350 = vld [vmem:[#allocation3 + $0x100] sm:$0xff]
        %v3351 = vld [vmem:[#allocation3 + $0x108] sm:$0xff]
        %v3352 = vld [vmem:[#allocation3 + $0x110] sm:$0xff]
        %v3353 = vld [vmem:[#allocation3 + $0x118] sm:$0xff]
        %v3354 = vld [vmem:[#allocation3 + $0x120] sm:$0xff]
        %v3355 = vld [vmem:[#allocation3 + $0x128] sm:$0xff]
        %v3356 = vld [vmem:[#allocation3 + $0x130] sm:$0xff]
        %v3357 = vld [vmem:[#allocation3 + $0x138] sm:$0xff]
        %v3358 = vld [vmem:[#allocation3 + $0x140] sm:$0xff]
        %v3359 = vld [vmem:[#allocation3 + $0x148] sm:$0xff]
        %v3360 = vld [vmem:[#allocation3 + $0x150] sm:$0xff]
        %v3361 = vld [vmem:[#allocation3 + $0x158] sm:$0xff]
        %v3362 = vld [vmem:[#allocation3 + $0x160] sm:$0xff]
        %v3363 = vld [vmem:[#allocation3 + $0x168] sm:$0xff]
        %v3364 = vld [vmem:[#allocation3 + $0x170] sm:$0xff]
        %v3365 = vld [vmem:[#allocation3 + $0x178] sm:$0xff]
        %v3366 = vld [vmem:[#allocation3 + $0x180] sm:$0xff]
        %v3367 = vld [vmem:[#allocation3 + $0x188] sm:$0xff]
        %v3368 = vld [vmem:[#allocation3 + $0x190] sm:$0xff]
        %v3369 = vld [vmem:[#allocation3 + $0x198] sm:$0xff]
        %v3370 = vld [vmem:[#allocation3 + $0x1a0] sm:$0xff]
        %v3371 = vld [vmem:[#allocation3 + $0x1a8] sm:$0xff]
        %v3372 = vld [vmem:[#allocation3 + $0x1b0] sm:$0xff]
        %v3373 = vld [vmem:[#allocation3 + $0x1b8] sm:$0xff]
        %v3374 = vld [vmem:[#allocation3 + $0x1c0] sm:$0xff]
        %v3375 = vld [vmem:[#allocation3 + $0x1c8] sm:$0xff]
        %v3376 = vld [vmem:[#allocation3 + $0x1d0] sm:$0xff]
        %v3377 = vld [vmem:[#allocation3 + $0x1d8] sm:$0xff]
        %v3378 = vld [vmem:[#allocation3 + $0x1e0] sm:$0xff]
        %v3379 = vld [vmem:[#allocation3 + $0x1e8] sm:$0xff]
        %v3380 = vld [vmem:[#allocation3 + $0x1f0] sm:$0xff]
        %v3381 = vld [vmem:[#allocation3 + $0x1f8] sm:$0xff]
        %v3382 = vld [vmem:[#allocation3 + $0x200] sm:$0xff]
        %v3383 = vld [vmem:[#allocation3 + $0x208] sm:$0xff]
        %v3384 = vld [vmem:[#allocation3 + $0x210] sm:$0xff]
        %v3385 = vld [vmem:[#allocation3 + $0x218] sm:$0xff]
        %v3386 = vld [vmem:[#allocation3 + $0x220] sm:$0xff]
        %v3387 = vld [vmem:[#allocation3 + $0x228] sm:$0xff]
        %v3388 = vld [vmem:[#allocation3 + $0x230] sm:$0xff]
        %v3389 = vld [vmem:[#allocation3 + $0x238] sm:$0xff]
        %v3390 = vld [vmem:[#allocation3 + $0x240] sm:$0xff]
        %v3391 = vld [vmem:[#allocation3 + $0x248] sm:$0xff]
        %v3392 = vld [vmem:[#allocation3 + $0x250] sm:$0xff]
        %v3393 = vld [vmem:[#allocation3 + $0x258] sm:$0xff]
        %v3394 = vld [vmem:[#allocation3 + $0x260] sm:$0xff]
        %v3395 = vld [vmem:[#allocation3 + $0x268] sm:$0xff]
        %v3396 = vld [vmem:[#allocation3 + $0x270] sm:$0xff]
        %v3397 = vld [vmem:[#allocation3 + $0x278] sm:$0xff]
        %v3398 = vld [vmem:[#allocation3 + $0x280] sm:$0xff]
        %v3399 = vld [vmem:[#allocation3 + $0x288] sm:$0xff]
        %v3400 = vld [vmem:[#allocation3 + $0x290] sm:$0xff]
        %v3401 = vld [vmem:[#allocation3 + $0x298] sm:$0xff]
        %v3402 = vld [vmem:[#allocation3 + $0x2a0] sm:$0xff]
        %v3403 = vld [vmem:[#allocation3 + $0x2a8] sm:$0xff]
        %v3404 = vld [vmem:[#allocation3 + $0x2b0] sm:$0xff]
        %v3405 = vld [vmem:[#allocation3 + $0x2b8] sm:$0xff]
        %v3406 = vld [vmem:[#allocation3 + $0x2c0] sm:$0xff]
        %v3407 = vld [vmem:[#allocation3 + $0x2c8] sm:$0xff]
        %v3408 = vld [vmem:[#allocation3 + $0x2d0] sm:$0xff]
        %v3409 = vld [vmem:[#allocation3 + $0x2d8] sm:$0xff]
        %v3410 = vld [vmem:[#allocation3 + $0x2e0] sm:$0xff]
        %v3411 = vld [vmem:[#allocation3 + $0x2e8] sm:$0xff]
        %v3412 = vld [vmem:[#allocation3 + $0x2f0] sm:$0xff]
        %v3413 = vld [vmem:[#allocation3 + $0x2f8] sm:$0xff]
        %v3414 = vld [vmem:[#allocation3 + $0x300] sm:$0xff]
        %v3415 = vld [vmem:[#allocation3 + $0x308] sm:$0xff]
        %v3416 = vld [vmem:[#allocation3 + $0x310] sm:$0xff]
        %v3417 = vld [vmem:[#allocation3 + $0x318] sm:$0xff]
        %v3418 = vld [vmem:[#allocation3 + $0x320] sm:$0xff]
        %v3419 = vld [vmem:[#allocation3 + $0x328] sm:$0xff]
        %v3420 = vld [vmem:[#allocation3 + $0x330] sm:$0xff]
        %v3421 = vld [vmem:[#allocation3 + $0x338] sm:$0xff]
        %v3422 = vld [vmem:[#allocation3 + $0x340] sm:$0xff]
        %v3423 = vld [vmem:[#allocation3 + $0x348] sm:$0xff]
        %v3424 = vld [vmem:[#allocation3 + $0x350] sm:$0xff]
        %v3425 = vld [vmem:[#allocation3 + $0x358] sm:$0xff]
        %v3426 = vld [vmem:[#allocation3 + $0x360] sm:$0xff]
        %v3427 = vld [vmem:[#allocation3 + $0x368] sm:$0xff]
        %v3428 = vld [vmem:[#allocation3 + $0x370] sm:$0xff]
        %v3429 = vld [vmem:[#allocation3 + $0x378] sm:$0xff]
        %v3430 = vld [vmem:[#allocation3 + $0x380] sm:$0xff]
        %v3431 = vld [vmem:[#allocation3 + $0x388] sm:$0xff]
        %v3432 = vld [vmem:[#allocation3 + $0x390] sm:$0xff]
        %v3433 = vld [vmem:[#allocation3 + $0x398] sm:$0xff]
        %v3434 = vld [vmem:[#allocation3 + $0x3a0] sm:$0xff]
        %v3435 = vld [vmem:[#allocation3 + $0x3a8] sm:$0xff]
        %v3436 = vld [vmem:[#allocation3 + $0x3b0] sm:$0xff]
        %v3437 = vld [vmem:[#allocation3 + $0x3b8] sm:$0xff]
        %v3438 = vld [vmem:[#allocation3 + $0x3c0] sm:$0xff]
        %v3439 = vld [vmem:[#allocation3 + $0x3c8] sm:$0xff]
        %v3440 = vld [vmem:[#allocation3 + $0x3d0] sm:$0xff]
        %v3441 = vld [vmem:[#allocation3 + $0x3d8] sm:$0xff]
        %v3442 = vld [vmem:[#allocation3 + $0x3e0] sm:$0xff]
        %v3443 = vld [vmem:[#allocation3 + $0x3e8] sm:$0xff]
        %v3444 = vld [vmem:[#allocation3 + $0x3f0] sm:$0xff]
        %v3445 = vld [vmem:[#allocation3 + $0x3f8] sm:$0xff]
        %v3446 = vld [vmem:[#allocation3 + $0x400] sm:$0xff]
        %v3447 = vld [vmem:[#allocation3 + $0x408] sm:$0xff]
        %v3448 = vld [vmem:[#allocation3 + $0x410] sm:$0xff]
        %v3449 = vld [vmem:[#allocation3 + $0x418] sm:$0xff]
        %v3450 = vld [vmem:[#allocation3 + $0x420] sm:$0xff]
        %v3451 = vld [vmem:[#allocation3 + $0x428] sm:$0xff]
        %v3452 = vld [vmem:[#allocation3 + $0x430] sm:$0xff]
        %v3453 = vld [vmem:[#allocation3 + $0x438] sm:$0xff]
        %v3454 = vld [vmem:[#allocation3 + $0x440] sm:$0xff]
        %v3455 = vld [vmem:[#allocation3 + $0x448] sm:$0xff]
        %v3456 = vld [vmem:[#allocation3 + $0x450] sm:$0xff]
        %v3457 = vld [vmem:[#allocation3 + $0x458] sm:$0xff]
        %v3458 = vld [vmem:[#allocation3 + $0x460] sm:$0xff]
        %v3459 = vld [vmem:[#allocation3 + $0x468] sm:$0xff]
        %v3460 = vld [vmem:[#allocation3 + $0x470] sm:$0xff]
        %v3461 = vld [vmem:[#allocation3 + $0x478] sm:$0xff]
        %v3462 = vld [vmem:[#allocation3 + $0x480] sm:$0xff]
        %v3463 = vld [vmem:[#allocation3 + $0x488] sm:$0xff]
        %v3464 = vld [vmem:[#allocation3 + $0x490] sm:$0xff]
        %v3465 = vld [vmem:[#allocation3 + $0x498] sm:$0xff]
        %v3466 = vld [vmem:[#allocation3 + $0x4a0] sm:$0xff]
        %v3467 = vld [vmem:[#allocation3 + $0x4a8] sm:$0xff]
        %v3468 = vld [vmem:[#allocation3 + $0x4b0] sm:$0xff]
        %v3469 = vld [vmem:[#allocation3 + $0x4b8] sm:$0xff]
        %v3470 = vld [vmem:[#allocation3 + $0x4c0] sm:$0xff]
        %v3471 = vld [vmem:[#allocation3 + $0x4c8] sm:$0xff]
        %v3472 = vld [vmem:[#allocation3 + $0x4d0] sm:$0xff]
        %v3473 = vld [vmem:[#allocation3 + $0x4d8] sm:$0xff]
        %v3474 = vld [vmem:[#allocation3 + $0x4e0] sm:$0xff]
        %v3475 = vld [vmem:[#allocation3 + $0x4e8] sm:$0xff]
        %v3476 = vld [vmem:[#allocation3 + $0x4f0] sm:$0xff]
        %v3477 = vld [vmem:[#allocation3 + $0x4f8] sm:$0xff]
        %v3478 = vld [vmem:[#allocation3 + $0x500] sm:$0xff]
        %v3479 = vld [vmem:[#allocation3 + $0x508] sm:$0xff]
        %v3480 = vld [vmem:[#allocation3 + $0x510] sm:$0xff]
        %v3481 = vld [vmem:[#allocation3 + $0x518] sm:$0xff]
        %v3482 = vld [vmem:[#allocation3 + $0x520] sm:$0xff]
        %v3483 = vld [vmem:[#allocation3 + $0x528] sm:$0xff]
        %v3484 = vld [vmem:[#allocation3 + $0x530] sm:$0xff]
        %v3485 = vld [vmem:[#allocation3 + $0x538] sm:$0xff]
        %v3486 = vld [vmem:[#allocation3 + $0x540] sm:$0xff]
        %v3487 = vld [vmem:[#allocation3 + $0x548] sm:$0xff]
        %v3488 = vld [vmem:[#allocation3 + $0x550] sm:$0xff]
        %v3489 = vld [vmem:[#allocation3 + $0x558] sm:$0xff]
        %v3490 = vld [vmem:[#allocation3 + $0x560] sm:$0xff]
        %v3491 = vld [vmem:[#allocation3 + $0x568] sm:$0xff]
        %v3492 = vld [vmem:[#allocation3 + $0x570] sm:$0xff]
        %v3493 = vld [vmem:[#allocation3 + $0x578] sm:$0xff]
        %v3494 = vld [vmem:[#allocation3 + $0x580] sm:$0xff]
        %v3495 = vld [vmem:[#allocation3 + $0x588] sm:$0xff]
        %v3496 = vld [vmem:[#allocation3 + $0x590] sm:$0xff]
        %v3497 = vld [vmem:[#allocation3 + $0x598] sm:$0xff]
        %v3498 = vld [vmem:[#allocation3 + $0x5a0] sm:$0xff]
        %v3499 = vld [vmem:[#allocation3 + $0x5a8] sm:$0xff]
        %v3500 = vld [vmem:[#allocation3 + $0x5b0] sm:$0xff]
        %v3501 = vld [vmem:[#allocation3 + $0x5b8] sm:$0xff]
        %v3502 = vld [vmem:[#allocation3 + $0x5c0] sm:$0xff]
        %v3503 = vld [vmem:[#allocation3 + $0x5c8] sm:$0xff]
        %v3504 = vld [vmem:[#allocation3 + $0x5d0] sm:$0xff]
        %v3505 = vld [vmem:[#allocation3 + $0x5d8] sm:$0xff]
        %v3506 = vld [vmem:[#allocation3 + $0x5e0] sm:$0xff]
        %v3507 = vld [vmem:[#allocation3 + $0x5e8] sm:$0xff]
        %v3508 = vld [vmem:[#allocation3 + $0x5f0] sm:$0xff]
        %v3509 = vld [vmem:[#allocation3 + $0x5f8] sm:$0xff]
        %v3510 = vld [vmem:[#allocation3 + $0x600] sm:$0xff]
        %v3511 = vld [vmem:[#allocation3 + $0x608] sm:$0xff]
        %v3512 = vld [vmem:[#allocation3 + $0x610] sm:$0xff]
        %v3513 = vld [vmem:[#allocation3 + $0x618] sm:$0xff]
        %v3514 = vld [vmem:[#allocation3 + $0x620] sm:$0xff]
        %v3515 = vld [vmem:[#allocation3 + $0x628] sm:$0xff]
        %v3516 = vld [vmem:[#allocation3 + $0x630] sm:$0xff]
        %v3517 = vld [vmem:[#allocation3 + $0x638] sm:$0xff]
        %v3518 = vld [vmem:[#allocation3 + $0x640] sm:$0xff]
        %v3519 = vld [vmem:[#allocation3 + $0x648] sm:$0xff]
        %v3520 = vld [vmem:[#allocation3 + $0x650] sm:$0xff]
        %v3521 = vld [vmem:[#allocation3 + $0x658] sm:$0xff]
        %v3522 = vld [vmem:[#allocation3 + $0x660] sm:$0xff]
        %v3523 = vld [vmem:[#allocation3 + $0x668] sm:$0xff]
        %v3524 = vld [vmem:[#allocation3 + $0x670] sm:$0xff]
        %v3525 = vld [vmem:[#allocation3 + $0x678] sm:$0xff]
        %v3526 = vld [vmem:[#allocation3 + $0x680] sm:$0xff]
        %v3527 = vld [vmem:[#allocation3 + $0x688] sm:$0xff]
        %v3528 = vld [vmem:[#allocation3 + $0x690] sm:$0xff]
        %v3529 = vld [vmem:[#allocation3 + $0x698] sm:$0xff]
        %v3530 = vld [vmem:[#allocation3 + $0x6a0] sm:$0xff]
        %v3531 = vld [vmem:[#allocation3 + $0x6a8] sm:$0xff]
        %v3532 = vld [vmem:[#allocation3 + $0x6b0] sm:$0xff]
        %v3533 = vld [vmem:[#allocation3 + $0x6b8] sm:$0xff]
        %v3534 = vld [vmem:[#allocation3 + $0x6c0] sm:$0xff]
        %v3535 = vld [vmem:[#allocation3 + $0x6c8] sm:$0xff]
        %v3536 = vld [vmem:[#allocation3 + $0x6d0] sm:$0xff]
        %v3537 = vld [vmem:[#allocation3 + $0x6d8] sm:$0xff]
        %v3538 = vld [vmem:[#allocation3 + $0x6e0] sm:$0xff]
        %v3539 = vld [vmem:[#allocation3 + $0x6e8] sm:$0xff]
        %v3540 = vld [vmem:[#allocation3 + $0x6f0] sm:$0xff]
        %v3541 = vld [vmem:[#allocation3 + $0x6f8] sm:$0xff]
        %v3542 = vld [vmem:[#allocation3 + $0x700] sm:$0xff]
        %v3543 = vld [vmem:[#allocation3 + $0x708] sm:$0xff]
        %v3544 = vld [vmem:[#allocation3 + $0x710] sm:$0xff]
        %v3545 = vld [vmem:[#allocation3 + $0x718] sm:$0xff]
        %v3546 = vld [vmem:[#allocation3 + $0x720] sm:$0xff]
        %v3547 = vld [vmem:[#allocation3 + $0x728] sm:$0xff]
        %v3548 = vld [vmem:[#allocation3 + $0x730] sm:$0xff]
        %v3549 = vld [vmem:[#allocation3 + $0x738] sm:$0xff]
        %v3550 = vld [vmem:[#allocation3 + $0x740] sm:$0xff]
        %v3551 = vld [vmem:[#allocation3 + $0x748] sm:$0xff]
        %v3552 = vld [vmem:[#allocation3 + $0x750] sm:$0xff]
        %v3553 = vld [vmem:[#allocation3 + $0x758] sm:$0xff]
        %v3554 = vld [vmem:[#allocation3 + $0x760] sm:$0xff]
        %v3555 = vld [vmem:[#allocation3 + $0x768] sm:$0xff]
        %v3556 = vld [vmem:[#allocation3 + $0x770] sm:$0xff]
        %v3557 = vld [vmem:[#allocation3 + $0x778] sm:$0xff]
        %v3558 = vld [vmem:[#allocation3 + $0x780] sm:$0xff]
        %v3559 = vld [vmem:[#allocation3 + $0x788] sm:$0xff]
        %v3560 = vld [vmem:[#allocation3 + $0x790] sm:$0xff]
        %v3561 = vld [vmem:[#allocation3 + $0x798] sm:$0xff]
        %v3562 = vld [vmem:[#allocation3 + $0x7a0] sm:$0xff]
        %v3563 = vld [vmem:[#allocation3 + $0x7a8] sm:$0xff]
        %v3564 = vld [vmem:[#allocation3 + $0x7b0] sm:$0xff]
        %v3565 = vld [vmem:[#allocation3 + $0x7b8] sm:$0xff]
        %v3566 = vld [vmem:[#allocation3 + $0x7c0] sm:$0xff]
        %v3567 = vld [vmem:[#allocation3 + $0x7c8] sm:$0xff]
        %v3568 = vld [vmem:[#allocation3 + $0x7d0] sm:$0xff]
        %v3569 = vld [vmem:[#allocation3 + $0x7d8] sm:$0xff]
        %v3570 = vld [vmem:[#allocation3 + $0x7e0] sm:$0xff]
        %v3571 = vld [vmem:[#allocation3 + $0x7e8] sm:$0xff]
        %v3572 = vld [vmem:[#allocation3 + $0x7f0] sm:$0xff]
        %v3573 = vld [vmem:[#allocation3 + $0x7f8] sm:$0xff]
        %v3574 = vld [vmem:[#allocation3 + $0x800] sm:$0xff]
        %v3575 = vld [vmem:[#allocation3 + $0x808] sm:$0xff]
        %v3576 = vld [vmem:[#allocation3 + $0x810] sm:$0xff]
        %v3577 = vld [vmem:[#allocation3 + $0x818] sm:$0xff]
        %v3578 = vld [vmem:[#allocation3 + $0x820] sm:$0xff]
        %v3579 = vld [vmem:[#allocation3 + $0x828] sm:$0xff]
        %v3580 = vld [vmem:[#allocation3 + $0x830] sm:$0xff]
        %v3581 = vld [vmem:[#allocation3 + $0x838] sm:$0xff]
        %v3582 = vld [vmem:[#allocation3 + $0x840] sm:$0xff]
        %v3583 = vld [vmem:[#allocation3 + $0x848] sm:$0xff]
        %v3584 = vld [vmem:[#allocation3 + $0x850] sm:$0xff]
        %v3585 = vld [vmem:[#allocation3 + $0x858] sm:$0xff]
        %v3586 = vld [vmem:[#allocation3 + $0x860] sm:$0xff]
        %v3587 = vld [vmem:[#allocation3 + $0x868] sm:$0xff]
        %v3588 = vld [vmem:[#allocation3 + $0x870] sm:$0xff]
        %v3589 = vld [vmem:[#allocation3 + $0x878] sm:$0xff]
        %v3590 = vld [vmem:[#allocation3 + $0x880] sm:$0xff]
        %v3591 = vld [vmem:[#allocation3 + $0x888] sm:$0xff]
        %v3592 = vld [vmem:[#allocation3 + $0x890] sm:$0xff]
        %v3593 = vld [vmem:[#allocation3 + $0x898] sm:$0xff]
        %v3594 = vld [vmem:[#allocation3 + $0x8a0] sm:$0xff]
        %v3595 = vld [vmem:[#allocation3 + $0x8a8] sm:$0xff]
        %v3596 = vld [vmem:[#allocation3 + $0x8b0] sm:$0xff]
        %v3597 = vld [vmem:[#allocation3 + $0x8b8] sm:$0xff]
        %v3598 = vld [vmem:[#allocation3 + $0x8c0] sm:$0xff]
        %v3599 = vld [vmem:[#allocation3 + $0x8c8] sm:$0xff]
        %v3600 = vld [vmem:[#allocation3 + $0x8d0] sm:$0xff]
        %v3601 = vld [vmem:[#allocation3 + $0x8d8] sm:$0xff]
        %v3602 = vld [vmem:[#allocation3 + $0x8e0] sm:$0xff]
        %v3603 = vld [vmem:[#allocation3 + $0x8e8] sm:$0xff]
        %v3604 = vld [vmem:[#allocation3 + $0x8f0] sm:$0xff]
        %v3605 = vld [vmem:[#allocation3 + $0x8f8] sm:$0xff]
        %v3606 = vld [vmem:[%s5] sm:$0xff]
        %v3607 = vld [vmem:[%s5 + $0x8] sm:$0xff]
        %v3608 = vld [vmem:[%s5 + $0x10] sm:$0xff]
        %v3609 = vld [vmem:[%s5 + $0x18] sm:$0xff]
        %3611 = vset.pattern.permute.xlu0 0
        %3612 = vperm.xlu0 %3611, %v3606
        %v3613 = vpop.permute.xlu0 %3612
        %3616 = vset.pattern.permute.xlu0 0
        %3617 = vperm.xlu0 %3616, %v3607
        %v3618 = vpop.permute.xlu0 %3617
        %3621 = vset.pattern.permute.xlu0 0
        %3622 = vperm.xlu0 %3621, %v3608
        %v3623 = vpop.permute.xlu0 %3622
        %3626 = vset.pattern.permute.xlu0 0
        %3627 = vperm.xlu0 %3626, %v3609
        %v3628 = vpop.permute.xlu0 %3627
        %vm3630 = vcmask 523264
        %v3632 = vsel %vm3630, %v3302, 0
        %v3635 = vsel %vm3630, %v3307, 0
        %v3638 = vsel %vm3630, %v3312, 0
        %v3641 = vsel %vm3630, %v3317, 0
        %3643 = vmatprep.subr.mxu0 %v3379
        %3644 = vmatpush1.msra.mxu0 %v3378
        %3645 = vmatprep.subr.mxu0 %v3375
        %3646 = vmatpush1.msra.mxu0 %v3374
        %3647 = vmatprep.subr.mxu0 %v3371
        %3648 = vmatpush1.msra.mxu0 %v3370
        %3649 = vmatprep.subr.mxu0 %v3367
        %3650 = vmatpush1.msra.mxu0 %v3366
        %3651 = vmatprep.subr.mxu0 %v3363
        %3652 = vmatpush1.msra.mxu0 %v3362
        %3653 = vmatprep.subr.mxu0 %v3359
        %3654 = vmatpush1.msra.mxu0 %v3358
        %3655 = vmatprep.subr.mxu0 %v3355
        %3656 = vmatpush1.msra.mxu0 %v3354
        %3657 = vmatprep.subr.mxu0 %v3351
        %3658 = vmatpush1.msra.mxu0 %v3350
        %3659 = vmatprep.subr.mxu0 %v3347
        %3660 = vmatpush1.msra.mxu0 %v3346
        %3661 = vmatprep.subr.mxu0 %v3343
        %3662 = vmatpush1.msra.mxu0 %v3342
        %3663 = vmatprep.subr.mxu0 %v3339
        %3664 = vmatpush1.msra.mxu0 %v3338
        %3665 = vmatprep.subr.mxu0 %v3335
        %3666 = vmatpush1.msra.mxu0 %v3334
        %3667 = vmatprep.subr.mxu0 %v3331
        %3668 = vmatpush1.msra.mxu0 %v3330
        %3669 = vmatprep.subr.mxu0 %v3327
        %3670 = vmatpush1.msra.mxu0 %v3326
        %3671 = vmatprep.subr.mxu0 %v3323
        %3672 = vmatpush1.msra.mxu0 %v3322
        %3673 = vmatprep.subr.mxu0 %v3319
        %3674 = vmatpush1.msra.mxu0 %v3318
        %3675 = vmatprep.subr.mxu0 %v3443
        %3676 = vmatpush2.msra.mxu0 %v3442
        %3677 = vmatprep.subr.mxu0 %v3439
        %3678 = vmatpush2.msra.mxu0 %v3438
        %3679 = vmatprep.subr.mxu0 %v3435
        %3680 = vmatpush2.msra.mxu0 %v3434
        %3681 = vmatprep.subr.mxu0 %v3431
        %3682 = vmatpush2.msra.mxu0 %v3430
        %3683 = vmatprep.subr.mxu0 %v3427
        %3684 = vmatpush2.msra.mxu0 %v3426
        %3685 = vmatprep.subr.mxu0 %v3423
        %3686 = vmatpush2.msra.mxu0 %v3422
        %3687 = vmatprep.subr.mxu0 %v3419
        %3688 = vmatpush2.msra.mxu0 %v3418
        %3689 = vmatprep.subr.mxu0 %v3415
        %3690 = vmatpush2.msra.mxu0 %v3414
        %3691 = vmatprep.subr.mxu0 %v3411
        %3692 = vmatpush2.msra.mxu0 %v3410
        %3693 = vmatprep.subr.mxu0 %v3407
        %3694 = vmatpush2.msra.mxu0 %v3406
        %3695 = vmatprep.subr.mxu0 %v3403
        %3696 = vmatpush2.msra.mxu0 %v3402
        %3697 = vmatprep.subr.mxu0 %v3399
        %3698 = vmatpush2.msra.mxu0 %v3398
        %3699 = vmatprep.subr.mxu0 %v3395
        %3700 = vmatpush2.msra.mxu0 %v3394
        %3701 = vmatprep.subr.mxu0 %v3391
        %3702 = vmatpush2.msra.mxu0 %v3390
        %3703 = vmatprep.subr.mxu0 %v3387
        %3704 = vmatpush2.msra.mxu0 %v3386
        %3705 = vmatprep.subr.mxu0 %v3383
        %3706 = vmatpush2.msra.mxu0 %v3382
        %3707 = vmatprep.mubr.f32.mxu0 %v3299
        %3708 = vmatmul.mubr.f32.gmra.mxu0 %v3298
        %v3709 = vpop.f32.mrf.mxu0
        %v3710 = vadd.f32 %v3613, %v3709
        %v3711 = vpop.f32.mrf.mxu0
        %v3712 = vadd.f32 %v3613, %v3711
        %3713 = vmatprep.mubr.f32.mxu0 %v3304
        %3714 = vmatmul.mubr.f32.gmra.mxu0 %v3303
        %v3715 = vpop.f32.mrf.mxu0
        %v3716 = vadd.f32 %v3618, %v3715
        %v3717 = vpop.f32.mrf.mxu0
        %v3718 = vadd.f32 %v3618, %v3717
        %3719 = vmatprep.mubr.f32.mxu0 %v3309
        %3720 = vmatmul.mubr.f32.gmra.mxu0 %v3308
        %v3721 = vpop.f32.mrf.mxu0
        %v3722 = vadd.f32 %v3623, %v3721
        %v3723 = vpop.f32.mrf.mxu0
        %v3724 = vadd.f32 %v3623, %v3723
        %3725 = vmatprep.mubr.f32.mxu0 %v3314
        %3726 = vmatmul.mubr.f32.gmra.mxu0 %v3313
        %v3727 = vpop.f32.mrf.mxu0
        %v3728 = vadd.f32 %v3628, %v3727
        %v3729 = vpop.f32.mrf.mxu0
        %v3730 = vadd.f32 %v3628, %v3729
        %3731 = vdwg.mxu0
        %3732 = vmatprep.subr.mxu0 %v3507
        %3733 = vmatpush1.msra.mxu0 %v3506
        %3734 = vmatprep.subr.mxu0 %v3503
        %3735 = vmatpush1.msra.mxu0 %v3502
        %3736 = vmatprep.subr.mxu0 %v3499
        %3737 = vmatpush1.msra.mxu0 %v3498
        %3738 = vmatprep.subr.mxu0 %v3495
        %3739 = vmatpush1.msra.mxu0 %v3494
        %3740 = vmatprep.subr.mxu0 %v3491
        %3741 = vmatpush1.msra.mxu0 %v3490
        %3742 = vmatprep.subr.mxu0 %v3487
        %3743 = vmatpush1.msra.mxu0 %v3486
        %3744 = vmatprep.subr.mxu0 %v3483
        %3745 = vmatpush1.msra.mxu0 %v3482
        %3746 = vmatprep.subr.mxu0 %v3479
        %3747 = vmatpush1.msra.mxu0 %v3478
        %3748 = vmatprep.subr.mxu0 %v3475
        %3749 = vmatpush1.msra.mxu0 %v3474
        %3750 = vmatprep.subr.mxu0 %v3471
        %3751 = vmatpush1.msra.mxu0 %v3470
        %3752 = vmatprep.subr.mxu0 %v3467
        %3753 = vmatpush1.msra.mxu0 %v3466
        %3754 = vmatprep.subr.mxu0 %v3463
        %3755 = vmatpush1.msra.mxu0 %v3462
        %3756 = vmatprep.subr.mxu0 %v3459
        %3757 = vmatpush1.msra.mxu0 %v3458
        %3758 = vmatprep.subr.mxu0 %v3455
        %3759 = vmatpush1.msra.mxu0 %v3454
        %3760 = vmatprep.subr.mxu0 %v3451
        %3761 = vmatpush1.msra.mxu0 %v3450
        %3762 = vmatprep.subr.mxu0 %v3447
        %3763 = vmatpush1.msra.mxu0 %v3446
        %3764 = vmatprep.subr.mxu0 %v3571
        %3765 = vmatpush2.msra.mxu0 %v3570
        %3766 = vmatprep.subr.mxu0 %v3567
        %3767 = vmatpush2.msra.mxu0 %v3566
        %3768 = vmatprep.subr.mxu0 %v3563
        %3769 = vmatpush2.msra.mxu0 %v3562
        %3770 = vmatprep.subr.mxu0 %v3559
        %3771 = vmatpush2.msra.mxu0 %v3558
        %3772 = vmatprep.subr.mxu0 %v3555
        %3773 = vmatpush2.msra.mxu0 %v3554
        %3774 = vmatprep.subr.mxu0 %v3551
        %3775 = vmatpush2.msra.mxu0 %v3550
        %3776 = vmatprep.subr.mxu0 %v3547
        %3777 = vmatpush2.msra.mxu0 %v3546
        %3778 = vmatprep.subr.mxu0 %v3543
        %3779 = vmatpush2.msra.mxu0 %v3542
        %3780 = vmatprep.subr.mxu0 %v3539
        %3781 = vmatpush2.msra.mxu0 %v3538
        %3782 = vmatprep.subr.mxu0 %v3535
        %3783 = vmatpush2.msra.mxu0 %v3534
        %3784 = vmatprep.subr.mxu0 %v3531
        %3785 = vmatpush2.msra.mxu0 %v3530
        %3786 = vmatprep.subr.mxu0 %v3527
        %3787 = vmatpush2.msra.mxu0 %v3526
        %3788 = vmatprep.subr.mxu0 %v3523
        %3789 = vmatpush2.msra.mxu0 %v3522
        %3790 = vmatprep.subr.mxu0 %v3519
        %3791 = vmatpush2.msra.mxu0 %v3518
        %3792 = vmatprep.subr.mxu0 %v3515
        %3793 = vmatpush2.msra.mxu0 %v3514
        %3794 = vmatprep.subr.mxu0 %v3511
        %3795 = vmatpush2.msra.mxu0 %v3510
        %3796 = vmatprep.mubr.f32.mxu0 %v3301
        %3797 = vmatmul.mubr.f32.gmra.mxu0 %v3300
        %v3798 = vpop.f32.mrf.mxu0
        %v3799 = vadd.f32 %v3710, %v3798
        %v3800 = vpop.f32.mrf.mxu0
        %v3801 = vadd.f32 %v3712, %v3800
        %3802 = vmatprep.mubr.f32.mxu0 %v3306
        %3803 = vmatmul.mubr.f32.gmra.mxu0 %v3305
        %v3804 = vpop.f32.mrf.mxu0
        %v3805 = vadd.f32 %v3716, %v3804
        %v3806 = vpop.f32.mrf.mxu0
        %v3807 = vadd.f32 %v3718, %v3806
        %3808 = vmatprep.mubr.f32.mxu0 %v3311
        %3809 = vmatmul.mubr.f32.gmra.mxu0 %v3310
        %v3810 = vpop.f32.mrf.mxu0
        %v3811 = vadd.f32 %v3722, %v3810
        %v3812 = vpop.f32.mrf.mxu0
        %v3813 = vadd.f32 %v3724, %v3812
        %3814 = vmatprep.mubr.f32.mxu0 %v3316
        %3815 = vmatmul.mubr.f32.gmra.mxu0 %v3315
        %v3816 = vpop.f32.mrf.mxu0
        %v3817 = vadd.f32 %v3728, %v3816
        %v3818 = vpop.f32.mrf.mxu0
        %v3819 = vadd.f32 %v3730, %v3818
        %3820 = vdwg.mxu0
        %3821 = vmatprep.subr.mxu0 0.0
        %3822 = vmatpush1.msra.mxu0 0.0
        %3823 = vmatprep.subr.mxu0 0.0
        %3824 = vmatpush1.msra.mxu0 0.0
        %3825 = vmatprep.subr.mxu0 0.0
        %3826 = vmatpush1.msra.mxu0 0.0
        %3827 = vmatprep.subr.mxu0 0.0
        %3828 = vmatpush1.msra.mxu0 0.0
        %3829 = vmatprep.subr.mxu0 0.0
        %3830 = vmatpush1.msra.mxu0 0.0
        %3831 = vmatprep.subr.mxu0 0.0
        %3832 = vmatpush1.msra.mxu0 0.0
        %3833 = vmatprep.subr.mxu0 0.0
        %3834 = vmatpush1.msra.mxu0 0.0
        %3835 = vmatprep.subr.mxu0 0.0
        %3836 = vmatpush1.msra.mxu0 0.0
        %3837 = vmatprep.subr.mxu0 %v3603
        %3838 = vmatpush1.msra.mxu0 %v3602
        %3839 = vmatprep.subr.mxu0 %v3599
        %3840 = vmatpush1.msra.mxu0 %v3598
        %3841 = vmatprep.subr.mxu0 %v3595
        %3842 = vmatpush1.msra.mxu0 %v3594
        %3843 = vmatprep.subr.mxu0 %v3591
        %3844 = vmatpush1.msra.mxu0 %v3590
        %3845 = vmatprep.subr.mxu0 %v3587
        %3846 = vmatpush1.msra.mxu0 %v3586
        %3847 = vmatprep.subr.mxu0 %v3583
        %3848 = vmatpush1.msra.mxu0 %v3582
        %3849 = vmatprep.subr.mxu0 %v3579
        %3850 = vmatpush1.msra.mxu0 %v3578
        %3851 = vmatprep.subr.mxu0 %v3575
        %3852 = vmatpush1.msra.mxu0 %v3574
        %3853 = vmatprep.subr.mxu0 0.0
        %3854 = vmatpush2.msra.mxu0 0.0
        %3855 = vmatprep.subr.mxu0 0.0
        %3856 = vmatpush2.msra.mxu0 0.0
        %3857 = vmatprep.subr.mxu0 0.0
        %3858 = vmatpush2.msra.mxu0 0.0
        %3859 = vmatprep.subr.mxu0 0.0
        %3860 = vmatpush2.msra.mxu0 0.0
        %3861 = vmatprep.subr.mxu0 0.0
        %3862 = vmatpush2.msra.mxu0 0.0
        %3863 = vmatprep.subr.mxu0 0.0
        %3864 = vmatpush2.msra.mxu0 0.0
        %3865 = vmatprep.subr.mxu0 0.0
        %3866 = vmatpush2.msra.mxu0 0.0
        %3867 = vmatprep.subr.mxu0 0.0
        %3868 = vmatpush2.msra.mxu0 0.0
        %3869 = vmatprep.subr.mxu0 0.0
        %3870 = vmatpush2.msra.mxu0 0.0
        %3871 = vmatprep.subr.mxu0 0.0
        %3872 = vmatpush2.msra.mxu0 0.0
        %3873 = vmatprep.subr.mxu0 0.0
        %3874 = vmatpush2.msra.mxu0 0.0
        %3875 = vmatprep.subr.mxu0 0.0
        %3876 = vmatpush2.msra.mxu0 0.0
        %3877 = vmatprep.subr.mxu0 0.0
        %3878 = vmatpush2.msra.mxu0 0.0
        %3879 = vmatprep.subr.mxu0 0.0
        %3880 = vmatpush2.msra.mxu0 0.0
        %3881 = vmatprep.subr.mxu0 0.0
        %3882 = vmatpush2.msra.mxu0 0.0
        %3883 = vmatprep.subr.mxu0 0.0
        %3884 = vmatpush2.msra.mxu0 0.0
        %3885 = vmatprep.mubr.f32.mxu0 0.0
        %3886 = vmatmul.mubr.f32.gmra.mxu0 %v3632
        %v3887 = vpop.f32.mrf.mxu0
        %v3888 = vadd.f32 %v3799, %v3887
        %v3889 = vpop.f32.mrf.mxu0
        %v3890 = vadd.f32 %v3801, %v3889
        %3891 = vmatprep.mubr.f32.mxu0 0.0
        %3892 = vmatmul.mubr.f32.gmra.mxu0 %v3635
        %v3893 = vpop.f32.mrf.mxu0
        %v3894 = vadd.f32 %v3805, %v3893
        %v3895 = vpop.f32.mrf.mxu0
        %v3896 = vadd.f32 %v3807, %v3895
        %3897 = vmatprep.mubr.f32.mxu0 0.0
        %3898 = vmatmul.mubr.f32.gmra.mxu0 %v3638
        %v3899 = vpop.f32.mrf.mxu0
        %v3900 = vadd.f32 %v3811, %v3899
        %v3901 = vpop.f32.mrf.mxu0
        %v3902 = vadd.f32 %v3813, %v3901
        %3903 = vmatprep.mubr.f32.mxu0 0.0
        %3904 = vmatmul.mubr.f32.gmra.mxu0 %v3641
        %v3905 = vpop.f32.mrf.mxu0
        %v3906 = vadd.f32 %v3817, %v3905
        %v3907 = vpop.f32.mrf.mxu0
        %v3908 = vadd.f32 %v3819, %v3907
        %3909 = vdwg.mxu0
        %3910 = vmatprep.subr.mxu0 %v3381
        %3911 = vmatpush1.msra.mxu0 %v3380
        %3912 = vmatprep.subr.mxu0 %v3377
        %3913 = vmatpush1.msra.mxu0 %v3376
        %3914 = vmatprep.subr.mxu0 %v3373
        %3915 = vmatpush1.msra.mxu0 %v3372
        %3916 = vmatprep.subr.mxu0 %v3369
        %3917 = vmatpush1.msra.mxu0 %v3368
        %3918 = vmatprep.subr.mxu0 %v3365
        %3919 = vmatpush1.msra.mxu0 %v3364
        %3920 = vmatprep.subr.mxu0 %v3361
        %3921 = vmatpush1.msra.mxu0 %v3360
        %3922 = vmatprep.subr.mxu0 %v3357
        %3923 = vmatpush1.msra.mxu0 %v3356
        %3924 = vmatprep.subr.mxu0 %v3353
        %3925 = vmatpush1.msra.mxu0 %v3352
        %3926 = vmatprep.subr.mxu0 %v3349
        %3927 = vmatpush1.msra.mxu0 %v3348
        %3928 = vmatprep.subr.mxu0 %v3345
        %3929 = vmatpush1.msra.mxu0 %v3344
        %3930 = vmatprep.subr.mxu0 %v3341
        %3931 = vmatpush1.msra.mxu0 %v3340
        %3932 = vmatprep.subr.mxu0 %v3337
        %3933 = vmatpush1.msra.mxu0 %v3336
        %3934 = vmatprep.subr.mxu0 %v3333
        %3935 = vmatpush1.msra.mxu0 %v3332
        %3936 = vmatprep.subr.mxu0 %v3329
        %3937 = vmatpush1.msra.mxu0 %v3328
        %3938 = vmatprep.subr.mxu0 %v3325
        %3939 = vmatpush1.msra.mxu0 %v3324
        %3940 = vmatprep.subr.mxu0 %v3321
        %3941 = vmatpush1.msra.mxu0 %v3320
        %3942 = vmatprep.subr.mxu0 %v3445
        %3943 = vmatpush2.msra.mxu0 %v3444
        %3944 = vmatprep.subr.mxu0 %v3441
        %3945 = vmatpush2.msra.mxu0 %v3440
        %3946 = vmatprep.subr.mxu0 %v3437
        %3947 = vmatpush2.msra.mxu0 %v3436
        %3948 = vmatprep.subr.mxu0 %v3433
        %3949 = vmatpush2.msra.mxu0 %v3432
        %3950 = vmatprep.subr.mxu0 %v3429
        %3951 = vmatpush2.msra.mxu0 %v3428
        %3952 = vmatprep.subr.mxu0 %v3425
        %3953 = vmatpush2.msra.mxu0 %v3424
        %3954 = vmatprep.subr.mxu0 %v3421
        %3955 = vmatpush2.msra.mxu0 %v3420
        %3956 = vmatprep.subr.mxu0 %v3417
        %3957 = vmatpush2.msra.mxu0 %v3416
        %3958 = vmatprep.subr.mxu0 %v3413
        %3959 = vmatpush2.msra.mxu0 %v3412
        %3960 = vmatprep.subr.mxu0 %v3409
        %3961 = vmatpush2.msra.mxu0 %v3408
        %3962 = vmatprep.subr.mxu0 %v3405
        %3963 = vmatpush2.msra.mxu0 %v3404
        %3964 = vmatprep.subr.mxu0 %v3401
        %3965 = vmatpush2.msra.mxu0 %v3400
        %3966 = vmatprep.subr.mxu0 %v3397
        %3967 = vmatpush2.msra.mxu0 %v3396
        %3968 = vmatprep.subr.mxu0 %v3393
        %3969 = vmatpush2.msra.mxu0 %v3392
        %3970 = vmatprep.subr.mxu0 %v3389
        %3971 = vmatpush2.msra.mxu0 %v3388
        %3972 = vmatprep.subr.mxu0 %v3385
        %3973 = vmatpush2.msra.mxu0 %v3384
        %3974 = vmatprep.mubr.f32.mxu0 %v3299
        %3975 = vmatmul.mubr.f32.gmra.mxu0 %v3298
        %v3976 = vpop.f32.mrf.mxu0
        %v3977 = vadd.f32 %v3613, %v3976
        %v3978 = vpop.f32.mrf.mxu0
        %v3979 = vadd.f32 %v3613, %v3978
        %3980 = vmatprep.mubr.f32.mxu0 %v3304
        %3981 = vmatmul.mubr.f32.gmra.mxu0 %v3303
        %v3982 = vpop.f32.mrf.mxu0
        %v3983 = vadd.f32 %v3618, %v3982
        %v3984 = vpop.f32.mrf.mxu0
        %v3985 = vadd.f32 %v3618, %v3984
        %3986 = vmatprep.mubr.f32.mxu0 %v3309
        %3987 = vmatmul.mubr.f32.gmra.mxu0 %v3308
        %v3988 = vpop.f32.mrf.mxu0
        %v3989 = vadd.f32 %v3623, %v3988
        %v3990 = vpop.f32.mrf.mxu0
        %v3991 = vadd.f32 %v3623, %v3990
        %3992 = vmatprep.mubr.f32.mxu0 %v3314
        %3993 = vmatmul.mubr.f32.gmra.mxu0 %v3313
        %v3994 = vpop.f32.mrf.mxu0
        %v3995 = vadd.f32 %v3628, %v3994
        %v3996 = vpop.f32.mrf.mxu0
        %v3997 = vadd.f32 %v3628, %v3996
        %3998 = vdwg.mxu0
        %3999 = vmatprep.subr.mxu0 %v3509
        %4000 = vmatpush1.msra.mxu0 %v3508
        %4001 = vmatprep.subr.mxu0 %v3505
        %4002 = vmatpush1.msra.mxu0 %v3504
        %4003 = vmatprep.subr.mxu0 %v3501
        %4004 = vmatpush1.msra.mxu0 %v3500
        %4005 = vmatprep.subr.mxu0 %v3497
        %4006 = vmatpush1.msra.mxu0 %v3496
        %4007 = vmatprep.subr.mxu0 %v3493
        %4008 = vmatpush1.msra.mxu0 %v3492
        %4009 = vmatprep.subr.mxu0 %v3489
        %4010 = vmatpush1.msra.mxu0 %v3488
        %4011 = vmatprep.subr.mxu0 %v3485
        %4012 = vmatpush1.msra.mxu0 %v3484
        %4013 = vmatprep.subr.mxu0 %v3481
        %4014 = vmatpush1.msra.mxu0 %v3480
        %4015 = vmatprep.subr.mxu0 %v3477
        %4016 = vmatpush1.msra.mxu0 %v3476
        %4017 = vmatprep.subr.mxu0 %v3473
        %4018 = vmatpush1.msra.mxu0 %v3472
        %4019 = vmatprep.subr.mxu0 %v3469
        %4020 = vmatpush1.msra.mxu0 %v3468
        %4021 = vmatprep.subr.mxu0 %v3465
        %4022 = vmatpush1.msra.mxu0 %v3464
        %4023 = vmatprep.subr.mxu0 %v3461
        %4024 = vmatpush1.msra.mxu0 %v3460
        %4025 = vmatprep.subr.mxu0 %v3457
        %4026 = vmatpush1.msra.mxu0 %v3456
        %4027 = vmatprep.subr.mxu0 %v3453
        %4028 = vmatpush1.msra.mxu0 %v3452
        %4029 = vmatprep.subr.mxu0 %v3449
        %4030 = vmatpush1.msra.mxu0 %v3448
        %4031 = vmatprep.subr.mxu0 %v3573
        %4032 = vmatpush2.msra.mxu0 %v3572
        %4033 = vmatprep.subr.mxu0 %v3569
        %4034 = vmatpush2.msra.mxu0 %v3568
        %4035 = vmatprep.subr.mxu0 %v3565
        %4036 = vmatpush2.msra.mxu0 %v3564
        %4037 = vmatprep.subr.mxu0 %v3561
        %4038 = vmatpush2.msra.mxu0 %v3560
        %4039 = vmatprep.subr.mxu0 %v3557
        %4040 = vmatpush2.msra.mxu0 %v3556
        %4041 = vmatprep.subr.mxu0 %v3553
        %4042 = vmatpush2.msra.mxu0 %v3552
        %4043 = vmatprep.subr.mxu0 %v3549
        %4044 = vmatpush2.msra.mxu0 %v3548
        %4045 = vmatprep.subr.mxu0 %v3545
        %4046 = vmatpush2.msra.mxu0 %v3544
        %4047 = vmatprep.subr.mxu0 %v3541
        %4048 = vmatpush2.msra.mxu0 %v3540
        %4049 = vmatprep.subr.mxu0 %v3537
        %4050 = vmatpush2.msra.mxu0 %v3536
        %4051 = vmatprep.subr.mxu0 %v3533
        %4052 = vmatpush2.msra.mxu0 %v3532
        %4053 = vmatprep.subr.mxu0 %v3529
        %4054 = vmatpush2.msra.mxu0 %v3528
        %4055 = vmatprep.subr.mxu0 %v3525
        %4056 = vmatpush2.msra.mxu0 %v3524
        %4057 = vmatprep.subr.mxu0 %v3521
        %4058 = vmatpush2.msra.mxu0 %v3520
        %4059 = vmatprep.subr.mxu0 %v3517
        %4060 = vmatpush2.msra.mxu0 %v3516
        %4061 = vmatprep.subr.mxu0 %v3513
        %4062 = vmatpush2.msra.mxu0 %v3512
        %4063 = vmatprep.mubr.f32.mxu0 %v3301
        %4064 = vmatmul.mubr.f32.gmra.mxu0 %v3300
        %v4065 = vpop.f32.mrf.mxu0
        %v4066 = vadd.f32 %v3977, %v4065
        %v4067 = vpop.f32.mrf.mxu0
        %v4068 = vadd.f32 %v3979, %v4067
        %4069 = vmatprep.mubr.f32.mxu0 %v3306
        %4070 = vmatmul.mubr.f32.gmra.mxu0 %v3305
        %v4071 = vpop.f32.mrf.mxu0
        %v4072 = vadd.f32 %v3983, %v4071
        %v4073 = vpop.f32.mrf.mxu0
        %v4074 = vadd.f32 %v3985, %v4073
        %4075 = vmatprep.mubr.f32.mxu0 %v3311
        %4076 = vmatmul.mubr.f32.gmra.mxu0 %v3310
        %v4077 = vpop.f32.mrf.mxu0
        %v4078 = vadd.f32 %v3989, %v4077
        %v4079 = vpop.f32.mrf.mxu0
        %v4080 = vadd.f32 %v3991, %v4079
        %4081 = vmatprep.mubr.f32.mxu0 %v3316
        %4082 = vmatmul.mubr.f32.gmra.mxu0 %v3315
        %v4083 = vpop.f32.mrf.mxu0
        %v4084 = vadd.f32 %v3995, %v4083
        %v4085 = vpop.f32.mrf.mxu0
        %v4086 = vadd.f32 %v3997, %v4085
        %4087 = vdwg.mxu0
        %4088 = vmatprep.subr.mxu0 0.0
        %4089 = vmatpush1.msra.mxu0 0.0
        %4090 = vmatprep.subr.mxu0 0.0
        %4091 = vmatpush1.msra.mxu0 0.0
        %4092 = vmatprep.subr.mxu0 0.0
        %4093 = vmatpush1.msra.mxu0 0.0
        %4094 = vmatprep.subr.mxu0 0.0
        %4095 = vmatpush1.msra.mxu0 0.0
        %4096 = vmatprep.subr.mxu0 0.0
        %4097 = vmatpush1.msra.mxu0 0.0
        %4098 = vmatprep.subr.mxu0 0.0
        %4099 = vmatpush1.msra.mxu0 0.0
        %4100 = vmatprep.subr.mxu0 0.0
        %4101 = vmatpush1.msra.mxu0 0.0
        %4102 = vmatprep.subr.mxu0 0.0
        %4103 = vmatpush1.msra.mxu0 0.0
        %4104 = vmatprep.subr.mxu0 %v3605
        %4105 = vmatpush1.msra.mxu0 %v3604
        %4106 = vmatprep.subr.mxu0 %v3601
        %4107 = vmatpush1.msra.mxu0 %v3600
        %4108 = vmatprep.subr.mxu0 %v3597
        %4109 = vmatpush1.msra.mxu0 %v3596
        %4110 = vmatprep.subr.mxu0 %v3593
        %4111 = vmatpush1.msra.mxu0 %v3592
        %4112 = vmatprep.subr.mxu0 %v3589
        %4113 = vmatpush1.msra.mxu0 %v3588
        %4114 = vmatprep.subr.mxu0 %v3585
        %4115 = vmatpush1.msra.mxu0 %v3584
        %4116 = vmatprep.subr.mxu0 %v3581
        %4117 = vmatpush1.msra.mxu0 %v3580
        %4118 = vmatprep.subr.mxu0 %v3577
        %4119 = vmatpush1.msra.mxu0 %v3576
        %4120 = vmatprep.subr.mxu0 0.0
        %4121 = vmatpush2.msra.mxu0 0.0
        %4122 = vmatprep.subr.mxu0 0.0
        %4123 = vmatpush2.msra.mxu0 0.0
        %4124 = vmatprep.subr.mxu0 0.0
        %4125 = vmatpush2.msra.mxu0 0.0
        %4126 = vmatprep.subr.mxu0 0.0
        %4127 = vmatpush2.msra.mxu0 0.0
        %4128 = vmatprep.subr.mxu0 0.0
        %4129 = vmatpush2.msra.mxu0 0.0
        %4130 = vmatprep.subr.mxu0 0.0
        %4131 = vmatpush2.msra.mxu0 0.0
        %4132 = vmatprep.subr.mxu0 0.0
        %4133 = vmatpush2.msra.mxu0 0.0
        %4134 = vmatprep.subr.mxu0 0.0
        %4135 = vmatpush2.msra.mxu0 0.0
        %4136 = vmatprep.subr.mxu0 0.0
        %4137 = vmatpush2.msra.mxu0 0.0
        %4138 = vmatprep.subr.mxu0 0.0
        %4139 = vmatpush2.msra.mxu0 0.0
        %4140 = vmatprep.subr.mxu0 0.0
        %4141 = vmatpush2.msra.mxu0 0.0
        %4142 = vmatprep.subr.mxu0 0.0
        %4143 = vmatpush2.msra.mxu0 0.0
        %4144 = vmatprep.subr.mxu0 0.0
        %4145 = vmatpush2.msra.mxu0 0.0
        %4146 = vmatprep.subr.mxu0 0.0
        %4147 = vmatpush2.msra.mxu0 0.0
        %4148 = vmatprep.subr.mxu0 0.0
        %4149 = vmatpush2.msra.mxu0 0.0
        %4150 = vmatprep.subr.mxu0 0.0
        %4151 = vmatpush2.msra.mxu0 0.0
        %4152 = vmatprep.mubr.f32.mxu0 0.0
        %4153 = vmatmul.mubr.f32.gmra.mxu0 %v3632
        %v4154 = vpop.f32.mrf.mxu0
        %v4155 = vadd.f32 %v4066, %v4154
        %v4156 = vpop.f32.mrf.mxu0
        %v4157 = vadd.f32 %v4068, %v4156
        %4158 = vmatprep.mubr.f32.mxu0 0.0
        %4159 = vmatmul.mubr.f32.gmra.mxu0 %v3635
        %v4160 = vpop.f32.mrf.mxu0
        %v4161 = vadd.f32 %v4072, %v4160
        %v4162 = vpop.f32.mrf.mxu0
        %v4163 = vadd.f32 %v4074, %v4162
        %4164 = vmatprep.mubr.f32.mxu0 0.0
        %4165 = vmatmul.mubr.f32.gmra.mxu0 %v3638
        %v4166 = vpop.f32.mrf.mxu0
        %v4167 = vadd.f32 %v4078, %v4166
        %v4168 = vpop.f32.mrf.mxu0
        %v4169 = vadd.f32 %v4080, %v4168
        %4170 = vmatprep.mubr.f32.mxu0 0.0
        %4171 = vmatmul.mubr.f32.gmra.mxu0 %v3641
        %v4172 = vpop.f32.mrf.mxu0
        %v4173 = vadd.f32 %v4084, %v4172
        %v4174 = vpop.f32.mrf.mxu0
        %v4175 = vadd.f32 %v4086, %v4174
        %4176 = vdwg.mxu0
        %v4177 = vld [vmem:[%s6] sm:$0xff]
        %v4178 = vld [vmem:[%s6 + $0x8] sm:$0xff]
        %v4179 = vld [vmem:[%s6 + $0x10] sm:$0xff]
        %v4180 = vld [vmem:[%s6 + $0x18] sm:$0xff]
        %4182 = vset.pattern.permute.xlu0 0
        %4183 = vperm.xlu0 %4182, %v4177
        %v4184 = vpop.permute.xlu0 %4183
        %4187 = vset.pattern.permute.xlu0 0
        %4188 = vperm.xlu0 %4187, %v4178
        %v4189 = vpop.permute.xlu0 %4188
        %4192 = vset.pattern.permute.xlu0 0
        %4193 = vperm.xlu0 %4192, %v4179
        %v4194 = vpop.permute.xlu0 %4193
        %4197 = vset.pattern.permute.xlu0 0
        %4198 = vperm.xlu0 %4197, %v4180
        %v4199 = vpop.permute.xlu0 %4198
        %v4201 = vmul.f32 %v3888, %v4184
        %v4202 = vmul.f32 %v3890, %v4184
        %v4203 = vmul.f32 %v4155, %v4184
        %v4204 = vmul.f32 %v4157, %v4184
        %v4205 = vmul.f32 %v3894, %v4189
        %v4206 = vmul.f32 %v3896, %v4189
        %v4207 = vmul.f32 %v4161, %v4189
        %v4208 = vmul.f32 %v4163, %v4189
        %v4209 = vmul.f32 %v3900, %v4194
        %v4210 = vmul.f32 %v3902, %v4194
        %v4211 = vmul.f32 %v4167, %v4194
        %v4212 = vmul.f32 %v4169, %v4194
        %v4213 = vmul.f32 %v3906, %v4199
        %v4214 = vmul.f32 %v3908, %v4199
        %v4215 = vmul.f32 %v4173, %v4199
        %v4216 = vmul.f32 %v4175, %v4199
        %v4217 = vadd.f32 %v4201, %v4205
        %v4218 = vadd.f32 %v4217, %v4209
        %v4219 = vadd.f32 %v4218, %v4213
        %v4220 = vrot.slane %v4219, 4
        %v4221 = vadd.f32 %v4219, %v4220
        %v4222 = vrot.slane %v4221, 2
        %v4223 = vadd.f32 %v4221, %v4222
        %v4224 = vrot.slane %v4223, 1
        %v4225 = vadd.f32 %v4223, %v4224
        %v4226 = vadd.f32 %v4202, %v4206
        %v4227 = vadd.f32 %v4226, %v4210
        %v4228 = vadd.f32 %v4227, %v4214
        %v4229 = vrot.slane %v4228, 4
        %v4230 = vadd.f32 %v4228, %v4229
        %v4231 = vrot.slane %v4230, 2
        %v4232 = vadd.f32 %v4230, %v4231
        %v4233 = vrot.slane %v4232, 1
        %v4234 = vadd.f32 %v4232, %v4233
        %v4235 = vadd.f32 %v4203, %v4207
        %v4236 = vadd.f32 %v4235, %v4211
        %v4237 = vadd.f32 %v4236, %v4215
        %v4238 = vrot.slane %v4237, 4
        %v4239 = vadd.f32 %v4237, %v4238
        %v4240 = vrot.slane %v4239, 2
        %v4241 = vadd.f32 %v4239, %v4240
        %v4242 = vrot.slane %v4241, 1
        %v4243 = vadd.f32 %v4241, %v4242
        %v4244 = vadd.f32 %v4204, %v4208
        %v4245 = vadd.f32 %v4244, %v4212
        %v4246 = vadd.f32 %v4245, %v4216
        %v4247 = vrot.slane %v4246, 4
        %v4248 = vadd.f32 %v4246, %v4247
        %v4249 = vrot.slane %v4248, 2
        %v4250 = vadd.f32 %v4248, %v4249
        %v4251 = vrot.slane %v4250, 1
        %v4252 = vadd.f32 %v4250, %v4251
        %v4253 = vld [vmem:[#allocation4] sm:$0x1]
        %4255 = vset.pattern.permute.xlu0 0
        %4256 = vperm.xlu0 %4255, %v4253
        %v4257 = vpop.permute.xlu0 %4256
        %v4259 = vlaneseq
        %v4260 = vshrl.u32 %v4259, 7
        %v4261 = vsub.s32 0, %v4260
        %v4262 = vrot.slane %v4257, %v4261
        %v4263 = vadd.f32 %v4225, %v4262
        %v4264 = vadd.f32 %v4234, %v4262
        %v4265 = vadd.f32 %v4243, %v4262
        %v4266 = vadd.f32 %v4252, %v4262
        %v4267 = vmax.f32 %v4263, %v4265
        %v4268 = vmax.f32 %v4264, %v4266
        %v4269 = vsub.f32 %v4263, %v4267
        %v4270 = vsub.f32 %v4264, %v4268
        %v4271 = vmul.f32 %v4269, 1.442695
        %v4272 = vpow.pop %v4271
        %v4273 = vmul.f32 %v4270, 1.442695
        %v4274 = vpow.pop %v4273
        %v4275 = vsub.f32 %v4265, %v4267
        %v4276 = vsub.f32 %v4266, %v4268
        %v4277 = vmul.f32 %v4275, 1.442695
        %v4278 = vpow.pop %v4277
        %v4279 = vmul.f32 %v4276, 1.442695
        %v4280 = vpow.pop %v4279
        %v4281 = vadd.f32 %v4272, %v4278
        %v4282 = vadd.f32 %v4274, %v4280
        %v4283 = vrcp.pop %v4281
        %v4284 = vrcp.pop %v4282
        %v4285 = vmul.f32 %v4281, %v4283
        %v4286 = vmul.f32 %v4282, %v4284
        %v4287 = vsub.f32 2.0, %v4285
        %v4288 = vsub.f32 2.0, %v4286
        %v4289 = vmul.f32 %v4283, %v4287
        %v4290 = vmul.f32 %v4284, %v4288
        %v4291 = vmul.f32 %v4272, %v4289
        %v4292 = vmul.f32 %v4274, %v4290
        %v4293 = vmul.f32 %v4278, %v4289
        %v4294 = vmul.f32 %v4280, %v4290
        %v4296 = vmul.f32 %v4291, %v321
        %v4297 = vmul.f32 %v4292, %v381
        %v4299 = vmul.f32 %v4293, %v322
        %v4300 = vmul.f32 %v4294, %v382
        %v4301 = vadd.f32 %v4296, %v4299
        %v4302 = vadd.f32 %v4297, %v4300
        %v4305 = vcombine.low %v4301, %v4302
        %4307 = vst [vmem:[%s315] sm:$0xff] %v4305
        %s4308 = sand.u32 %s206, 1
        %s4309 = scalar_lea.sflag [#allocation7], %s4308
        %s4310 = sand.u32 %s206, 1
        %s4311 = smul.addr %s4310, 8
        %s4312 = scalar_lea.vmem [#allocation8], %s4311
        // Predicated region
        $region57: #{tpu_custom_call.1} parent=51 // pred_check
          %p4313 = pneg %p216
        $region58: #{tpu_custom_call.1} parent=51 // pred_check_branch
          %4315 = sbr.rel (%p4313) target = $region60
        $region59: #{tpu_custom_call.1} parent=51 // pred_region
          %s4317 = ssub.s32 128, 128
          %4318 = vsyncadd %s4309, %s4317
          %s4319 = smul.addr %s25, 2
          %s4320 = smul.addr %s4319, 64
          %s4321 = scalar_lea.hbm %s8, %s4320
          %s4323 = sshll.u32 %s4312, 4
          %s4324 = int_to_ptr.vmem [resolvable:$true] %s4323
          %4326 = dma.vmem_to_hbm [thread:$0]  %s4324, 128, %s4321, %s4309
        $region60: #{tpu_custom_call.1} parent=51 // pred_fallthru
          _
      $region52: #{tpu_custom_call.1} parent=5 // pred_fallthru
        _
      %p4327 = scmp.le.s32.totalorder 2, %s20
      // Predicated region
      $region61: #{tpu_custom_call.1} parent=5 // pred_check
        %p4328 = pneg %p4327
      $region62: #{tpu_custom_call.1} parent=5 // pred_check_branch
        %4330 = sbr.rel (%p4328) target = $region64
      $region63: #{tpu_custom_call.1} parent=5 // pred_region
        %s4331 = ssub.s32 %s20, 2
        // Predicated region
        $region65: #{tpu_custom_call.1} parent=63 // pred_check
          %p4332 = pneg %p222
        $region66: #{tpu_custom_call.1} parent=63 // pred_check_branch
          %4334 = sbr.rel (%p4332) target = $region68
        $region67: #{tpu_custom_call.1} parent=63 // pred_region
          %s4335 = sand.u32 %s207, 1
          %s4336 = scalar_lea.sflag [#allocation7], %s4335
          %s4337 = sand.u32 %s207, 1
          %s4338 = smul.addr %s4337, 8
          %s4339 = scalar_lea.vmem [#allocation8], %s4338
          %4340 = dma.done %s4336, 128
        $region68: #{tpu_custom_call.1} parent=63 // pred_fallthru
          _
      $region64: #{tpu_custom_call.1} parent=5 // pred_fallthru
        _
    $region6: #{tpu_custom_call.1} parent=1 // loop_footer
      %s24 = sadd.s32 1, %s20
    $region7: #{tpu_custom_call.1} parent=1 // loop_footer_branch
      %19 = sbr.rel target = $region3
    $region8: #{tpu_custom_call.1} parent=1 // loop_exit
      _
    %4341 = vsyncpa [#allocation6], 1
    %s4342 = scalar_lea.sflag [#allocation6], 1
    %4343 = vsyncpa %s4342, 1
    %4344 = vsyncpa [#allocation7], 1
    %s4345 = scalar_lea.sflag [#allocation7], 1
    %4346 = vsyncpa %s4345, 1

</llo_original>
